<compile_context>
chip_gen: v7x
topology: tpu7x:2x2x1
jax: 0.10.0
libtpu: 0.0.40
codegen_flags: <defaults>
</compile_context>

<pallas_src>
import functools

import jax
import jax.numpy as jnp
from jax import lax
from jax.experimental import pallas as pl
from jax.experimental.pallas import tpu as pltpu

CPAD = 128          # lane-dense padded output-channel width for every conv
LRELU_SLOPE = 0.2
GN_EPS = 1e-5
GN_GROUPS = 7


def _round_up(x, m):
    return (x + m - 1) // m * m


# ----------------------------------------------------------------------------
# Kernel 1: batched conv matmul + elementwise activation.
#   a_ref: [B*S_pad, K] bf16, w_ref: [K, 128] bf16 -> o_ref: [B*S_pad, 128]
# ----------------------------------------------------------------------------
def _matmul_act_kernel(a_ref, w_ref, o_ref, *, act):
    acc = jnp.dot(a_ref[...], w_ref[...], preferred_element_type=jnp.float32)
    if act == "leaky_relu":
        y = jnp.where(acc > 0, acc, LRELU_SLOPE * acc)
    elif act == "sigmoid":
        # numerically stable sigmoid on the f32 accumulator (no inf transient)
        z = jnp.exp(-jnp.abs(acc))
        inv = 1.0 / (1.0 + z)
        y = jnp.where(acc >= 0, inv, z * inv)
    else:
        y = acc
    o_ref[...] = y.astype(o_ref.dtype)


# ----------------------------------------------------------------------------
# Kernel 2: batched conv matmul + GroupNorm(7) + LeakyReLU, fully fused.
#   pool_ref is [128,128] with 1/group_size at (c',c) when both are real
#   channels of the same group, so  per_channel_sums @ pool * (1/S_real) ==
#   the group mean broadcast onto every channel of that group.  Variance is
#   two-pass (centered); zero-padded rows s >= s_real are masked out of it.
# ----------------------------------------------------------------------------
def _matmul_gn_lrelu_kernel(a_ref, w_ref, pool_ref, gamma_ref, beta_ref, o_ref,
                            *, b, s_pad, s_real):
    x2 = jnp.dot(a_ref[...], w_ref[...], preferred_element_type=jnp.float32)
    c = x2.shape[-1]
    x3 = x2.reshape(b, s_pad, c)            # tile-aligned split (s_pad % 8 == 0)
    pool = pool_ref[...]
    inv_n = 1.0 / float(s_real)

    # Padded rows of x3 are exactly zero (zero patches, no bias) so the plain
    # column sums with divisor s_real already give the correct group mean.
    mean_g = jnp.dot(jnp.sum(x3, axis=1), pool,
                     preferred_element_type=jnp.float32) * inv_n      # [b, c]

    row = lax.broadcasted_iota(jnp.int32, (1, s_pad, 1), 1)
    xc = jnp.where(row < s_real, x3 - mean_g[:, None, :], 0.0)

    var_g = jnp.dot(jnp.sum(xc * xc, axis=1), pool,
                    preferred_element_type=jnp.float32) * inv_n       # [b, c]
    rstd_g = lax.rsqrt(var_g + GN_EPS)

    scale = (rstd_g * gamma_ref[...])[:, None, :]                     # [b, 1, c]
    y = xc * scale + beta_ref[...].reshape(1, 1, c)
    y = jnp.where(y > 0, y, LRELU_SLOPE * y)
    o_ref[...] = y.reshape(b * s_pad, c).astype(o_ref.dtype)


# ----------------------------------------------------------------------------
# pallas_call wrapper: grid=(n_steps,), one (B, S_pad) slab of samples per step.
# ----------------------------------------------------------------------------
def conv_pallas(a2d, w_mat, *, b, s_pad, act="none", gn=None, s_real=None,
                out_dtype=jnp.bfloat16):
    m, k = a2d.shape
    kw_, c = w_mat.shape
    assert k == kw_ and c == CPAD and m % (b * s_pad) == 0, (a2d.shape, w_mat.shape)
    blk_m = b * s_pad
    n_steps = m // blk_m
    a2d = a2d.astype(jnp.bfloat16)
    cparams = pltpu.CompilerParams(dimension_semantics=("parallel",))

    if gn is None:
        return pl.pallas_call(
            functools.partial(_matmul_act_kernel, act=act),
            out_shape=jax.ShapeDtypeStruct((m, c), out_dtype),
            grid=(n_steps,),
            in_specs=[
                pl.BlockSpec((blk_m, k), lambda n: (n, 0)),
                pl.BlockSpec((k, c), lambda n: (0, 0)),
            ],
            out_specs=pl.BlockSpec((blk_m, c), lambda n: (n, 0)),
            compiler_params=cparams,
        )(a2d, w_mat)

    return pl.pallas_call(
        functools.partial(_matmul_gn_lrelu_kernel, b=b, s_pad=s_pad,
                          s_real=s_real),
        out_shape=jax.ShapeDtypeStruct((m, c), out_dtype),
        grid=(n_steps,),
        in_specs=[
            pl.BlockSpec((blk_m, k), lambda n: (n, 0)),
            pl.BlockSpec((k, c), lambda n: (0, 0)),
            pl.BlockSpec((c, c), lambda n: (0, 0)),
            pl.BlockSpec((1, c), lambda n: (0, 0)),
            pl.BlockSpec((1, c), lambda n: (0, 0)),
        ],
        out_specs=pl.BlockSpec((blk_m, c), lambda n: (n, 0)),
        compiler_params=cparams,
    )(a2d, w_mat, gn["pool"], gn["gamma"], gn["beta"])


# ----------------------------------------------------------------------------
# Glue (pure data movement, plain JAX).
# ----------------------------------------------------------------------------
def im2col_k4s2p1(x_nhwc):
    """im2col for the first conv (k=4, s=2, p=1). Patch layout = (kh, kw, cin)."""
    n, h, w, c = x_nhwc.shape
    xp = jnp.pad(x_nhwc, ((0, 0), (1, 1), (1, 1), (0, 0)))
    oh = (h + 2 - 4) // 2 + 1
    ow = (w + 2 - 4) // 2 + 1
    cols = []
    for kh in range(4):
        for kw in range(4):
            cols.append(xp[:, kh:kh + 2 * oh:2, kw:kw + 2 * ow:2, :])
    patches = jnp.stack(cols, axis=3)                  # [n, oh, ow, 16, c]
    return patches.reshape(n, oh * ow, 16 * c), (oh, ow)


def space_to_depth_k2s2(x_nhwc):
    """im2col for a k=2,s=2,p=0 conv == 2x2 space-to-depth (crops odd edges)."""
    n, h, w, c = x_nhwc.shape
    oh, ow = h // 2, w // 2
    x = x_nhwc[:, :2 * oh, :2 * ow, :]
    x = x.reshape(n, oh, 2, ow, 2, c).transpose(0, 1, 3, 2, 4, 5)
    return x.reshape(n, oh * ow, 4 * c), (oh, ow)


def _pad_patches(a, s_pad, k_pad):
    """Zero-pad [N, S, K] -> [N, s_pad, k_pad] and flatten to [N*s_pad, k_pad]."""
    n, s, k = a.shape
    a = jnp.pad(a, ((0, 0), (0, s_pad - s), (0, k_pad - k)))
    return a.reshape(n * s_pad, k_pad)


# ----------------------------------------------------------------------------
# Parameter preparation: Cout padded to 128 (lane-dense stores); K rows kept at
# the real input-channel count except layer 1 (padded 16 -> 128).
# ----------------------------------------------------------------------------
def prepare_params(raw):
    def prep_w(w, k_pad=None):
        cout, cin, kh, kw = w.shape
        wt = jnp.transpose(w, (2, 3, 1, 0)).reshape(kh * kw * cin, cout)
        k_pad = wt.shape[0] if k_pad is None else k_pad
        wt = jnp.pad(wt, ((0, k_pad - wt.shape[0]), (0, CPAD - cout)))
        return wt.astype(jnp.bfloat16)

    def prep_gn(gamma, beta):
        c = gamma.shape[0]
        cg = c // GN_GROUPS
        ch = jnp.arange(CPAD)
        valid = ch < c
        same_group = (ch[:, None] // cg) == (ch[None, :] // cg)
        pool = jnp.where(valid[:, None] & valid[None, :], same_group, False)
        # pool kept f32: values are exact powers of two and the pool matmuls
        # are tiny [B,128]@[128,128] ops, so favor accuracy over MXU passes.
        return {
            "pool": pool.astype(jnp.float32) / float(cg),
            "gamma": jnp.pad(gamma, (0, CPAD - c)).reshape(1, CPAD).astype(jnp.float32),
            "beta": jnp.pad(beta, (0, CPAD - c)).reshape(1, CPAD).astype(jnp.float32),
        }

    return {
        "w1": prep_w(raw["w1"], k_pad=128),   # K: 16 -> 128 (lane-dense A loads)
        "w2": prep_w(raw["w2"]),              # K = 4*28  = 112 (real channels only)
        "w3": prep_w(raw["w3"]),              # K = 4*56  = 224
        "w4": prep_w(raw["w4"]),              # K = 4*112 = 448
        "gn2": prep_gn(raw["g2"], raw["b2"]),
        "gn3": prep_gn(raw["g3"], raw["b3"]),
    }


# ----------------------------------------------------------------------------
# Discriminator forward, matching:
#   Conv(1->28,k4,s2,p1) LReLU | Conv(28->56,k2,s2) GN(7) LReLU |
#   Conv(56->112,k2,s2) GN(7) LReLU | Conv(112->1,k2,s2) Sigmoid
# ----------------------------------------------------------------------------
def discriminator_forward(params, x_nchw, block_b=32):
    n = x_nchw.shape[0]
    # Batch tile: amortize per-step overhead, keep >=2 steps so both v7x TCs
    # get work.  With block_b=32 the largest per-step slab (layer 1) is
    # 32*200*128 bf16 ~ 1.6 MiB (x2 double-buffered) -- far under the 32 MiB
    # scoped-VMEM default on every generation.  On v5e/v6e (128 MiB, single TC)
    # block_b can be pushed to 256+ for big batches.
    n_steps = max(2, pl.cdiv(n, block_b)) if n >= 2 else 1
    b = pl.cdiv(n, n_steps)
    n_pad = b * n_steps
    c1, c2, c3 = 28, 56, 112                  # real channel counts per layer

    x = jnp.transpose(x_nchw, (0, 2, 3, 1))                         # NHWC
    x = jnp.pad(x, ((0, n_pad - n), (0, 0), (0, 0), (0, 0)))

    # Layer 1: Conv(1->28, k4, s2, p1) + LeakyReLU
    a, (oh, ow) = im2col_k4s2p1(x)                                  # [n_pad, 196, 16]
    s, s_pad = oh * ow, _round_up(oh * ow, 8)
    y = conv_pallas(_pad_patches(a, s_pad, 128), params["w1"],
                    b=b, s_pad=s_pad, act="leaky_relu")
    x = y.reshape(n_pad, s_pad, CPAD)[:, :s, :c1].reshape(n_pad, oh, ow, c1)

    # Layer 2: Conv(28->56, k2, s2) + GroupNorm(7) + LeakyReLU
    a, (oh, ow) = space_to_depth_k2s2(x)                            # [n_pad, 49, 112]
    s, s_pad = oh * ow, _round_up(oh * ow, 8)
    y = conv_pallas(_pad_patches(a, s_pad, a.shape[-1]), params["w2"],
                    b=b, s_pad=s_pad, gn=params["gn2"], s_real=s)
    x = y.reshape(n_pad, s_pad, CPAD)[:, :s, :c2].reshape(n_pad, oh, ow, c2)

    # Layer 3: Conv(56->112, k2, s2) + GroupNorm(7) + LeakyReLU
    a, (oh, ow) = space_to_depth_k2s2(x)                            # [n_pad, 9, 224]
    s, s_pad = oh * ow, _round_up(oh * ow, 8)
    y = conv_pallas(_pad_patches(a, s_pad, a.shape[-1]), params["w3"],
                    b=b, s_pad=s_pad, gn=params["gn3"], s_real=s)
    x = y.reshape(n_pad, s_pad, CPAD)[:, :s, :c3].reshape(n_pad, oh, ow, c3)

    # Layer 4: Conv(112->1, k2, s2) + Sigmoid
    a, (oh, ow) = space_to_depth_k2s2(x)                            # [n_pad, 1, 448]
    s, s_pad = oh * ow, _round_up(oh * ow, 8)
    y = conv_pallas(_pad_patches(a, s_pad, a.shape[-1]), params["w4"],
                    b=b, s_pad=s_pad, act="sigmoid", out_dtype=jnp.float32)
    y = y.reshape(n_pad, s_pad, CPAD)[:n, :s, :1].reshape(n, oh, ow, 1)
    return jnp.transpose(y, (0, 3, 1, 2))                           # NCHW


def init_params(key):
    keys = jax.random.split(key, 4)

    def conv_w(k, cout, cin, ksz):
        fan_in = float(cin * ksz * ksz)
        return jax.random.normal(k, (cout, cin, ksz, ksz), jnp.float32) / jnp.sqrt(fan_in)

    return {
        "w1": conv_w(keys[0], 28, 1, 4),
        "w2": conv_w(keys[1], 56, 28, 2),
        "w3": conv_w(keys[2], 112, 56, 2),
        "w4": conv_w(keys[3], 1, 112, 2),
        # GroupNorm affine params: PyTorch default init (weight=1, bias=0).
        "g2": jnp.ones((56,), jnp.float32), "b2": jnp.zeros((56,), jnp.float32),
        "g3": jnp.ones((112,), jnp.float32), "b3": jnp.zeros((112,), jnp.float32),
    }


# ----------------------------------------------------------------------------
# Pure-JAX f32 reference (lax conv + GroupNorm) for a correctness check.
# ----------------------------------------------------------------------------
def reference_forward(raw, x_nchw):
    def conv(x, w, stride, pad):
        return lax.conv_general_dilated(
            x, w, (stride, stride), [(pad, pad), (pad, pad)],
            dimension_numbers=("NCHW", "OIHW", "NCHW"))

    def group_norm(x, gamma, beta):
        n, c, h, w = x.shape
        xg = x.reshape(n, GN_GROUPS, c // GN_GROUPS, h, w)
        mean = jnp.mean(xg, axis=(2, 3, 4), keepdims=True)
        var = jnp.mean((xg - mean) ** 2, axis=(2, 3, 4), keepdims=True)
        xn = ((xg - mean) * lax.rsqrt(var + GN_EPS)).reshape(n, c, h, w)
        return xn * gamma[None, :, None, None] + beta[None, :, None, None]

    lrelu = lambda t: jnp.where(t > 0, t, LRELU_SLOPE * t)
    x = lrelu(conv(x_nchw, raw["w1"], 2, 1))
    x = lrelu(group_norm(conv(x, raw["w2"], 2, 0), raw["g2"], raw["b2"]))
    x = lrelu(group_norm(conv(x, raw["w3"], 2, 0), raw["g3"], raw["b3"]))
    return jax.nn.sigmoid(conv(x, raw["w4"], 2, 0))


if __name__ == "__main__":
    key = jax.random.PRNGKey(0)
    pkey, xkey = jax.random.split(key)
    raw = init_params(pkey)
    params = prepare_params(raw)
    # MNIST-shaped input: batch=8, 1 channel, 28x28 -> 2 grid steps of 4 samples.
    x = jax.random.normal(xkey, (8, 1, 28, 28), jnp.float32)

    fwd = jax.jit(functools.partial(discriminator_forward, block_b=32))
    out = jax.block_until_ready(fwd(params, x))
    assert out.shape == (8, 1, 1, 1), out.shape
    assert bool(jnp.all(jnp.isfinite(out)))
    assert bool(jnp.all((out >= 0.0) & (out <= 1.0)))

    # bf16 Pallas pipeline vs f32 XLA reference (loose tolerance for bf16).
    ref = reference_forward(raw, x)
    max_err = float(jnp.max(jnp.abs(out - ref)))
    assert max_err < 5e-2, max_err
    print("KERNEL_OK")
</pallas_src>

<mosaic_0001>
module attributes {stable_mosaic.version = 11 : i64} {
  func.func @_matmul_act_kernel(%arg0: i32, %arg1: memref<800x128xbf16, #tpu.memory_space<vmem>>, %arg2: memref<128x128xbf16, #tpu.memory_space<vmem>>, %arg3: memref<800x128xbf16, #tpu.memory_space<vmem>>) attributes {dimension_semantics = [#tpu.dimension_semantics<parallel>], iteration_bounds = array<i64: 2>, scalar_prefetch = 0 : i64, scratch_operands = 0 : i64, tpu.core_type = #tpu.core_type<tc>, window_params = [{transform_indices = @transform_0, window_bounds = array<i64: 800, 128>}, {pipeline_mode = #tpu.pipeline_mode<synchronous>, transform_indices = @transform_1, window_bounds = array<i64: 128, 128>}, {transform_indices = @transform_2, window_bounds = array<i64: 800, 128>}]} {
    %c0 = arith.constant 0 : index
    %c0_0 = arith.constant 0 : index
    %0 = vector.load %arg1[%c0, %c0_0] : memref<800x128xbf16, #tpu.memory_space<vmem>>, vector<800x128xbf16>
    %c0_1 = arith.constant 0 : index
    %c0_2 = arith.constant 0 : index
    %1 = vector.load %arg2[%c0_1, %c0_2] : memref<128x128xbf16, #tpu.memory_space<vmem>>, vector<128x128xbf16>
    %cst = arith.constant dense<0.000000e+00> : vector<800x128xf32>
    %2 = tpu.matmul %0, %1, %cst {dimension_numbers = #tpu.dot_dimension_numbers<[1], [0], [0], [1], [0, 0, 1, 1], [], []>} : vector<800x128xbf16>, vector<128x128xbf16>, vector<800x128xf32> -> vector<800x128xf32>
    %cst_3 = arith.constant 0.000000e+00 : f32
    %3 = vector.broadcast %cst_3 : f32 to vector<800x128xf32>
    %4 = arith.cmpf ogt, %2, %3 : vector<800x128xf32>
    %cst_4 = arith.constant 2.000000e-01 : f32
    %5 = vector.broadcast %cst_4 : f32 to vector<800x128xf32>
    %6 = arith.mulf %5, %2 : vector<800x128xf32>
    %7 = arith.select %4, %2, %6 : vector<800x128xi1>, vector<800x128xf32>
    %8 = arith.truncf %7 : vector<800x128xf32> to vector<800x128xbf16>
    %c0_5 = arith.constant 0 : index
    %c0_6 = arith.constant 0 : index
    %9 = vector.load %arg3[%c0_5, %c0_6] : memref<800x128xbf16, #tpu.memory_space<vmem>>, vector<800x128xbf16>
    tpu.vector_store %arg3[%c0_5, %c0_6], %8 {strides = array<i32>} : memref<800x128xbf16, #tpu.memory_space<vmem>>, vector<800x128xbf16>,
    return
  }
  func.func @transform_0(%arg0: i32) -> (i32, i32) {
    %c0_i32 = arith.constant 0 : i32
    %c0_i32_0 = arith.constant 0 : i32
    return %arg0, %c0_i32 : i32, i32
  }
  func.func @transform_1(%arg0: i32) -> (i32, i32) {
    %c0_i32 = arith.constant 0 : i32
    %c0_i32_0 = arith.constant 0 : i32
    %c0_i32_1 = arith.constant 0 : i32
    return %c0_i32, %c0_i32_0 : i32, i32
  }
  func.func @transform_2(%arg0: i32) -> (i32, i32) {
    %c0_i32 = arith.constant 0 : i32
    %c0_i32_0 = arith.constant 0 : i32
    return %arg0, %c0_i32 : i32, i32
  }
}

module attributes {stable_mosaic.version = 11 : i64} {
  func.func @_matmul_gn_lrelu_kernel(%arg0: i32, %arg1: memref<224x112xbf16, #tpu.memory_space<vmem>>, %arg2: memref<112x128xbf16, #tpu.memory_space<vmem>>, %arg3: memref<128x128xf32, #tpu.memory_space<vmem>>, %arg4: memref<1x128xf32, #tpu.memory_space<vmem>>, %arg5: memref<1x128xf32, #tpu.memory_space<vmem>>, %arg6: memref<224x128xbf16, #tpu.memory_space<vmem>>) attributes {dimension_semantics = [#tpu.dimension_semantics<parallel>], iteration_bounds = array<i64: 2>, scalar_prefetch = 0 : i64, scratch_operands = 0 : i64, tpu.core_type = #tpu.core_type<tc>, window_params = [{transform_indices = @transform_0, window_bounds = array<i64: 224, 112>}, {pipeline_mode = #tpu.pipeline_mode<synchronous>, transform_indices = @transform_1, window_bounds = array<i64: 112, 128>}, {pipeline_mode = #tpu.pipeline_mode<synchronous>, transform_indices = @transform_2, window_bounds = array<i64: 128, 128>}, {pipeline_mode = #tpu.pipeline_mode<synchronous>, transform_indices = @transform_3, window_bounds = array<i64: 1, 128>}, {pipeline_mode = #tpu.pipeline_mode<synchronous>, transform_indices = @transform_4, window_bounds = array<i64: 1, 128>}, {transform_indices = @transform_5, window_bounds = array<i64: 224, 128>}]} {
    %c0 = arith.constant 0 : index
    %c0_0 = arith.constant 0 : index
    %0 = vector.load %arg1[%c0, %c0_0] : memref<224x112xbf16, #tpu.memory_space<vmem>>, vector<224x112xbf16>
    %c0_1 = arith.constant 0 : index
    %c0_2 = arith.constant 0 : index
    %1 = vector.load %arg2[%c0_1, %c0_2] : memref<112x128xbf16, #tpu.memory_space<vmem>>, vector<112x128xbf16>
    %cst = arith.constant dense<0.000000e+00> : vector<224x128xf32>
    %2 = tpu.matmul %0, %1, %cst {dimension_numbers = #tpu.dot_dimension_numbers<[1], [0], [0], [1], [0, 0, 1, 1], [], []>} : vector<224x112xbf16>, vector<112x128xbf16>, vector<224x128xf32> -> vector<224x128xf32>
    %3 = vector.shape_cast %2 : vector<224x128xf32> to vector<4x56x128xf32>
    %c0_3 = arith.constant 0 : index
    %c0_4 = arith.constant 0 : index
    %4 = vector.load %arg3[%c0_3, %c0_4] : memref<128x128xf32, #tpu.memory_space<vmem>>, vector<128x128xf32>
    %cst_5 = arith.constant dense<0.000000e+00> : vector<4x128xf32>
    %5 = vector.multi_reduction <add>, %3, %cst_5 [1] : vector<4x56x128xf32> to vector<4x128xf32>
    %cst_6 = arith.constant dense<0.000000e+00> : vector<4x128xf32>
    %6 = tpu.matmul %5, %4, %cst_6 {dimension_numbers = #tpu.dot_dimension_numbers<[1], [0], [0], [1], [0, 0, 1, 1], [], []>} : vector<4x128xf32>, vector<128x128xf32>, vector<4x128xf32> -> vector<4x128xf32>
    %cst_7 = arith.constant 0.0204081628 : f32
    %7 = vector.broadcast %cst_7 : f32 to vector<4x128xf32>
    %8 = arith.mulf %6, %7 : vector<4x128xf32>
    %9 = tpu.iota {dimensions = array<i32: 1>} : vector<1x56x1xi32>
    %c49_i32 = arith.constant 49 : i32
    %10 = vector.broadcast %c49_i32 : i32 to vector<1x56x1xi32>
    %11 = arith.cmpi slt, %9, %10 : vector<1x56x1xi32>
    %12 = vector.shape_cast %8 : vector<4x128xf32> to vector<4x1x128xf32>
    %13 = vector.broadcast %12 : vector<4x1x128xf32> to vector<4x56x128xf32>
    %14 = arith.subf %3, %13 : vector<4x56x128xf32>
    %cst_8 = arith.constant 0.000000e+00 : f32
    %15 = vector.shape_cast %11 : vector<1x56x1xi1> to vector<1x56x1xi1>
    %16 = vector.broadcast %15 : vector<1x56x1xi1> to vector<4x56x128xi1>
    %17 = vector.broadcast %cst_8 : f32 to vector<4x56x128xf32>
    %18 = arith.select %16, %14, %17 : vector<4x56x128xi1>, vector<4x56x128xf32>
    %19 = arith.mulf %18, %18 : vector<4x56x128xf32>
    %cst_9 = arith.constant dense<0.000000e+00> : vector<4x128xf32>
    %20 = vector.multi_reduction <add>, %19, %cst_9 [1] : vector<4x56x128xf32> to vector<4x128xf32>
    %cst_10 = arith.constant dense<0.000000e+00> : vector<4x128xf32>
    %21 = tpu.matmul %20, %4, %cst_10 {dimension_numbers = #tpu.dot_dimension_numbers<[1], [0], [0], [1], [0, 0, 1, 1], [], []>} : vector<4x128xf32>, vector<128x128xf32>, vector<4x128xf32> -> vector<4x128xf32>
    %cst_11 = arith.constant 0.0204081628 : f32
    %22 = vector.broadcast %cst_11 : f32 to vector<4x128xf32>
    %23 = arith.mulf %21, %22 : vector<4x128xf32>
    %cst_12 = arith.constant 9.99999974E-6 : f32
    %24 = vector.broadcast %cst_12 : f32 to vector<4x128xf32>
    %25 = arith.addf %23, %24 : vector<4x128xf32>
    %26 = math.rsqrt %25 : vector<4x128xf32>
    %c0_13 = arith.constant 0 : index
    %c0_14 = arith.constant 0 : index
    %27 = vector.load %arg4[%c0_13, %c0_14] : memref<1x128xf32, #tpu.memory_space<vmem>>, vector<1x128xf32>
    %28 = vector.broadcast %27 : vector<1x128xf32> to vector<4x128xf32>
    %29 = arith.mulf %26, %28 : vector<4x128xf32>
    %30 = vector.shape_cast %29 : vector<4x128xf32> to vector<4x1x128xf32>
    %31 = vector.broadcast %30 : vector<4x1x128xf32> to vector<4x56x128xf32>
    %32 = arith.mulf %18, %31 : vector<4x56x128xf32>
    %c0_15 = arith.constant 0 : index
    %c0_16 = arith.constant 0 : index
    %33 = vector.load %arg5[%c0_15, %c0_16] : memref<1x128xf32, #tpu.memory_space<vmem>>, vector<1x128xf32>
    %34 = vector.shape_cast %33 : vector<1x128xf32> to vector<1x1x128xf32>
    %35 = vector.broadcast %34 : vector<1x1x128xf32> to vector<4x56x128xf32>
    %36 = arith.addf %32, %35 : vector<4x56x128xf32>
    %cst_17 = arith.constant 0.000000e+00 : f32
    %37 = vector.broadcast %cst_17 : f32 to vector<4x56x128xf32>
    %38 = arith.cmpf ogt, %36, %37 : vector<4x56x128xf32>
    %cst_18 = arith.constant 2.000000e-01 : f32
    %39 = vector.broadcast %cst_18 : f32 to vector<4x56x128xf32>
    %40 = arith.mulf %39, %36 : vector<4x56x128xf32>
    %41 = arith.select %38, %36, %40 : vector<4x56x128xi1>, vector<4x56x128xf32>
    %42 = vector.shape_cast %41 : vector<4x56x128xf32> to vector<224x128xf32>
    %43 = arith.truncf %42 : vector<224x128xf32> to vector<224x128xbf16>
    %c0_19 = arith.constant 0 : index
    %c0_20 = arith.constant 0 : index
    %44 = vector.load %arg6[%c0_19, %c0_20] : memref<224x128xbf16, #tpu.memory_space<vmem>>, vector<224x128xbf16>
    tpu.vector_store %arg6[%c0_19, %c0_20], %43 {strides = array<i32>} : memref<224x128xbf16, #tpu.memory_space<vmem>>, vector<224x128xbf16>,
    return
  }
  func.func @transform_0(%arg0: i32) -> (i32, i32) {
    %c0_i32 = arith.constant 0 : i32
    %c0_i32_0 = arith.constant 0 : i32
    return %arg0, %c0_i32 : i32, i32
  }
  func.func @transform_1(%arg0: i32) -> (i32, i32) {
    %c0_i32 = arith.constant 0 : i32
    %c0_i32_0 = arith.constant 0 : i32
    %c0_i32_1 = arith.constant 0 : i32
    return %c0_i32, %c0_i32_0 : i32, i32
  }
  func.func @transform_2(%arg0: i32) -> (i32, i32) {
    %c0_i32 = arith.constant 0 : i32
    %c0_i32_0 = arith.constant 0 : i32
    %c0_i32_1 = arith.constant 0 : i32
    return %c0_i32, %c0_i32_0 : i32, i32
  }
  func.func @transform_3(%arg0: i32) -> (i32, i32) {
    %c0_i32 = arith.constant 0 : i32
    %c0_i32_0 = arith.constant 0 : i32
    %c0_i32_1 = arith.constant 0 : i32
    return %c0_i32, %c0_i32_0 : i32, i32
  }
  func.func @transform_4(%arg0: i32) -> (i32, i32) {
    %c0_i32 = arith.constant 0 : i32
    %c0_i32_0 = arith.constant 0 : i32
    %c0_i32_1 = arith.constant 0 : i32
    return %c0_i32, %c0_i32_0 : i32, i32
  }
  func.func @transform_5(%arg0: i32) -> (i32, i32) {
    %c0_i32 = arith.constant 0 : i32
    %c0_i32_0 = arith.constant 0 : i32
    return %arg0, %c0_i32 : i32, i32
  }
}

module attributes {stable_mosaic.version = 11 : i64} {
  func.func @_matmul_gn_lrelu_kernel(%arg0: i32, %arg1: memref<64x224xbf16, #tpu.memory_space<vmem>>, %arg2: memref<224x128xbf16, #tpu.memory_space<vmem>>, %arg3: memref<128x128xf32, #tpu.memory_space<vmem>>, %arg4: memref<1x128xf32, #tpu.memory_space<vmem>>, %arg5: memref<1x128xf32, #tpu.memory_space<vmem>>, %arg6: memref<64x128xbf16, #tpu.memory_space<vmem>>) attributes {dimension_semantics = [#tpu.dimension_semantics<parallel>], iteration_bounds = array<i64: 2>, scalar_prefetch = 0 : i64, scratch_operands = 0 : i64, tpu.core_type = #tpu.core_type<tc>, window_params = [{transform_indices = @transform_0, window_bounds = array<i64: 64, 224>}, {pipeline_mode = #tpu.pipeline_mode<synchronous>, transform_indices = @transform_1, window_bounds = array<i64: 224, 128>}, {pipeline_mode = #tpu.pipeline_mode<synchronous>, transform_indices = @transform_2, window_bounds = array<i64: 128, 128>}, {pipeline_mode = #tpu.pipeline_mode<synchronous>, transform_indices = @transform_3, window_bounds = array<i64: 1, 128>}, {pipeline_mode = #tpu.pipeline_mode<synchronous>, transform_indices = @transform_4, window_bounds = array<i64: 1, 128>}, {transform_indices = @transform_5, window_bounds = array<i64: 64, 128>}]} {
    %c0 = arith.constant 0 : index
    %c0_0 = arith.constant 0 : index
    %0 = vector.load %arg1[%c0, %c0_0] : memref<64x224xbf16, #tpu.memory_space<vmem>>, vector<64x224xbf16>
    %c0_1 = arith.constant 0 : index
    %c0_2 = arith.constant 0 : index
    %1 = vector.load %arg2[%c0_1, %c0_2] : memref<224x128xbf16, #tpu.memory_space<vmem>>, vector<224x128xbf16>
    %cst = arith.constant dense<0.000000e+00> : vector<64x128xf32>
    %2 = tpu.matmul %0, %1, %cst {dimension_numbers = #tpu.dot_dimension_numbers<[1], [0], [0], [1], [0, 0, 1, 1], [], []>} : vector<64x224xbf16>, vector<224x128xbf16>, vector<64x128xf32> -> vector<64x128xf32>
    %3 = vector.shape_cast %2 : vector<64x128xf32> to vector<4x16x128xf32>
    %c0_3 = arith.constant 0 : index
    %c0_4 = arith.constant 0 : index
    %4 = vector.load %arg3[%c0_3, %c0_4] : memref<128x128xf32, #tpu.memory_space<vmem>>, vector<128x128xf32>
    %cst_5 = arith.constant dense<0.000000e+00> : vector<4x128xf32>
    %5 = vector.multi_reduction <add>, %3, %cst_5 [1] : vector<4x16x128xf32> to vector<4x128xf32>
    %cst_6 = arith.constant dense<0.000000e+00> : vector<4x128xf32>
    %6 = tpu.matmul %5, %4, %cst_6 {dimension_numbers = #tpu.dot_dimension_numbers<[1], [0], [0], [1], [0, 0, 1, 1], [], []>} : vector<4x128xf32>, vector<128x128xf32>, vector<4x128xf32> -> vector<4x128xf32>
    %cst_7 = arith.constant 0.111111112 : f32
    %7 = vector.broadcast %cst_7 : f32 to vector<4x128xf32>
    %8 = arith.mulf %6, %7 : vector<4x128xf32>
    %9 = tpu.iota {dimensions = array<i32: 1>} : vector<1x16x1xi32>
    %c9_i32 = arith.constant 9 : i32
    %10 = vector.broadcast %c9_i32 : i32 to vector<1x16x1xi32>
    %11 = arith.cmpi slt, %9, %10 : vector<1x16x1xi32>
    %12 = vector.shape_cast %8 : vector<4x128xf32> to vector<4x1x128xf32>
    %13 = vector.broadcast %12 : vector<4x1x128xf32> to vector<4x16x128xf32>
    %14 = arith.subf %3, %13 : vector<4x16x128xf32>
    %cst_8 = arith.constant 0.000000e+00 : f32
    %15 = vector.shape_cast %11 : vector<1x16x1xi1> to vector<1x16x1xi1>
    %16 = vector.broadcast %15 : vector<1x16x1xi1> to vector<4x16x128xi1>
    %17 = vector.broadcast %cst_8 : f32 to vector<4x16x128xf32>
    %18 = arith.select %16, %14, %17 : vector<4x16x128xi1>, vector<4x16x128xf32>
    %19 = arith.mulf %18, %18 : vector<4x16x128xf32>
    %cst_9 = arith.constant dense<0.000000e+00> : vector<4x128xf32>
    %20 = vector.multi_reduction <add>, %19, %cst_9 [1] : vector<4x16x128xf32> to vector<4x128xf32>
    %cst_10 = arith.constant dense<0.000000e+00> : vector<4x128xf32>
    %21 = tpu.matmul %20, %4, %cst_10 {dimension_numbers = #tpu.dot_dimension_numbers<[1], [0], [0], [1], [0, 0, 1, 1], [], []>} : vector<4x128xf32>, vector<128x128xf32>, vector<4x128xf32> -> vector<4x128xf32>
    %cst_11 = arith.constant 0.111111112 : f32
    %22 = vector.broadcast %cst_11 : f32 to vector<4x128xf32>
    %23 = arith.mulf %21, %22 : vector<4x128xf32>
    %cst_12 = arith.constant 9.99999974E-6 : f32
    %24 = vector.broadcast %cst_12 : f32 to vector<4x128xf32>
    %25 = arith.addf %23, %24 : vector<4x128xf32>
    %26 = math.rsqrt %25 : vector<4x128xf32>
    %c0_13 = arith.constant 0 : index
    %c0_14 = arith.constant 0 : index
    %27 = vector.load %arg4[%c0_13, %c0_14] : memref<1x128xf32, #tpu.memory_space<vmem>>, vector<1x128xf32>
    %28 = vector.broadcast %27 : vector<1x128xf32> to vector<4x128xf32>
    %29 = arith.mulf %26, %28 : vector<4x128xf32>
    %30 = vector.shape_cast %29 : vector<4x128xf32> to vector<4x1x128xf32>
    %31 = vector.broadcast %30 : vector<4x1x128xf32> to vector<4x16x128xf32>
    %32 = arith.mulf %18, %31 : vector<4x16x128xf32>
    %c0_15 = arith.constant 0 : index
    %c0_16 = arith.constant 0 : index
    %33 = vector.load %arg5[%c0_15, %c0_16] : memref<1x128xf32, #tpu.memory_space<vmem>>, vector<1x128xf32>
    %34 = vector.shape_cast %33 : vector<1x128xf32> to vector<1x1x128xf32>
    %35 = vector.broadcast %34 : vector<1x1x128xf32> to vector<4x16x128xf32>
    %36 = arith.addf %32, %35 : vector<4x16x128xf32>
    %cst_17 = arith.constant 0.000000e+00 : f32
    %37 = vector.broadcast %cst_17 : f32 to vector<4x16x128xf32>
    %38 = arith.cmpf ogt, %36, %37 : vector<4x16x128xf32>
    %cst_18 = arith.constant 2.000000e-01 : f32
    %39 = vector.broadcast %cst_18 : f32 to vector<4x16x128xf32>
    %40 = arith.mulf %39, %36 : vector<4x16x128xf32>
    %41 = arith.select %38, %36, %40 : vector<4x16x128xi1>, vector<4x16x128xf32>
    %42 = vector.shape_cast %41 : vector<4x16x128xf32> to vector<64x128xf32>
    %43 = arith.truncf %42 : vector<64x128xf32> to vector<64x128xbf16>
    %c0_19 = arith.constant 0 : index
    %c0_20 = arith.constant 0 : index
    %44 = vector.load %arg6[%c0_19, %c0_20] : memref<64x128xbf16, #tpu.memory_space<vmem>>, vector<64x128xbf16>
    tpu.vector_store %arg6[%c0_19, %c0_20], %43 {strides = array<i32>} : memref<64x128xbf16, #tpu.memory_space<vmem>>, vector<64x128xbf16>,
    return
  }
  func.func @transform_0(%arg0: i32) -> (i32, i32) {
    %c0_i32 = arith.constant 0 : i32
    %c0_i32_0 = arith.constant 0 : i32
    return %arg0, %c0_i32 : i32, i32
  }
  func.func @transform_1(%arg0: i32) -> (i32, i32) {
    %c0_i32 = arith.constant 0 : i32
    %c0_i32_0 = arith.constant 0 : i32
    %c0_i32_1 = arith.constant 0 : i32
    return %c0_i32, %c0_i32_0 : i32, i32
  }
  func.func @transform_2(%arg0: i32) -> (i32, i32) {
    %c0_i32 = arith.constant 0 : i32
    %c0_i32_0 = arith.constant 0 : i32
    %c0_i32_1 = arith.constant 0 : i32
    return %c0_i32, %c0_i32_0 : i32, i32
  }
  func.func @transform_3(%arg0: i32) -> (i32, i32) {
    %c0_i32 = arith.constant 0 : i32
    %c0_i32_0 = arith.constant 0 : i32
    %c0_i32_1 = arith.constant 0 : i32
    return %c0_i32, %c0_i32_0 : i32, i32
  }
  func.func @transform_4(%arg0: i32) -> (i32, i32) {
    %c0_i32 = arith.constant 0 : i32
    %c0_i32_0 = arith.constant 0 : i32
    %c0_i32_1 = arith.constant 0 : i32
    return %c0_i32, %c0_i32_0 : i32, i32
  }
  func.func @transform_5(%arg0: i32) -> (i32, i32) {
    %c0_i32 = arith.constant 0 : i32
    %c0_i32_0 = arith.constant 0 : i32
    return %arg0, %c0_i32 : i32, i32
  }
}

module attributes {stable_mosaic.version = 11 : i64} {
  func.func @_matmul_act_kernel(%arg0: i32, %arg1: memref<32x448xbf16, #tpu.memory_space<vmem>>, %arg2: memref<448x128xbf16, #tpu.memory_space<vmem>>, %arg3: memref<32x128xf32, #tpu.memory_space<vmem>>) attributes {dimension_semantics = [#tpu.dimension_semantics<parallel>], iteration_bounds = array<i64: 2>, scalar_prefetch = 0 : i64, scratch_operands = 0 : i64, tpu.core_type = #tpu.core_type<tc>, window_params = [{transform_indices = @transform_0, window_bounds = array<i64: 32, 448>}, {pipeline_mode = #tpu.pipeline_mode<synchronous>, transform_indices = @transform_1, window_bounds = array<i64: 448, 128>}, {transform_indices = @transform_2, window_bounds = array<i64: 32, 128>}]} {
    %c0 = arith.constant 0 : index
    %c0_0 = arith.constant 0 : index
    %0 = vector.load %arg1[%c0, %c0_0] : memref<32x448xbf16, #tpu.memory_space<vmem>>, vector<32x448xbf16>
    %c0_1 = arith.constant 0 : index
    %c0_2 = arith.constant 0 : index
    %1 = vector.load %arg2[%c0_1, %c0_2] : memref<448x128xbf16, #tpu.memory_space<vmem>>, vector<448x128xbf16>
    %cst = arith.constant dense<0.000000e+00> : vector<32x128xf32>
    %2 = tpu.matmul %0, %1, %cst {dimension_numbers = #tpu.dot_dimension_numbers<[1], [0], [0], [1], [0, 0, 1, 1], [], []>} : vector<32x448xbf16>, vector<448x128xbf16>, vector<32x128xf32> -> vector<32x128xf32>
    %3 = math.absf %2 : vector<32x128xf32>
    %cst_3 = arith.constant 0.000000e+00 : f32
    %4 = vector.broadcast %cst_3 : f32 to vector<32x128xf32>
    %5 = arith.subf %4, %3 : vector<32x128xf32>
    %6 = math.exp %5 : vector<32x128xf32>
    %cst_4 = arith.constant 1.000000e+00 : f32
    %7 = vector.broadcast %cst_4 : f32 to vector<32x128xf32>
    %8 = arith.addf %7, %6 : vector<32x128xf32>
    %cst_5 = arith.constant 1.000000e+00 : f32
    %9 = vector.broadcast %cst_5 : f32 to vector<32x128xf32>
    %10 = arith.divf %9, %8 : vector<32x128xf32>
    %cst_6 = arith.constant 0.000000e+00 : f32
    %11 = vector.broadcast %cst_6 : f32 to vector<32x128xf32>
    %12 = arith.cmpf oge, %2, %11 : vector<32x128xf32>
    %13 = arith.mulf %6, %10 : vector<32x128xf32>
    %14 = arith.select %12, %10, %13 : vector<32x128xi1>, vector<32x128xf32>
    %c0_7 = arith.constant 0 : index
    %c0_8 = arith.constant 0 : index
    %15 = vector.load %arg3[%c0_7, %c0_8] : memref<32x128xf32, #tpu.memory_space<vmem>>, vector<32x128xf32>
    tpu.vector_store %arg3[%c0_7, %c0_8], %14 {strides = array<i32>} : memref<32x128xf32, #tpu.memory_space<vmem>>, vector<32x128xf32>,
    return
  }
  func.func @transform_0(%arg0: i32) -> (i32, i32) {
    %c0_i32 = arith.constant 0 : i32
    %c0_i32_0 = arith.constant 0 : i32
    return %arg0, %c0_i32 : i32, i32
  }
  func.func @transform_1(%arg0: i32) -> (i32, i32) {
    %c0_i32 = arith.constant 0 : i32
    %c0_i32_0 = arith.constant 0 : i32
    %c0_i32_1 = arith.constant 0 : i32
    return %c0_i32, %c0_i32_0 : i32, i32
  }
  func.func @transform_2(%arg0: i32) -> (i32, i32) {
    %c0_i32 = arith.constant 0 : i32
    %c0_i32_0 = arith.constant 0 : i32
    return %arg0, %c0_i32 : i32, i32
  }
}

</mosaic_0001>

<llo_original>
// kernel: discriminator_forward.4
$region0: #{discriminator_forward.4}
  #allocation0 [shape = 'u32[]', space=smem, size = 0x4, offset = 0x4, fixed_abs, tag = 'smem constant byte address 0x4 - core index']
  #allocation1 [shape = 'u32[144,128]{1,0:T(1,128)}', space=vmem, size = 0x12000, scoped, tag = 'internal scratch']
  %s0 = inlined_call_operand.vmem [shape: bf16[1600,128], index: 0, kind: input, shape index: {}]
  %s1 = inlined_call_operand.vmem [shape: bf16[128,128], index: 1, kind: input, shape index: {}]
  %s2 = inlined_call_operand.vmem [shape: bf16[1600,128], index: 2, kind: output, shape index: {}]
  %s3 = sld [smem:[#allocation0]]
  $region41: #{discriminator_forward.4} parent=0
    _
  %s5 = ssub.s32 1, %s3
  %s6 = scalar_select 0, %s5, %s3
  loop: start=0, step=1, limit=4
  $region2: #{discriminator_forward.4} parent=0 // loop_pre_header
    _
  $region3: #{discriminator_forward.4} parent=0 // loop_header
    %s8 = sphi 0, %s12
    %p9 = scmp.ge.s32.totalorder %s8, 4
    %s18 = sphi 0, %s20
    %s21 = sphi 0, %s18
    %s22 = sphi 0, %s21
    %s38 = sphi 0, %s22
    %s42 = sphi 0, %s42
    %s44 = sphi 0, %s42
    %s45 = sphi 0, %s44
    %s59 = sphi 0, %s45
    %s65 = sphi 0, %s67
    %s68 = sphi 0, %s65
    %s69 = sphi 0, %s68
    %s85 = sphi 0, %s69
  $region4: #{discriminator_forward.4} parent=0 // loop_header_branch
    %11 = sbr.rel (%p9) target = $region8
  $region5: #{discriminator_forward.4} parent=0 // loop_body
    %s13 = ssub.s32 %s8, 1
    %s14 = ssub.s32 %s8, 2
    %s15 = sadd.s32 %s8, 1
    %s16 = ssub.s32 %s8, %s15
    %p17 = scmp.eq.s32.totalorder %s16, 0
    %s19 = sadd.s32 %s18, 1
    %s20 = scalar_select %p17, %s18, %s19
    %p23 = pneg %p17
    %p24 = scmp.eq.s32.totalorder %s8, 1
    %p25 = por %p23, %p24
    %p26 = scmp.ne.s32.totalorder %s18, %s21
    %p27 = scmp.eq.s32.totalorder %s8, 0
    %p28 = por %p26, %p27
    %p29 = scmp.ne.s32.totalorder %s18, %s21
    %p30 = scmp.eq.s32.totalorder %s13, 1
    %p31 = por %p29, %p30
    %p32 = scmp.ne.s32.totalorder %s21, %s22
    %p33 = scmp.eq.s32.totalorder %s13, 0
    %p34 = por %p32, %p33
    %p35 = scmp.ne.s32.totalorder %s21, %s22
    %p36 = scmp.eq.s32.totalorder %s14, 1
    %p37 = por %p35, %p36
    %p39 = scmp.ne.s32.totalorder %s22, %s38
    %p40 = scmp.eq.s32.totalorder %s14, 0
    %p41 = por %p39, %p40
    %s43 = sadd.s32 %s42, 1
    %p46 = scmp.eq.s32.totalorder %s8, 1
    %p47 = scmp.ne.s32.totalorder %s42, %s44
    %p48 = scmp.eq.s32.totalorder %s8, 0
    %p49 = por %p47, %p48
    %p50 = scmp.ne.s32.totalorder %s42, %s44
    %p51 = scmp.eq.s32.totalorder %s13, 1
    %p52 = por %p50, %p51
    %p53 = scmp.ne.s32.totalorder %s44, %s45
    %p54 = scmp.eq.s32.totalorder %s13, 0
    %p55 = por %p53, %p54
    %p56 = scmp.ne.s32.totalorder %s44, %s45
    %p57 = scmp.eq.s32.totalorder %s14, 1
    %p58 = por %p56, %p57
    %p60 = scmp.ne.s32.totalorder %s45, %s59
    %p61 = scmp.eq.s32.totalorder %s14, 0
    %p62 = por %p60, %p61
    %s63 = ssub.s32 %s8, %s15
    %p64 = scmp.eq.s32.totalorder %s63, 0
    %s66 = sadd.s32 %s65, 1
    %s67 = scalar_select %p64, %s65, %s66
    %p70 = pneg %p64
    %p71 = scmp.eq.s32.totalorder %s8, 1
    %p72 = por %p70, %p71
    %p73 = scmp.ne.s32.totalorder %s65, %s68
    %p74 = scmp.eq.s32.totalorder %s8, 0
    %p75 = por %p73, %p74
    %p76 = scmp.ne.s32.totalorder %s65, %s68
    %p77 = scmp.eq.s32.totalorder %s13, 1
    %p78 = por %p76, %p77
    %p79 = scmp.ne.s32.totalorder %s68, %s69
    %p80 = scmp.eq.s32.totalorder %s13, 0
    %p81 = por %p79, %p80
    %p82 = scmp.ne.s32.totalorder %s68, %s69
    %p83 = scmp.eq.s32.totalorder %s14, 1
    %p84 = por %p82, %p83
    %p86 = scmp.ne.s32.totalorder %s69, %s85
    %p87 = scmp.eq.s32.totalorder %s14, 0
    %p88 = por %p86, %p87
    %p89 = scmp.le.s32.totalorder 1, %s8
    %p90 = scmp.lt.s32.totalorder %s8, 3
    %p91 = pnand %p89, %p90
    %p92 = pneg %p91
    // Predicated region
    $region9: #{discriminator_forward.4} parent=5 // pred_check
      _
    $region10: #{discriminator_forward.4} parent=5 // pred_check_branch
      %94 = sbr.rel (%p91) target = $region12
    $region11: #{discriminator_forward.4} parent=5 // pred_region
      %s95 = ssub.s32 %s8, 1
      // Predicated region
      $region13: #{discriminator_forward.4} parent=11 // pred_check
        %p96 = pneg %p55
      $region14: #{discriminator_forward.4} parent=11 // pred_check_branch
        %98 = sbr.rel (%p96) target = $region16
      $region15: #{discriminator_forward.4} parent=11 // pred_region
        _
      $region16: #{discriminator_forward.4} parent=11 // pred_fallthru
        _
    $region12: #{discriminator_forward.4} parent=5 // pred_fallthru
      _
    %p99 = scmp.lt.s32.totalorder %s8, 2
    // Predicated region
    $region17: #{discriminator_forward.4} parent=5 // pred_check
      %p100 = pneg %p99
    $region18: #{discriminator_forward.4} parent=5 // pred_check_branch
      %102 = sbr.rel (%p100) target = $region20
    $region19: #{discriminator_forward.4} parent=5 // pred_region
      // Predicated region
      $region21: #{discriminator_forward.4} parent=19 // pred_check
        %p103 = pneg %p28
      $region22: #{discriminator_forward.4} parent=19 // pred_check_branch
        %105 = sbr.rel (%p103) target = $region24
      $region23: #{discriminator_forward.4} parent=19 // pred_region
        %s106 = smul.u32 100, %s8
        %p107 = scmp.lt.s32.totalorder %s106, 199
        %s108 = scalar_select %p107, %s106, 199
        %s109 = smul.addr %s108, 4
        %s110 = scalar_lea.vmem %s0, %s109
        %s111 = smul.u32 100, %s8
      $region24: #{discriminator_forward.4} parent=19 // pred_fallthru
        _
    $region20: #{discriminator_forward.4} parent=5 // pred_fallthru
      _
    %p112 = scmp.le.s32.totalorder 1, %s8
    %p113 = scmp.lt.s32.totalorder %s8, 3
    %p114 = pnand %p112, %p113
    %p115 = pneg %p114
    // Predicated region
    $region25: #{discriminator_forward.4} parent=5 // pred_check
      _
    $region26: #{discriminator_forward.4} parent=5 // pred_check_branch
      %117 = sbr.rel (%p114) target = $region28
    $region27: #{discriminator_forward.4} parent=5 // pred_region
      %s118 = ssub.s32 %s8, 1
      %s119 = smul.u32 100, %s13
      %p120 = scmp.lt.s32.totalorder %s119, 199
      %s121 = scalar_select %p120, %s119, 199
      %s122 = smul.addr %s121, 4
      %s123 = scalar_lea.vmem %s0, %s122
      %p124 = pneg %p34
      %p125 = pneg %p31
      %p126 = pneg %p55
      %p127 = pneg %p52
      %p128 = pneg %p81
      %p129 = pneg %p78
      %s130 = smul.u32 100, %s13
      %p131 = scmp.lt.s32.totalorder %s130, 199
      %s132 = scalar_select %p131, %s130, 199
      %s133 = smul.addr %s132, 4
      %s134 = scalar_lea.vmem %s2, %s133
      %s135 = smul.u32 100, %s13
      %p136 = scmp.lt.s32.totalorder %s135, 199
      %s137 = scalar_select %p136, %s135, 199
      %s138 = smul.addr %s137, 4
      %s139 = scalar_lea.vmem %s0, %s138
      %s140 = smul.u32 100, %s13
      %s141 = smul.u32 100, %s13
      %p142 = scmp.lt.s32.totalorder %s141, 199
      %s143 = scalar_select %p142, %s141, 199
      %s144 = smul.addr %s143, 4
      %s145 = scalar_lea.vmem %s2, %s144
      %s146 = smul.u32 100, %s13
      %v148 = vld [vmem:[%s139] sm:$0xf]
      %v149 = vld [vmem:[%s139 + $0x4] sm:$0xf]
      %v150 = vld [vmem:[%s139 + $0x8] sm:$0xf]
      %v151 = vld [vmem:[%s139 + $0xc] sm:$0xf]
      %v152 = vld [vmem:[%s139 + $0x10] sm:$0xf]
      %v153 = vld [vmem:[%s139 + $0x14] sm:$0xf]
      %v154 = vld [vmem:[%s139 + $0x18] sm:$0xf]
      %v155 = vld [vmem:[%s139 + $0x1c] sm:$0xf]
      %v156 = vld [vmem:[%s139 + $0x20] sm:$0xf]
      %v157 = vld [vmem:[%s139 + $0x24] sm:$0xf]
      %v158 = vld [vmem:[%s139 + $0x28] sm:$0xf]
      %v159 = vld [vmem:[%s139 + $0x2c] sm:$0xf]
      %v160 = vld [vmem:[%s139 + $0x30] sm:$0xf]
      %v161 = vld [vmem:[%s139 + $0x34] sm:$0xf]
      %v162 = vld [vmem:[%s139 + $0x38] sm:$0xf]
      %v163 = vld [vmem:[%s139 + $0x3c] sm:$0xf]
      %v164 = vld [vmem:[%s139 + $0x40] sm:$0xf]
      %v165 = vld [vmem:[%s139 + $0x44] sm:$0xf]
      %v166 = vld [vmem:[%s139 + $0x48] sm:$0xf]
      %v167 = vld [vmem:[%s139 + $0x4c] sm:$0xf]
      %v168 = vld [vmem:[%s139 + $0x50] sm:$0xf]
      %v169 = vld [vmem:[%s139 + $0x54] sm:$0xf]
      %v170 = vld [vmem:[%s139 + $0x58] sm:$0xf]
      %v171 = vld [vmem:[%s139 + $0x5c] sm:$0xf]
      %v172 = vld [vmem:[%s139 + $0x60] sm:$0xf]
      %v173 = vld [vmem:[%s139 + $0x64] sm:$0xf]
      %v174 = vld [vmem:[%s139 + $0x68] sm:$0xf]
      %v175 = vld [vmem:[%s139 + $0x6c] sm:$0xf]
      %v176 = vld [vmem:[%s139 + $0x70] sm:$0xf]
      %v177 = vld [vmem:[%s139 + $0x74] sm:$0xf]
      %v178 = vld [vmem:[%s139 + $0x78] sm:$0xf]
      %v179 = vld [vmem:[%s139 + $0x7c] sm:$0xf]
      %v180 = vld [vmem:[%s139 + $0x80] sm:$0xf]
      %v181 = vld [vmem:[%s139 + $0x84] sm:$0xf]
      %v182 = vld [vmem:[%s139 + $0x88] sm:$0xf]
      %v183 = vld [vmem:[%s139 + $0x8c] sm:$0xf]
      %v184 = vld [vmem:[%s139 + $0x90] sm:$0xf]
      %v185 = vld [vmem:[%s139 + $0x94] sm:$0xf]
      %v186 = vld [vmem:[%s139 + $0x98] sm:$0xf]
      %v187 = vld [vmem:[%s139 + $0x9c] sm:$0xf]
      %v188 = vld [vmem:[%s139 + $0xa0] sm:$0xf]
      %v189 = vld [vmem:[%s139 + $0xa4] sm:$0xf]
      %v190 = vld [vmem:[%s139 + $0xa8] sm:$0xf]
      %v191 = vld [vmem:[%s139 + $0xac] sm:$0xf]
      %v192 = vld [vmem:[%s139 + $0xb0] sm:$0xf]
      %v193 = vld [vmem:[%s139 + $0xb4] sm:$0xf]
      %v194 = vld [vmem:[%s139 + $0xb8] sm:$0xf]
      %v195 = vld [vmem:[%s139 + $0xbc] sm:$0xf]
      %v196 = vld [vmem:[%s139 + $0xc0] sm:$0xf]
      %v197 = vld [vmem:[%s139 + $0xc4] sm:$0xf]
      %v198 = vld [vmem:[%s139 + $0xc8] sm:$0xf]
      %v199 = vld [vmem:[%s139 + $0xcc] sm:$0xf]
      %v200 = vld [vmem:[%s139 + $0xd0] sm:$0xf]
      %v201 = vld [vmem:[%s139 + $0xd4] sm:$0xf]
      %v202 = vld [vmem:[%s139 + $0xd8] sm:$0xf]
      %v203 = vld [vmem:[%s139 + $0xdc] sm:$0xf]
      %v204 = vld [vmem:[%s139 + $0xe0] sm:$0xf]
      %v205 = vld [vmem:[%s139 + $0xe4] sm:$0xf]
      %v206 = vld [vmem:[%s139 + $0xe8] sm:$0xf]
      %v207 = vld [vmem:[%s139 + $0xec] sm:$0xf]
      %v208 = vld [vmem:[%s139 + $0xf0] sm:$0xf]
      %v209 = vld [vmem:[%s139 + $0xf4] sm:$0xf]
      %v210 = vld [vmem:[%s139 + $0xf8] sm:$0xf]
      %v211 = vld [vmem:[%s139 + $0xfc] sm:$0xf]
      %v212 = vld [vmem:[%s139 + $0x100] sm:$0xf]
      %v213 = vld [vmem:[%s139 + $0x104] sm:$0xf]
      %v214 = vld [vmem:[%s139 + $0x108] sm:$0xf]
      %v215 = vld [vmem:[%s139 + $0x10c] sm:$0xf]
      %v216 = vld [vmem:[%s139 + $0x110] sm:$0xf]
      %v217 = vld [vmem:[%s139 + $0x114] sm:$0xf]
      %v218 = vld [vmem:[%s139 + $0x118] sm:$0xf]
      %v219 = vld [vmem:[%s139 + $0x11c] sm:$0xf]
      %v220 = vld [vmem:[%s139 + $0x120] sm:$0xf]
      %v221 = vld [vmem:[%s139 + $0x124] sm:$0xf]
      %v222 = vld [vmem:[%s139 + $0x128] sm:$0xf]
      %v223 = vld [vmem:[%s139 + $0x12c] sm:$0xf]
      %v224 = vld [vmem:[%s139 + $0x130] sm:$0xf]
      %v225 = vld [vmem:[%s139 + $0x134] sm:$0xf]
      %v226 = vld [vmem:[%s139 + $0x138] sm:$0xf]
      %v227 = vld [vmem:[%s139 + $0x13c] sm:$0xf]
      %v228 = vld [vmem:[%s139 + $0x140] sm:$0xf]
      %v229 = vld [vmem:[%s139 + $0x144] sm:$0xf]
      %v230 = vld [vmem:[%s139 + $0x148] sm:$0xf]
      %v231 = vld [vmem:[%s139 + $0x14c] sm:$0xf]
      %v232 = vld [vmem:[%s139 + $0x150] sm:$0xf]
      %v233 = vld [vmem:[%s139 + $0x154] sm:$0xf]
      %v234 = vld [vmem:[%s139 + $0x158] sm:$0xf]
      %v235 = vld [vmem:[%s139 + $0x15c] sm:$0xf]
      %v236 = vld [vmem:[%s139 + $0x160] sm:$0xf]
      %v237 = vld [vmem:[%s139 + $0x164] sm:$0xf]
      %v238 = vld [vmem:[%s139 + $0x168] sm:$0xf]
      %v239 = vld [vmem:[%s139 + $0x16c] sm:$0xf]
      %v240 = vld [vmem:[%s139 + $0x170] sm:$0xf]
      %v241 = vld [vmem:[%s139 + $0x174] sm:$0xf]
      %v242 = vld [vmem:[%s139 + $0x178] sm:$0xf]
      %v243 = vld [vmem:[%s139 + $0x17c] sm:$0xf]
      %v244 = vld [vmem:[%s139 + $0x180] sm:$0xf]
      %v245 = vld [vmem:[%s139 + $0x184] sm:$0xf]
      %v246 = vld [vmem:[%s139 + $0x188] sm:$0xf]
      %v247 = vld [vmem:[%s139 + $0x18c] sm:$0xf]
      %v248 = vld [vmem:[%s1] sm:$0xf]
      %v249 = vld [vmem:[%s1 + $0x4] sm:$0xf]
      %v250 = vld [vmem:[%s1 + $0x8] sm:$0xf]
      %v251 = vld [vmem:[%s1 + $0xc] sm:$0xf]
      %v252 = vld [vmem:[%s1 + $0x10] sm:$0xf]
      %v253 = vld [vmem:[%s1 + $0x14] sm:$0xf]
      %v254 = vld [vmem:[%s1 + $0x18] sm:$0xf]
      %v255 = vld [vmem:[%s1 + $0x1c] sm:$0xf]
      %v256 = vld [vmem:[%s1 + $0x20] sm:$0xf]
      %v257 = vld [vmem:[%s1 + $0x24] sm:$0xf]
      %v258 = vld [vmem:[%s1 + $0x28] sm:$0xf]
      %v259 = vld [vmem:[%s1 + $0x2c] sm:$0xf]
      %v260 = vld [vmem:[%s1 + $0x30] sm:$0xf]
      %v261 = vld [vmem:[%s1 + $0x34] sm:$0xf]
      %v262 = vld [vmem:[%s1 + $0x38] sm:$0xf]
      %v263 = vld [vmem:[%s1 + $0x3c] sm:$0xf]
      %v364 = vunpack.c.l.b16 %v148
      %v365 = vunpack.c.l.b16 %v149
      %v366 = vunpack.c.l.b16 %v150
      %v367 = vunpack.c.l.b16 %v151
      %v368 = vunpack.c.l.b16 %v152
      %v369 = vunpack.c.l.b16 %v153
      %v370 = vunpack.c.l.b16 %v154
      %v371 = vunpack.c.l.b16 %v155
      %v372 = vunpack.c.l.b16 %v156
      %v373 = vunpack.c.l.b16 %v157
      %v374 = vunpack.c.l.b16 %v158
      %v375 = vunpack.c.l.b16 %v159
      %v376 = vunpack.c.l.b16 %v160
      %v377 = vunpack.c.l.b16 %v161
      %v378 = vunpack.c.l.b16 %v162
      %v379 = vunpack.c.l.b16 %v163
      %v380 = vunpack.c.l.b16 %v164
      %v381 = vunpack.c.l.b16 %v165
      %v382 = vunpack.c.l.b16 %v166
      %v383 = vunpack.c.l.b16 %v167
      %v384 = vunpack.c.l.b16 %v168
      %v385 = vunpack.c.l.b16 %v169
      %v386 = vunpack.c.l.b16 %v170
      %v387 = vunpack.c.l.b16 %v171
      %v388 = vunpack.c.l.b16 %v172
      %v389 = vunpack.c.l.b16 %v173
      %v390 = vunpack.c.l.b16 %v174
      %v391 = vunpack.c.l.b16 %v175
      %v392 = vunpack.c.l.b16 %v176
      %v393 = vunpack.c.l.b16 %v177
      %v394 = vunpack.c.l.b16 %v178
      %v395 = vunpack.c.l.b16 %v179
      %v396 = vunpack.c.l.b16 %v180
      %v397 = vunpack.c.l.b16 %v181
      %v398 = vunpack.c.l.b16 %v182
      %v399 = vunpack.c.l.b16 %v183
      %v400 = vunpack.c.l.b16 %v184
      %v401 = vunpack.c.l.b16 %v185
      %v402 = vunpack.c.l.b16 %v186
      %v403 = vunpack.c.l.b16 %v187
      %v404 = vunpack.c.l.b16 %v188
      %v405 = vunpack.c.l.b16 %v189
      %v406 = vunpack.c.l.b16 %v190
      %v407 = vunpack.c.l.b16 %v191
      %v408 = vunpack.c.l.b16 %v192
      %v409 = vunpack.c.l.b16 %v193
      %v410 = vunpack.c.l.b16 %v194
      %v411 = vunpack.c.l.b16 %v195
      %v412 = vunpack.c.l.b16 %v196
      %v413 = vunpack.c.l.b16 %v197
      %v414 = vunpack.c.l.b16 %v198
      %v415 = vunpack.c.l.b16 %v199
      %v416 = vunpack.c.l.b16 %v200
      %v417 = vunpack.c.l.b16 %v201
      %v418 = vunpack.c.l.b16 %v202
      %v419 = vunpack.c.l.b16 %v203
      %v420 = vunpack.c.l.b16 %v204
      %v421 = vunpack.c.l.b16 %v205
      %v422 = vunpack.c.l.b16 %v206
      %v423 = vunpack.c.l.b16 %v207
      %v424 = vunpack.c.l.b16 %v208
      %v425 = vunpack.c.l.b16 %v209
      %v426 = vunpack.c.l.b16 %v210
      %v427 = vunpack.c.l.b16 %v211
      %v428 = vunpack.c.l.b16 %v212
      %v429 = vunpack.c.l.b16 %v213
      %v430 = vunpack.c.l.b16 %v214
      %v431 = vunpack.c.l.b16 %v215
      %v432 = vunpack.c.l.b16 %v216
      %v433 = vunpack.c.l.b16 %v217
      %v434 = vunpack.c.l.b16 %v218
      %v435 = vunpack.c.l.b16 %v219
      %v436 = vunpack.c.l.b16 %v220
      %v437 = vunpack.c.l.b16 %v221
      %v438 = vunpack.c.l.b16 %v222
      %v439 = vunpack.c.l.b16 %v223
      %v440 = vunpack.c.l.b16 %v224
      %v441 = vunpack.c.l.b16 %v225
      %v442 = vunpack.c.l.b16 %v226
      %v443 = vunpack.c.l.b16 %v227
      %v444 = vunpack.c.l.b16 %v228
      %v445 = vunpack.c.l.b16 %v229
      %v446 = vunpack.c.l.b16 %v230
      %v447 = vunpack.c.l.b16 %v231
      %v448 = vunpack.c.l.b16 %v232
      %v449 = vunpack.c.l.b16 %v233
      %v450 = vunpack.c.l.b16 %v234
      %v451 = vunpack.c.l.b16 %v235
      %v452 = vunpack.c.l.b16 %v236
      %v453 = vunpack.c.l.b16 %v237
      %v454 = vunpack.c.l.b16 %v238
      %v455 = vunpack.c.l.b16 %v239
      %v456 = vunpack.c.l.b16 %v240
      %v457 = vunpack.c.l.b16 %v241
      %v458 = vunpack.c.l.b16 %v242
      %v459 = vunpack.c.l.b16 %v243
      %v460 = vunpack.c.l.b16 %v244
      %v461 = vunpack.c.l.b16 %v245
      %v462 = vunpack.c.l.b16 %v246
      %v463 = vunpack.c.l.b16 %v247
      %v464 = vpack.c.b16 %v365, %v364
      %v465 = vpack.c.b16 %v367, %v366
      %v466 = vpack.c.b16 %v369, %v368
      %v467 = vpack.c.b16 %v371, %v370
      %v468 = vpack.c.b16 %v373, %v372
      %v469 = vpack.c.b16 %v375, %v374
      %v470 = vpack.c.b16 %v377, %v376
      %v471 = vpack.c.b16 %v379, %v378
      %v472 = vpack.c.b16 %v381, %v380
      %v473 = vpack.c.b16 %v383, %v382
      %v474 = vpack.c.b16 %v385, %v384
      %v475 = vpack.c.b16 %v387, %v386
      %v476 = vpack.c.b16 %v389, %v388
      %v477 = vpack.c.b16 %v391, %v390
      %v478 = vpack.c.b16 %v393, %v392
      %v479 = vpack.c.b16 %v395, %v394
      %v480 = vpack.c.b16 %v397, %v396
      %v481 = vpack.c.b16 %v399, %v398
      %v482 = vpack.c.b16 %v401, %v400
      %v483 = vpack.c.b16 %v403, %v402
      %v484 = vpack.c.b16 %v405, %v404
      %v485 = vpack.c.b16 %v407, %v406
      %v486 = vpack.c.b16 %v409, %v408
      %v487 = vpack.c.b16 %v411, %v410
      %v488 = vpack.c.b16 %v413, %v412
      %v489 = vpack.c.b16 %v415, %v414
      %v490 = vpack.c.b16 %v417, %v416
      %v491 = vpack.c.b16 %v419, %v418
      %v492 = vpack.c.b16 %v421, %v420
      %v493 = vpack.c.b16 %v423, %v422
      %v494 = vpack.c.b16 %v425, %v424
      %v495 = vpack.c.b16 %v427, %v426
      %v496 = vpack.c.b16 %v429, %v428
      %v497 = vpack.c.b16 %v431, %v430
      %v498 = vpack.c.b16 %v433, %v432
      %v499 = vpack.c.b16 %v435, %v434
      %v500 = vpack.c.b16 %v437, %v436
      %v501 = vpack.c.b16 %v439, %v438
      %v502 = vpack.c.b16 %v441, %v440
      %v503 = vpack.c.b16 %v443, %v442
      %v504 = vpack.c.b16 %v445, %v444
      %v505 = vpack.c.b16 %v447, %v446
      %v506 = vpack.c.b16 %v449, %v448
      %v507 = vpack.c.b16 %v451, %v450
      %v508 = vpack.c.b16 %v453, %v452
      %v509 = vpack.c.b16 %v455, %v454
      %v510 = vpack.c.b16 %v457, %v456
      %v511 = vpack.c.b16 %v459, %v458
      %v512 = vpack.c.b16 %v461, %v460
      %v513 = vpack.c.b16 %v463, %v462
      %v580 = vunpack.c.l.b16 %v248
      %v581 = vunpack.c.l.b16 %v249
      %v582 = vunpack.c.l.b16 %v250
      %v583 = vunpack.c.l.b16 %v251
      %v584 = vunpack.c.l.b16 %v252
      %v585 = vunpack.c.l.b16 %v253
      %v586 = vunpack.c.l.b16 %v254
      %v587 = vunpack.c.l.b16 %v255
      %v588 = vunpack.c.l.b16 %v256
      %v589 = vunpack.c.l.b16 %v257
      %v590 = vunpack.c.l.b16 %v258
      %v591 = vunpack.c.l.b16 %v259
      %v592 = vunpack.c.l.b16 %v260
      %v593 = vunpack.c.l.b16 %v261
      %v594 = vunpack.c.l.b16 %v262
      %v595 = vunpack.c.l.b16 %v263
      %v596 = vpack.c.b16 %v581, %v580
      %v597 = vpack.c.b16 %v583, %v582
      %v598 = vpack.c.b16 %v585, %v584
      %v599 = vpack.c.b16 %v587, %v586
      %v600 = vpack.c.b16 %v589, %v588
      %v601 = vpack.c.b16 %v591, %v590
      %v602 = vpack.c.b16 %v593, %v592
      %v603 = vpack.c.b16 %v595, %v594
      %612 = vmatprep.subr.bf16.mxu0 0
      %613 = vmatpush1.bf16.msra.mxu0 %v596
      %614 = vmatprep.subr.bf16.mxu0 0
      %615 = vmatpush1.bf16.msra.mxu0 %v597
      %616 = vmatprep.subr.bf16.mxu0 0
      %617 = vmatpush1.bf16.msra.mxu0 %v598
      %618 = vmatprep.subr.bf16.mxu0 0
      %619 = vmatpush1.bf16.msra.mxu0 %v599
      %620 = vmatprep.subr.bf16.mxu0 0
      %621 = vmatpush1.bf16.msra.mxu0 %v600
      %622 = vmatprep.subr.bf16.mxu0 0
      %623 = vmatpush1.bf16.msra.mxu0 %v601
      %624 = vmatprep.subr.bf16.mxu0 0
      %625 = vmatpush1.bf16.msra.mxu0 %v602
      %626 = vmatprep.subr.bf16.mxu0 0
      %627 = vmatpush1.bf16.msra.mxu0 %v603
      %628 = vmatprep.subr.bf16.mxu0 0
      %629 = vmatpush1.bf16.msra.mxu0 0
      %630 = vmatprep.subr.bf16.mxu0 0
      %631 = vmatpush1.bf16.msra.mxu0 0
      %632 = vmatprep.subr.bf16.mxu0 0
      %633 = vmatpush1.bf16.msra.mxu0 0
      %634 = vmatprep.subr.bf16.mxu0 0
      %635 = vmatpush1.bf16.msra.mxu0 0
      %636 = vmatprep.subr.bf16.mxu0 0
      %637 = vmatpush1.bf16.msra.mxu0 0
      %638 = vmatprep.subr.bf16.mxu0 0
      %639 = vmatpush1.bf16.msra.mxu0 0
      %640 = vmatprep.subr.bf16.mxu0 0
      %641 = vmatpush1.bf16.msra.mxu0 0
      %642 = vmatprep.subr.bf16.mxu0 0
      %643 = vmatpush1.bf16.msra.mxu0 0
      %644 = vmatprep.mubr.bf16.mxu0 0
      %645 = vmatmul.mubr.bf16.gmra.mrb[0].mxu0 %v464
      %v646 = vpop.f32.mrb[0].mxu0
      %v647 = vadd.f32 0.0, %v646
      %v648 = vpop.f32.mrb[0].mxu0
      %v649 = vpop.f32.mrb[0].mxu0
      %v650 = vadd.f32 0.0, %v649
      %v651 = vpop.f32.mrb[0].mxu0
      %652 = vmatprep.mubr.bf16.mxu0 0
      %653 = vmatmul.mubr.bf16.gmra.mrb[0].mxu0 %v465
      %v654 = vpop.f32.mrb[0].mxu0
      %v655 = vadd.f32 0.0, %v654
      %v656 = vpop.f32.mrb[0].mxu0
      %v657 = vpop.f32.mrb[0].mxu0
      %v658 = vadd.f32 0.0, %v657
      %v659 = vpop.f32.mrb[0].mxu0
      %660 = vmatprep.mubr.bf16.mxu0 0
      %661 = vmatmul.mubr.bf16.gmra.mrb[0].mxu0 %v466
      %v662 = vpop.f32.mrb[0].mxu0
      %v663 = vadd.f32 0.0, %v662
      %v664 = vpop.f32.mrb[0].mxu0
      %v665 = vpop.f32.mrb[0].mxu0
      %v666 = vadd.f32 0.0, %v665
      %v667 = vpop.f32.mrb[0].mxu0
      %668 = vmatprep.mubr.bf16.mxu0 0
      %669 = vmatmul.mubr.bf16.gmra.mrb[0].mxu0 %v467
      %v670 = vpop.f32.mrb[0].mxu0
      %v671 = vadd.f32 0.0, %v670
      %v672 = vpop.f32.mrb[0].mxu0
      %v673 = vpop.f32.mrb[0].mxu0
      %v674 = vadd.f32 0.0, %v673
      %v675 = vpop.f32.mrb[0].mxu0
      %676 = vmatprep.mubr.bf16.mxu0 0
      %677 = vmatmul.mubr.bf16.gmra.mrb[0].mxu0 %v468
      %v678 = vpop.f32.mrb[0].mxu0
      %v679 = vadd.f32 0.0, %v678
      %v680 = vpop.f32.mrb[0].mxu0
      %v681 = vpop.f32.mrb[0].mxu0
      %v682 = vadd.f32 0.0, %v681
      %v683 = vpop.f32.mrb[0].mxu0
      %684 = vmatprep.mubr.bf16.mxu0 0
      %685 = vmatmul.mubr.bf16.gmra.mrb[0].mxu0 %v469
      %v686 = vpop.f32.mrb[0].mxu0
      %v687 = vadd.f32 0.0, %v686
      %v688 = vpop.f32.mrb[0].mxu0
      %v689 = vpop.f32.mrb[0].mxu0
      %v690 = vadd.f32 0.0, %v689
      %v691 = vpop.f32.mrb[0].mxu0
      %692 = vmatprep.mubr.bf16.mxu0 0
      %693 = vmatmul.mubr.bf16.gmra.mrb[0].mxu0 %v470
      %v694 = vpop.f32.mrb[0].mxu0
      %v695 = vadd.f32 0.0, %v694
      %v696 = vpop.f32.mrb[0].mxu0
      %v697 = vpop.f32.mrb[0].mxu0
      %v698 = vadd.f32 0.0, %v697
      %v699 = vpop.f32.mrb[0].mxu0
      %700 = vmatprep.mubr.bf16.mxu0 0
      %701 = vmatmul.mubr.bf16.gmra.mrb[0].mxu0 %v471
      %v702 = vpop.f32.mrb[0].mxu0
      %v703 = vadd.f32 0.0, %v702
      %v704 = vpop.f32.mrb[0].mxu0
      %v705 = vpop.f32.mrb[0].mxu0
      %v706 = vadd.f32 0.0, %v705
      %v707 = vpop.f32.mrb[0].mxu0
      %708 = vmatprep.mubr.bf16.mxu0 0
      %709 = vmatmul.mubr.bf16.gmra.mrb[0].mxu0 %v472
      %v710 = vpop.f32.mrb[0].mxu0
      %v711 = vadd.f32 0.0, %v710
      %v712 = vpop.f32.mrb[0].mxu0
      %v713 = vpop.f32.mrb[0].mxu0
      %v714 = vadd.f32 0.0, %v713
      %v715 = vpop.f32.mrb[0].mxu0
      %716 = vmatprep.mubr.bf16.mxu0 0
      %717 = vmatmul.mubr.bf16.gmra.mrb[0].mxu0 %v473
      %v718 = vpop.f32.mrb[0].mxu0
      %v719 = vadd.f32 0.0, %v718
      %v720 = vpop.f32.mrb[0].mxu0
      %v721 = vpop.f32.mrb[0].mxu0
      %v722 = vadd.f32 0.0, %v721
      %v723 = vpop.f32.mrb[0].mxu0
      %724 = vmatprep.mubr.bf16.mxu0 0
      %725 = vmatmul.mubr.bf16.gmra.mrb[0].mxu0 %v474
      %v726 = vpop.f32.mrb[0].mxu0
      %v727 = vadd.f32 0.0, %v726
      %v728 = vpop.f32.mrb[0].mxu0
      %v729 = vpop.f32.mrb[0].mxu0
      %v730 = vadd.f32 0.0, %v729
      %v731 = vpop.f32.mrb[0].mxu0
      %732 = vmatprep.mubr.bf16.mxu0 0
      %733 = vmatmul.mubr.bf16.gmra.mrb[0].mxu0 %v475
      %v734 = vpop.f32.mrb[0].mxu0
      %v735 = vadd.f32 0.0, %v734
      %v736 = vpop.f32.mrb[0].mxu0
      %v737 = vpop.f32.mrb[0].mxu0
      %v738 = vadd.f32 0.0, %v737
      %v739 = vpop.f32.mrb[0].mxu0
      %740 = vmatprep.mubr.bf16.mxu0 0
      %741 = vmatmul.mubr.bf16.gmra.mrb[0].mxu0 %v476
      %v742 = vpop.f32.mrb[0].mxu0
      %v743 = vadd.f32 0.0, %v742
      %v744 = vpop.f32.mrb[0].mxu0
      %v745 = vpop.f32.mrb[0].mxu0
      %v746 = vadd.f32 0.0, %v745
      %v747 = vpop.f32.mrb[0].mxu0
      %748 = vmatprep.mubr.bf16.mxu0 0
      %749 = vmatmul.mubr.bf16.gmra.mrb[0].mxu0 %v477
      %v750 = vpop.f32.mrb[0].mxu0
      %v751 = vadd.f32 0.0, %v750
      %v752 = vpop.f32.mrb[0].mxu0
      %v753 = vpop.f32.mrb[0].mxu0
      %v754 = vadd.f32 0.0, %v753
      %v755 = vpop.f32.mrb[0].mxu0
      %756 = vmatprep.mubr.bf16.mxu0 0
      %757 = vmatmul.mubr.bf16.gmra.mrb[0].mxu0 %v478
      %v758 = vpop.f32.mrb[0].mxu0
      %v759 = vadd.f32 0.0, %v758
      %v760 = vpop.f32.mrb[0].mxu0
      %v761 = vpop.f32.mrb[0].mxu0
      %v762 = vadd.f32 0.0, %v761
      %v763 = vpop.f32.mrb[0].mxu0
      %764 = vmatprep.mubr.bf16.mxu0 0
      %765 = vmatmul.mubr.bf16.gmra.mrb[0].mxu0 %v479
      %v766 = vpop.f32.mrb[0].mxu0
      %v767 = vadd.f32 0.0, %v766
      %v768 = vpop.f32.mrb[0].mxu0
      %v769 = vpop.f32.mrb[0].mxu0
      %v770 = vadd.f32 0.0, %v769
      %v771 = vpop.f32.mrb[0].mxu0
      %772 = vmatprep.mubr.bf16.mxu0 0
      %773 = vmatmul.mubr.bf16.gmra.mrb[0].mxu0 %v480
      %v774 = vpop.f32.mrb[0].mxu0
      %v775 = vadd.f32 0.0, %v774
      %v776 = vpop.f32.mrb[0].mxu0
      %v777 = vpop.f32.mrb[0].mxu0
      %v778 = vadd.f32 0.0, %v777
      %v779 = vpop.f32.mrb[0].mxu0
      %780 = vmatprep.mubr.bf16.mxu0 0
      %781 = vmatmul.mubr.bf16.gmra.mrb[0].mxu0 %v481
      %v782 = vpop.f32.mrb[0].mxu0
      %v783 = vadd.f32 0.0, %v782
      %v784 = vpop.f32.mrb[0].mxu0
      %v785 = vpop.f32.mrb[0].mxu0
      %v786 = vadd.f32 0.0, %v785
      %v787 = vpop.f32.mrb[0].mxu0
      %788 = vmatprep.mubr.bf16.mxu0 0
      %789 = vmatmul.mubr.bf16.gmra.mrb[0].mxu0 %v482
      %v790 = vpop.f32.mrb[0].mxu0
      %v791 = vadd.f32 0.0, %v790
      %v792 = vpop.f32.mrb[0].mxu0
      %v793 = vpop.f32.mrb[0].mxu0
      %v794 = vadd.f32 0.0, %v793
      %v795 = vpop.f32.mrb[0].mxu0
      %796 = vmatprep.mubr.bf16.mxu0 0
      %797 = vmatmul.mubr.bf16.gmra.mrb[0].mxu0 %v483
      %v798 = vpop.f32.mrb[0].mxu0
      %v799 = vadd.f32 0.0, %v798
      %v800 = vpop.f32.mrb[0].mxu0
      %v801 = vpop.f32.mrb[0].mxu0
      %v802 = vadd.f32 0.0, %v801
      %v803 = vpop.f32.mrb[0].mxu0
      %804 = vmatprep.mubr.bf16.mxu0 0
      %805 = vmatmul.mubr.bf16.gmra.mrb[0].mxu0 %v484
      %v806 = vpop.f32.mrb[0].mxu0
      %v807 = vadd.f32 0.0, %v806
      %v808 = vpop.f32.mrb[0].mxu0
      %v809 = vpop.f32.mrb[0].mxu0
      %v810 = vadd.f32 0.0, %v809
      %v811 = vpop.f32.mrb[0].mxu0
      %812 = vmatprep.mubr.bf16.mxu0 0
      %813 = vmatmul.mubr.bf16.gmra.mrb[0].mxu0 %v485
      %v814 = vpop.f32.mrb[0].mxu0
      %v815 = vadd.f32 0.0, %v814
      %v816 = vpop.f32.mrb[0].mxu0
      %v817 = vpop.f32.mrb[0].mxu0
      %v818 = vadd.f32 0.0, %v817
      %v819 = vpop.f32.mrb[0].mxu0
      %820 = vmatprep.mubr.bf16.mxu0 0
      %821 = vmatmul.mubr.bf16.gmra.mrb[0].mxu0 %v486
      %v822 = vpop.f32.mrb[0].mxu0
      %v823 = vadd.f32 0.0, %v822
      %v824 = vpop.f32.mrb[0].mxu0
      %v825 = vpop.f32.mrb[0].mxu0
      %v826 = vadd.f32 0.0, %v825
      %v827 = vpop.f32.mrb[0].mxu0
      %828 = vmatprep.mubr.bf16.mxu0 0
      %829 = vmatmul.mubr.bf16.gmra.mrb[0].mxu0 %v487
      %v830 = vpop.f32.mrb[0].mxu0
      %v831 = vadd.f32 0.0, %v830
      %v832 = vpop.f32.mrb[0].mxu0
      %v833 = vpop.f32.mrb[0].mxu0
      %v834 = vadd.f32 0.0, %v833
      %v835 = vpop.f32.mrb[0].mxu0
      %836 = vmatprep.mubr.bf16.mxu0 0
      %837 = vmatmul.mubr.bf16.gmra.mrb[0].mxu0 %v488
      %v838 = vpop.f32.mrb[0].mxu0
      %v839 = vadd.f32 0.0, %v838
      %v840 = vpop.f32.mrb[0].mxu0
      %v841 = vpop.f32.mrb[0].mxu0
      %v842 = vadd.f32 0.0, %v841
      %v843 = vpop.f32.mrb[0].mxu0
      %844 = vmatprep.mubr.bf16.mxu0 0
      %845 = vmatmul.mubr.bf16.gmra.mrb[0].mxu0 %v489
      %v846 = vpop.f32.mrb[0].mxu0
      %v847 = vadd.f32 0.0, %v846
      %v848 = vpop.f32.mrb[0].mxu0
      %v849 = vpop.f32.mrb[0].mxu0
      %v850 = vadd.f32 0.0, %v849
      %v851 = vpop.f32.mrb[0].mxu0
      %852 = vmatprep.mubr.bf16.mxu0 0
      %853 = vmatmul.mubr.bf16.gmra.mrb[0].mxu0 %v490
      %v854 = vpop.f32.mrb[0].mxu0
      %v855 = vadd.f32 0.0, %v854
      %v856 = vpop.f32.mrb[0].mxu0
      %v857 = vpop.f32.mrb[0].mxu0
      %v858 = vadd.f32 0.0, %v857
      %v859 = vpop.f32.mrb[0].mxu0
      %860 = vmatprep.mubr.bf16.mxu0 0
      %861 = vmatmul.mubr.bf16.gmra.mrb[0].mxu0 %v491
      %v862 = vpop.f32.mrb[0].mxu0
      %v863 = vadd.f32 0.0, %v862
      %v864 = vpop.f32.mrb[0].mxu0
      %v865 = vpop.f32.mrb[0].mxu0
      %v866 = vadd.f32 0.0, %v865
      %v867 = vpop.f32.mrb[0].mxu0
      %868 = vmatprep.mubr.bf16.mxu0 0
      %869 = vmatmul.mubr.bf16.gmra.mrb[0].mxu0 %v492
      %v870 = vpop.f32.mrb[0].mxu0
      %v871 = vadd.f32 0.0, %v870
      %v872 = vpop.f32.mrb[0].mxu0
      %v873 = vpop.f32.mrb[0].mxu0
      %v874 = vadd.f32 0.0, %v873
      %v875 = vpop.f32.mrb[0].mxu0
      %876 = vmatprep.mubr.bf16.mxu0 0
      %877 = vmatmul.mubr.bf16.gmra.mrb[0].mxu0 %v493
      %v878 = vpop.f32.mrb[0].mxu0
      %v879 = vadd.f32 0.0, %v878
      %v880 = vpop.f32.mrb[0].mxu0
      %v881 = vpop.f32.mrb[0].mxu0
      %v882 = vadd.f32 0.0, %v881
      %v883 = vpop.f32.mrb[0].mxu0
      %884 = vmatprep.mubr.bf16.mxu0 0
      %885 = vmatmul.mubr.bf16.gmra.mrb[0].mxu0 %v494
      %v886 = vpop.f32.mrb[0].mxu0
      %v887 = vadd.f32 0.0, %v886
      %v888 = vpop.f32.mrb[0].mxu0
      %v889 = vpop.f32.mrb[0].mxu0
      %v890 = vadd.f32 0.0, %v889
      %v891 = vpop.f32.mrb[0].mxu0
      %892 = vmatprep.mubr.bf16.mxu0 0
      %893 = vmatmul.mubr.bf16.gmra.mrb[0].mxu0 %v495
      %v894 = vpop.f32.mrb[0].mxu0
      %v895 = vadd.f32 0.0, %v894
      %v896 = vpop.f32.mrb[0].mxu0
      %v897 = vpop.f32.mrb[0].mxu0
      %v898 = vadd.f32 0.0, %v897
      %v899 = vpop.f32.mrb[0].mxu0
      %900 = vmatprep.mubr.bf16.mxu0 0
      %901 = vmatmul.mubr.bf16.gmra.mrb[0].mxu0 %v496
      %v902 = vpop.f32.mrb[0].mxu0
      %v903 = vadd.f32 0.0, %v902
      %v904 = vpop.f32.mrb[0].mxu0
      %v905 = vpop.f32.mrb[0].mxu0
      %v906 = vadd.f32 0.0, %v905
      %v907 = vpop.f32.mrb[0].mxu0
      %908 = vmatprep.mubr.bf16.mxu0 0
      %909 = vmatmul.mubr.bf16.gmra.mrb[0].mxu0 %v497
      %v910 = vpop.f32.mrb[0].mxu0
      %v911 = vadd.f32 0.0, %v910
      %v912 = vpop.f32.mrb[0].mxu0
      %v913 = vpop.f32.mrb[0].mxu0
      %v914 = vadd.f32 0.0, %v913
      %v915 = vpop.f32.mrb[0].mxu0
      %916 = vmatprep.mubr.bf16.mxu0 0
      %917 = vmatmul.mubr.bf16.gmra.mrb[0].mxu0 %v498
      %v918 = vpop.f32.mrb[0].mxu0
      %v919 = vadd.f32 0.0, %v918
      %v920 = vpop.f32.mrb[0].mxu0
      %v921 = vpop.f32.mrb[0].mxu0
      %v922 = vadd.f32 0.0, %v921
      %v923 = vpop.f32.mrb[0].mxu0
      %924 = vmatprep.mubr.bf16.mxu0 0
      %925 = vmatmul.mubr.bf16.gmra.mrb[0].mxu0 %v499
      %v926 = vpop.f32.mrb[0].mxu0
      %v927 = vadd.f32 0.0, %v926
      %v928 = vpop.f32.mrb[0].mxu0
      %v929 = vpop.f32.mrb[0].mxu0
      %v930 = vadd.f32 0.0, %v929
      %v931 = vpop.f32.mrb[0].mxu0
      %932 = vmatprep.mubr.bf16.mxu0 0
      %933 = vmatmul.mubr.bf16.gmra.mrb[0].mxu0 %v500
      %v934 = vpop.f32.mrb[0].mxu0
      %v935 = vadd.f32 0.0, %v934
      %v936 = vpop.f32.mrb[0].mxu0
      %v937 = vpop.f32.mrb[0].mxu0
      %v938 = vadd.f32 0.0, %v937
      %v939 = vpop.f32.mrb[0].mxu0
      %940 = vmatprep.mubr.bf16.mxu0 0
      %941 = vmatmul.mubr.bf16.gmra.mrb[0].mxu0 %v501
      %v942 = vpop.f32.mrb[0].mxu0
      %v943 = vadd.f32 0.0, %v942
      %v944 = vpop.f32.mrb[0].mxu0
      %v945 = vpop.f32.mrb[0].mxu0
      %v946 = vadd.f32 0.0, %v945
      %v947 = vpop.f32.mrb[0].mxu0
      %948 = vmatprep.mubr.bf16.mxu0 0
      %949 = vmatmul.mubr.bf16.gmra.mrb[0].mxu0 %v502
      %v950 = vpop.f32.mrb[0].mxu0
      %v951 = vadd.f32 0.0, %v950
      %v952 = vpop.f32.mrb[0].mxu0
      %v953 = vpop.f32.mrb[0].mxu0
      %v954 = vadd.f32 0.0, %v953
      %v955 = vpop.f32.mrb[0].mxu0
      %956 = vmatprep.mubr.bf16.mxu0 0
      %957 = vmatmul.mubr.bf16.gmra.mrb[0].mxu0 %v503
      %v958 = vpop.f32.mrb[0].mxu0
      %v959 = vadd.f32 0.0, %v958
      %v960 = vpop.f32.mrb[0].mxu0
      %v961 = vpop.f32.mrb[0].mxu0
      %v962 = vadd.f32 0.0, %v961
      %v963 = vpop.f32.mrb[0].mxu0
      %964 = vmatprep.mubr.bf16.mxu0 0
      %965 = vmatmul.mubr.bf16.gmra.mrb[0].mxu0 %v504
      %v966 = vpop.f32.mrb[0].mxu0
      %v967 = vadd.f32 0.0, %v966
      %v968 = vpop.f32.mrb[0].mxu0
      %v969 = vpop.f32.mrb[0].mxu0
      %v970 = vadd.f32 0.0, %v969
      %v971 = vpop.f32.mrb[0].mxu0
      %972 = vmatprep.mubr.bf16.mxu0 0
      %973 = vmatmul.mubr.bf16.gmra.mrb[0].mxu0 %v505
      %v974 = vpop.f32.mrb[0].mxu0
      %v975 = vadd.f32 0.0, %v974
      %v976 = vpop.f32.mrb[0].mxu0
      %v977 = vpop.f32.mrb[0].mxu0
      %v978 = vadd.f32 0.0, %v977
      %v979 = vpop.f32.mrb[0].mxu0
      %980 = vmatprep.mubr.bf16.mxu0 0
      %981 = vmatmul.mubr.bf16.gmra.mrb[0].mxu0 %v506
      %v982 = vpop.f32.mrb[0].mxu0
      %v983 = vadd.f32 0.0, %v982
      %v984 = vpop.f32.mrb[0].mxu0
      %v985 = vpop.f32.mrb[0].mxu0
      %v986 = vadd.f32 0.0, %v985
      %v987 = vpop.f32.mrb[0].mxu0
      %988 = vmatprep.mubr.bf16.mxu0 0
      %989 = vmatmul.mubr.bf16.gmra.mrb[0].mxu0 %v507
      %v990 = vpop.f32.mrb[0].mxu0
      %v991 = vadd.f32 0.0, %v990
      %v992 = vpop.f32.mrb[0].mxu0
      %v993 = vpop.f32.mrb[0].mxu0
      %v994 = vadd.f32 0.0, %v993
      %v995 = vpop.f32.mrb[0].mxu0
      %996 = vmatprep.mubr.bf16.mxu0 0
      %997 = vmatmul.mubr.bf16.gmra.mrb[0].mxu0 %v508
      %v998 = vpop.f32.mrb[0].mxu0
      %v999 = vadd.f32 0.0, %v998
      %v1000 = vpop.f32.mrb[0].mxu0
      %v1001 = vpop.f32.mrb[0].mxu0
      %v1002 = vadd.f32 0.0, %v1001
      %v1003 = vpop.f32.mrb[0].mxu0
      %1004 = vmatprep.mubr.bf16.mxu0 0
      %1005 = vmatmul.mubr.bf16.gmra.mrb[0].mxu0 %v509
      %v1006 = vpop.f32.mrb[0].mxu0
      %v1007 = vadd.f32 0.0, %v1006
      %v1008 = vpop.f32.mrb[0].mxu0
      %v1009 = vpop.f32.mrb[0].mxu0
      %v1010 = vadd.f32 0.0, %v1009
      %v1011 = vpop.f32.mrb[0].mxu0
      %1012 = vmatprep.mubr.bf16.mxu0 0
      %1013 = vmatmul.mubr.bf16.gmra.mrb[0].mxu0 %v510
      %v1014 = vpop.f32.mrb[0].mxu0
      %v1015 = vadd.f32 0.0, %v1014
      %v1016 = vpop.f32.mrb[0].mxu0
      %v1017 = vpop.f32.mrb[0].mxu0
      %v1018 = vadd.f32 0.0, %v1017
      %v1019 = vpop.f32.mrb[0].mxu0
      %1020 = vmatprep.mubr.bf16.mxu0 0
      %1021 = vmatmul.mubr.bf16.gmra.mrb[0].mxu0 %v511
      %v1022 = vpop.f32.mrb[0].mxu0
      %v1023 = vadd.f32 0.0, %v1022
      %v1024 = vpop.f32.mrb[0].mxu0
      %v1025 = vpop.f32.mrb[0].mxu0
      %v1026 = vadd.f32 0.0, %v1025
      %v1027 = vpop.f32.mrb[0].mxu0
      %1028 = vmatprep.mubr.bf16.mxu0 0
      %1029 = vmatmul.mubr.bf16.gmra.mrb[0].mxu0 %v512
      %v1030 = vpop.f32.mrb[0].mxu0
      %v1031 = vadd.f32 0.0, %v1030
      %v1032 = vpop.f32.mrb[0].mxu0
      %v1033 = vpop.f32.mrb[0].mxu0
      %v1034 = vadd.f32 0.0, %v1033
      %v1035 = vpop.f32.mrb[0].mxu0
      %1036 = vmatprep.mubr.bf16.mxu0 0
      %1037 = vmatmul.mubr.bf16.gmra.mrb[0].mxu0 %v513
      %v1038 = vpop.f32.mrb[0].mxu0
      %v1039 = vadd.f32 0.0, %v1038
      %v1040 = vpop.f32.mrb[0].mxu0
      %v1041 = vpop.f32.mrb[0].mxu0
      %v1042 = vadd.f32 0.0, %v1041
      %v1043 = vpop.f32.mrb[0].mxu0
      %1044 = vdwg.mxu0
      %vm1045 = vcmp.gt.f32.partialorder %v647, 0.0
      %vm1046 = vcmp.gt.f32.partialorder %v650, 0.0
      %vm1047 = vcmp.gt.f32.partialorder %v655, 0.0
      %vm1048 = vcmp.gt.f32.partialorder %v658, 0.0
      %vm1049 = vcmp.gt.f32.partialorder %v663, 0.0
      %vm1050 = vcmp.gt.f32.partialorder %v666, 0.0
      %vm1051 = vcmp.gt.f32.partialorder %v671, 0.0
      %vm1052 = vcmp.gt.f32.partialorder %v674, 0.0
      %vm1053 = vcmp.gt.f32.partialorder %v679, 0.0
      %vm1054 = vcmp.gt.f32.partialorder %v682, 0.0
      %vm1055 = vcmp.gt.f32.partialorder %v687, 0.0
      %vm1056 = vcmp.gt.f32.partialorder %v690, 0.0
      %vm1057 = vcmp.gt.f32.partialorder %v695, 0.0
      %vm1058 = vcmp.gt.f32.partialorder %v698, 0.0
      %vm1059 = vcmp.gt.f32.partialorder %v703, 0.0
      %vm1060 = vcmp.gt.f32.partialorder %v706, 0.0
      %vm1061 = vcmp.gt.f32.partialorder %v711, 0.0
      %vm1062 = vcmp.gt.f32.partialorder %v714, 0.0
      %vm1063 = vcmp.gt.f32.partialorder %v719, 0.0
      %vm1064 = vcmp.gt.f32.partialorder %v722, 0.0
      %vm1065 = vcmp.gt.f32.partialorder %v727, 0.0
      %vm1066 = vcmp.gt.f32.partialorder %v730, 0.0
      %vm1067 = vcmp.gt.f32.partialorder %v735, 0.0
      %vm1068 = vcmp.gt.f32.partialorder %v738, 0.0
      %vm1069 = vcmp.gt.f32.partialorder %v743, 0.0
      %vm1070 = vcmp.gt.f32.partialorder %v746, 0.0
      %vm1071 = vcmp.gt.f32.partialorder %v751, 0.0
      %vm1072 = vcmp.gt.f32.partialorder %v754, 0.0
      %vm1073 = vcmp.gt.f32.partialorder %v759, 0.0
      %vm1074 = vcmp.gt.f32.partialorder %v762, 0.0
      %vm1075 = vcmp.gt.f32.partialorder %v767, 0.0
      %vm1076 = vcmp.gt.f32.partialorder %v770, 0.0
      %vm1077 = vcmp.gt.f32.partialorder %v775, 0.0
      %vm1078 = vcmp.gt.f32.partialorder %v778, 0.0
      %vm1079 = vcmp.gt.f32.partialorder %v783, 0.0
      %vm1080 = vcmp.gt.f32.partialorder %v786, 0.0
      %vm1081 = vcmp.gt.f32.partialorder %v791, 0.0
      %vm1082 = vcmp.gt.f32.partialorder %v794, 0.0
      %vm1083 = vcmp.gt.f32.partialorder %v799, 0.0
      %vm1084 = vcmp.gt.f32.partialorder %v802, 0.0
      %vm1085 = vcmp.gt.f32.partialorder %v807, 0.0
      %vm1086 = vcmp.gt.f32.partialorder %v810, 0.0
      %vm1087 = vcmp.gt.f32.partialorder %v815, 0.0
      %vm1088 = vcmp.gt.f32.partialorder %v818, 0.0
      %vm1089 = vcmp.gt.f32.partialorder %v823, 0.0
      %vm1090 = vcmp.gt.f32.partialorder %v826, 0.0
      %vm1091 = vcmp.gt.f32.partialorder %v831, 0.0
      %vm1092 = vcmp.gt.f32.partialorder %v834, 0.0
      %vm1093 = vcmp.gt.f32.partialorder %v839, 0.0
      %vm1094 = vcmp.gt.f32.partialorder %v842, 0.0
      %vm1095 = vcmp.gt.f32.partialorder %v847, 0.0
      %vm1096 = vcmp.gt.f32.partialorder %v850, 0.0
      %vm1097 = vcmp.gt.f32.partialorder %v855, 0.0
      %vm1098 = vcmp.gt.f32.partialorder %v858, 0.0
      %vm1099 = vcmp.gt.f32.partialorder %v863, 0.0
      %vm1100 = vcmp.gt.f32.partialorder %v866, 0.0
      %vm1101 = vcmp.gt.f32.partialorder %v871, 0.0
      %vm1102 = vcmp.gt.f32.partialorder %v874, 0.0
      %vm1103 = vcmp.gt.f32.partialorder %v879, 0.0
      %vm1104 = vcmp.gt.f32.partialorder %v882, 0.0
      %vm1105 = vcmp.gt.f32.partialorder %v887, 0.0
      %vm1106 = vcmp.gt.f32.partialorder %v890, 0.0
      %vm1107 = vcmp.gt.f32.partialorder %v895, 0.0
      %vm1108 = vcmp.gt.f32.partialorder %v898, 0.0
      %vm1109 = vcmp.gt.f32.partialorder %v903, 0.0
      %vm1110 = vcmp.gt.f32.partialorder %v906, 0.0
      %vm1111 = vcmp.gt.f32.partialorder %v911, 0.0
      %vm1112 = vcmp.gt.f32.partialorder %v914, 0.0
      %vm1113 = vcmp.gt.f32.partialorder %v919, 0.0
      %vm1114 = vcmp.gt.f32.partialorder %v922, 0.0
      %vm1115 = vcmp.gt.f32.partialorder %v927, 0.0
      %vm1116 = vcmp.gt.f32.partialorder %v930, 0.0
      %vm1117 = vcmp.gt.f32.partialorder %v935, 0.0
      %vm1118 = vcmp.gt.f32.partialorder %v938, 0.0
      %vm1119 = vcmp.gt.f32.partialorder %v943, 0.0
      %vm1120 = vcmp.gt.f32.partialorder %v946, 0.0
      %vm1121 = vcmp.gt.f32.partialorder %v951, 0.0
      %vm1122 = vcmp.gt.f32.partialorder %v954, 0.0
      %vm1123 = vcmp.gt.f32.partialorder %v959, 0.0
      %vm1124 = vcmp.gt.f32.partialorder %v962, 0.0
      %vm1125 = vcmp.gt.f32.partialorder %v967, 0.0
      %vm1126 = vcmp.gt.f32.partialorder %v970, 0.0
      %vm1127 = vcmp.gt.f32.partialorder %v975, 0.0
      %vm1128 = vcmp.gt.f32.partialorder %v978, 0.0
      %vm1129 = vcmp.gt.f32.partialorder %v983, 0.0
      %vm1130 = vcmp.gt.f32.partialorder %v986, 0.0
      %vm1131 = vcmp.gt.f32.partialorder %v991, 0.0
      %vm1132 = vcmp.gt.f32.partialorder %v994, 0.0
      %vm1133 = vcmp.gt.f32.partialorder %v999, 0.0
      %vm1134 = vcmp.gt.f32.partialorder %v1002, 0.0
      %vm1135 = vcmp.gt.f32.partialorder %v1007, 0.0
      %vm1136 = vcmp.gt.f32.partialorder %v1010, 0.0
      %vm1137 = vcmp.gt.f32.partialorder %v1015, 0.0
      %vm1138 = vcmp.gt.f32.partialorder %v1018, 0.0
      %vm1139 = vcmp.gt.f32.partialorder %v1023, 0.0
      %vm1140 = vcmp.gt.f32.partialorder %v1026, 0.0
      %vm1141 = vcmp.gt.f32.partialorder %v1031, 0.0
      %vm1142 = vcmp.gt.f32.partialorder %v1034, 0.0
      %vm1143 = vcmp.gt.f32.partialorder %v1039, 0.0
      %vm1144 = vcmp.gt.f32.partialorder %v1042, 0.0
      %v1145 = vmul.f32 %v647, 0.2
      %v1146 = vmul.f32 %v650, 0.2
      %v1147 = vmul.f32 %v655, 0.2
      %v1148 = vmul.f32 %v658, 0.2
      %v1149 = vmul.f32 %v663, 0.2
      %v1150 = vmul.f32 %v666, 0.2
      %v1151 = vmul.f32 %v671, 0.2
      %v1152 = vmul.f32 %v674, 0.2
      %v1153 = vmul.f32 %v679, 0.2
      %v1154 = vmul.f32 %v682, 0.2
      %v1155 = vmul.f32 %v687, 0.2
      %v1156 = vmul.f32 %v690, 0.2
      %v1157 = vmul.f32 %v695, 0.2
      %v1158 = vmul.f32 %v698, 0.2
      %v1159 = vmul.f32 %v703, 0.2
      %v1160 = vmul.f32 %v706, 0.2
      %v1161 = vmul.f32 %v711, 0.2
      %v1162 = vmul.f32 %v714, 0.2
      %v1163 = vmul.f32 %v719, 0.2
      %v1164 = vmul.f32 %v722, 0.2
      %v1165 = vmul.f32 %v727, 0.2
      %v1166 = vmul.f32 %v730, 0.2
      %v1167 = vmul.f32 %v735, 0.2
      %v1168 = vmul.f32 %v738, 0.2
      %v1169 = vmul.f32 %v743, 0.2
      %v1170 = vmul.f32 %v746, 0.2
      %v1171 = vmul.f32 %v751, 0.2
      %v1172 = vmul.f32 %v754, 0.2
      %v1173 = vmul.f32 %v759, 0.2
      %v1174 = vmul.f32 %v762, 0.2
      %v1175 = vmul.f32 %v767, 0.2
      %v1176 = vmul.f32 %v770, 0.2
      %v1177 = vmul.f32 %v775, 0.2
      %v1178 = vmul.f32 %v778, 0.2
      %v1179 = vmul.f32 %v783, 0.2
      %v1180 = vmul.f32 %v786, 0.2
      %v1181 = vmul.f32 %v791, 0.2
      %v1182 = vmul.f32 %v794, 0.2
      %v1183 = vmul.f32 %v799, 0.2
      %v1184 = vmul.f32 %v802, 0.2
      %v1185 = vmul.f32 %v807, 0.2
      %v1186 = vmul.f32 %v810, 0.2
      %v1187 = vmul.f32 %v815, 0.2
      %v1188 = vmul.f32 %v818, 0.2
      %v1189 = vmul.f32 %v823, 0.2
      %v1190 = vmul.f32 %v826, 0.2
      %v1191 = vmul.f32 %v831, 0.2
      %v1192 = vmul.f32 %v834, 0.2
      %v1193 = vmul.f32 %v839, 0.2
      %v1194 = vmul.f32 %v842, 0.2
      %v1195 = vmul.f32 %v847, 0.2
      %v1196 = vmul.f32 %v850, 0.2
      %v1197 = vmul.f32 %v855, 0.2
      %v1198 = vmul.f32 %v858, 0.2
      %v1199 = vmul.f32 %v863, 0.2
      %v1200 = vmul.f32 %v866, 0.2
      %v1201 = vmul.f32 %v871, 0.2
      %v1202 = vmul.f32 %v874, 0.2
      %v1203 = vmul.f32 %v879, 0.2
      %v1204 = vmul.f32 %v882, 0.2
      %v1205 = vmul.f32 %v887, 0.2
      %v1206 = vmul.f32 %v890, 0.2
      %v1207 = vmul.f32 %v895, 0.2
      %v1208 = vmul.f32 %v898, 0.2
      %v1209 = vmul.f32 %v903, 0.2
      %v1210 = vmul.f32 %v906, 0.2
      %v1211 = vmul.f32 %v911, 0.2
      %v1212 = vmul.f32 %v914, 0.2
      %v1213 = vmul.f32 %v919, 0.2
      %v1214 = vmul.f32 %v922, 0.2
      %v1215 = vmul.f32 %v927, 0.2
      %v1216 = vmul.f32 %v930, 0.2
      %v1217 = vmul.f32 %v935, 0.2
      %v1218 = vmul.f32 %v938, 0.2
      %v1219 = vmul.f32 %v943, 0.2
      %v1220 = vmul.f32 %v946, 0.2
      %v1221 = vmul.f32 %v951, 0.2
      %v1222 = vmul.f32 %v954, 0.2
      %v1223 = vmul.f32 %v959, 0.2
      %v1224 = vmul.f32 %v962, 0.2
      %v1225 = vmul.f32 %v967, 0.2
      %v1226 = vmul.f32 %v970, 0.2
      %v1227 = vmul.f32 %v975, 0.2
      %v1228 = vmul.f32 %v978, 0.2
      %v1229 = vmul.f32 %v983, 0.2
      %v1230 = vmul.f32 %v986, 0.2
      %v1231 = vmul.f32 %v991, 0.2
      %v1232 = vmul.f32 %v994, 0.2
      %v1233 = vmul.f32 %v999, 0.2
      %v1234 = vmul.f32 %v1002, 0.2
      %v1235 = vmul.f32 %v1007, 0.2
      %v1236 = vmul.f32 %v1010, 0.2
      %v1237 = vmul.f32 %v1015, 0.2
      %v1238 = vmul.f32 %v1018, 0.2
      %v1239 = vmul.f32 %v1023, 0.2
      %v1240 = vmul.f32 %v1026, 0.2
      %v1241 = vmul.f32 %v1031, 0.2
      %v1242 = vmul.f32 %v1034, 0.2
      %v1243 = vmul.f32 %v1039, 0.2
      %v1244 = vmul.f32 %v1042, 0.2
      %v1245 = vsel %vm1045, %v647, %v1145
      %v1246 = vsel %vm1046, %v650, %v1146
      %v1247 = vsel %vm1047, %v655, %v1147
      %v1248 = vsel %vm1048, %v658, %v1148
      %v1249 = vsel %vm1049, %v663, %v1149
      %v1250 = vsel %vm1050, %v666, %v1150
      %v1251 = vsel %vm1051, %v671, %v1151
      %v1252 = vsel %vm1052, %v674, %v1152
      %v1253 = vsel %vm1053, %v679, %v1153
      %v1254 = vsel %vm1054, %v682, %v1154
      %v1255 = vsel %vm1055, %v687, %v1155
      %v1256 = vsel %vm1056, %v690, %v1156
      %v1257 = vsel %vm1057, %v695, %v1157
      %v1258 = vsel %vm1058, %v698, %v1158
      %v1259 = vsel %vm1059, %v703, %v1159
      %v1260 = vsel %vm1060, %v706, %v1160
      %v1261 = vsel %vm1061, %v711, %v1161
      %v1262 = vsel %vm1062, %v714, %v1162
      %v1263 = vsel %vm1063, %v719, %v1163
      %v1264 = vsel %vm1064, %v722, %v1164
      %v1265 = vsel %vm1065, %v727, %v1165
      %v1266 = vsel %vm1066, %v730, %v1166
      %v1267 = vsel %vm1067, %v735, %v1167
      %v1268 = vsel %vm1068, %v738, %v1168
      %v1269 = vsel %vm1069, %v743, %v1169
      %v1270 = vsel %vm1070, %v746, %v1170
      %v1271 = vsel %vm1071, %v751, %v1171
      %v1272 = vsel %vm1072, %v754, %v1172
      %v1273 = vsel %vm1073, %v759, %v1173
      %v1274 = vsel %vm1074, %v762, %v1174
      %v1275 = vsel %vm1075, %v767, %v1175
      %v1276 = vsel %vm1076, %v770, %v1176
      %v1277 = vsel %vm1077, %v775, %v1177
      %v1278 = vsel %vm1078, %v778, %v1178
      %v1279 = vsel %vm1079, %v783, %v1179
      %v1280 = vsel %vm1080, %v786, %v1180
      %v1281 = vsel %vm1081, %v791, %v1181
      %v1282 = vsel %vm1082, %v794, %v1182
      %v1283 = vsel %vm1083, %v799, %v1183
      %v1284 = vsel %vm1084, %v802, %v1184
      %v1285 = vsel %vm1085, %v807, %v1185
      %v1286 = vsel %vm1086, %v810, %v1186
      %v1287 = vsel %vm1087, %v815, %v1187
      %v1288 = vsel %vm1088, %v818, %v1188
      %v1289 = vsel %vm1089, %v823, %v1189
      %v1290 = vsel %vm1090, %v826, %v1190
      %v1291 = vsel %vm1091, %v831, %v1191
      %v1292 = vsel %vm1092, %v834, %v1192
      %v1293 = vsel %vm1093, %v839, %v1193
      %v1294 = vsel %vm1094, %v842, %v1194
      %v1295 = vsel %vm1095, %v847, %v1195
      %v1296 = vsel %vm1096, %v850, %v1196
      %v1297 = vsel %vm1097, %v855, %v1197
      %v1298 = vsel %vm1098, %v858, %v1198
      %v1299 = vsel %vm1099, %v863, %v1199
      %v1300 = vsel %vm1100, %v866, %v1200
      %v1301 = vsel %vm1101, %v871, %v1201
      %v1302 = vsel %vm1102, %v874, %v1202
      %v1303 = vsel %vm1103, %v879, %v1203
      %v1304 = vsel %vm1104, %v882, %v1204
      %v1305 = vsel %vm1105, %v887, %v1205
      %v1306 = vsel %vm1106, %v890, %v1206
      %v1307 = vsel %vm1107, %v895, %v1207
      %v1308 = vsel %vm1108, %v898, %v1208
      %v1309 = vsel %vm1109, %v903, %v1209
      %v1310 = vsel %vm1110, %v906, %v1210
      %v1311 = vsel %vm1111, %v911, %v1211
      %v1312 = vsel %vm1112, %v914, %v1212
      %v1313 = vsel %vm1113, %v919, %v1213
      %v1314 = vsel %vm1114, %v922, %v1214
      %v1315 = vsel %vm1115, %v927, %v1215
      %v1316 = vsel %vm1116, %v930, %v1216
      %v1317 = vsel %vm1117, %v935, %v1217
      %v1318 = vsel %vm1118, %v938, %v1218
      %v1319 = vsel %vm1119, %v943, %v1219
      %v1320 = vsel %vm1120, %v946, %v1220
      %v1321 = vsel %vm1121, %v951, %v1221
      %v1322 = vsel %vm1122, %v954, %v1222
      %v1323 = vsel %vm1123, %v959, %v1223
      %v1324 = vsel %vm1124, %v962, %v1224
      %v1325 = vsel %vm1125, %v967, %v1225
      %v1326 = vsel %vm1126, %v970, %v1226
      %v1327 = vsel %vm1127, %v975, %v1227
      %v1328 = vsel %vm1128, %v978, %v1228
      %v1329 = vsel %vm1129, %v983, %v1229
      %v1330 = vsel %vm1130, %v986, %v1230
      %v1331 = vsel %vm1131, %v991, %v1231
      %v1332 = vsel %vm1132, %v994, %v1232
      %v1333 = vsel %vm1133, %v999, %v1233
      %v1334 = vsel %vm1134, %v1002, %v1234
      %v1335 = vsel %vm1135, %v1007, %v1235
      %v1336 = vsel %vm1136, %v1010, %v1236
      %v1337 = vsel %vm1137, %v1015, %v1237
      %v1338 = vsel %vm1138, %v1018, %v1238
      %v1339 = vsel %vm1139, %v1023, %v1239
      %v1340 = vsel %vm1140, %v1026, %v1240
      %v1341 = vsel %vm1141, %v1031, %v1241
      %v1342 = vsel %vm1142, %v1034, %v1242
      %v1343 = vsel %vm1143, %v1039, %v1243
      %v1344 = vsel %vm1144, %v1042, %v1244
      %v1345 = vpack.c.bf16 %v1246, %v1245
      %v1346 = vpack.c.bf16 %v1248, %v1247
      %v1347 = vpack.c.bf16 %v1250, %v1249
      %v1348 = vpack.c.bf16 %v1252, %v1251
      %v1349 = vpack.c.bf16 %v1254, %v1253
      %v1350 = vpack.c.bf16 %v1256, %v1255
      %v1351 = vpack.c.bf16 %v1258, %v1257
      %v1352 = vpack.c.bf16 %v1260, %v1259
      %v1353 = vpack.c.bf16 %v1262, %v1261
      %v1354 = vpack.c.bf16 %v1264, %v1263
      %v1355 = vpack.c.bf16 %v1266, %v1265
      %v1356 = vpack.c.bf16 %v1268, %v1267
      %v1357 = vpack.c.bf16 %v1270, %v1269
      %v1358 = vpack.c.bf16 %v1272, %v1271
      %v1359 = vpack.c.bf16 %v1274, %v1273
      %v1360 = vpack.c.bf16 %v1276, %v1275
      %v1361 = vpack.c.bf16 %v1278, %v1277
      %v1362 = vpack.c.bf16 %v1280, %v1279
      %v1363 = vpack.c.bf16 %v1282, %v1281
      %v1364 = vpack.c.bf16 %v1284, %v1283
      %v1365 = vpack.c.bf16 %v1286, %v1285
      %v1366 = vpack.c.bf16 %v1288, %v1287
      %v1367 = vpack.c.bf16 %v1290, %v1289
      %v1368 = vpack.c.bf16 %v1292, %v1291
      %v1369 = vpack.c.bf16 %v1294, %v1293
      %v1370 = vpack.c.bf16 %v1296, %v1295
      %v1371 = vpack.c.bf16 %v1298, %v1297
      %v1372 = vpack.c.bf16 %v1300, %v1299
      %v1373 = vpack.c.bf16 %v1302, %v1301
      %v1374 = vpack.c.bf16 %v1304, %v1303
      %v1375 = vpack.c.bf16 %v1306, %v1305
      %v1376 = vpack.c.bf16 %v1308, %v1307
      %v1377 = vpack.c.bf16 %v1310, %v1309
      %v1378 = vpack.c.bf16 %v1312, %v1311
      %v1379 = vpack.c.bf16 %v1314, %v1313
      %v1380 = vpack.c.bf16 %v1316, %v1315
      %v1381 = vpack.c.bf16 %v1318, %v1317
      %v1382 = vpack.c.bf16 %v1320, %v1319
      %v1383 = vpack.c.bf16 %v1322, %v1321
      %v1384 = vpack.c.bf16 %v1324, %v1323
      %v1385 = vpack.c.bf16 %v1326, %v1325
      %v1386 = vpack.c.bf16 %v1328, %v1327
      %v1387 = vpack.c.bf16 %v1330, %v1329
      %v1388 = vpack.c.bf16 %v1332, %v1331
      %v1389 = vpack.c.bf16 %v1334, %v1333
      %v1390 = vpack.c.bf16 %v1336, %v1335
      %v1391 = vpack.c.bf16 %v1338, %v1337
      %v1392 = vpack.c.bf16 %v1340, %v1339
      %v1393 = vpack.c.bf16 %v1342, %v1341
      %v1394 = vpack.c.bf16 %v1344, %v1343
      %v1445 = vunpack.c.l.b16 %v1345
      %v1446 = vunpack.c.h.b16 %v1345
      %v1447 = vunpack.c.l.b16 %v1346
      %v1448 = vunpack.c.h.b16 %v1346
      %v1449 = vunpack.c.l.b16 %v1347
      %v1450 = vunpack.c.h.b16 %v1347
      %v1451 = vunpack.c.l.b16 %v1348
      %v1452 = vunpack.c.h.b16 %v1348
      %v1453 = vunpack.c.l.b16 %v1349
      %v1454 = vunpack.c.h.b16 %v1349
      %v1455 = vunpack.c.l.b16 %v1350
      %v1456 = vunpack.c.h.b16 %v1350
      %v1457 = vunpack.c.l.b16 %v1351
      %v1458 = vunpack.c.h.b16 %v1351
      %v1459 = vunpack.c.l.b16 %v1352
      %v1460 = vunpack.c.h.b16 %v1352
      %v1461 = vunpack.c.l.b16 %v1353
      %v1462 = vunpack.c.h.b16 %v1353
      %v1463 = vunpack.c.l.b16 %v1354
      %v1464 = vunpack.c.h.b16 %v1354
      %v1465 = vunpack.c.l.b16 %v1355
      %v1466 = vunpack.c.h.b16 %v1355
      %v1467 = vunpack.c.l.b16 %v1356
      %v1468 = vunpack.c.h.b16 %v1356
      %v1469 = vunpack.c.l.b16 %v1357
      %v1470 = vunpack.c.h.b16 %v1357
      %v1471 = vunpack.c.l.b16 %v1358
      %v1472 = vunpack.c.h.b16 %v1358
      %v1473 = vunpack.c.l.b16 %v1359
      %v1474 = vunpack.c.h.b16 %v1359
      %v1475 = vunpack.c.l.b16 %v1360
      %v1476 = vunpack.c.h.b16 %v1360
      %v1477 = vunpack.c.l.b16 %v1361
      %v1478 = vunpack.c.h.b16 %v1361
      %v1479 = vunpack.c.l.b16 %v1362
      %v1480 = vunpack.c.h.b16 %v1362
      %v1481 = vunpack.c.l.b16 %v1363
      %v1482 = vunpack.c.h.b16 %v1363
      %v1483 = vunpack.c.l.b16 %v1364
      %v1484 = vunpack.c.h.b16 %v1364
      %v1485 = vunpack.c.l.b16 %v1365
      %v1486 = vunpack.c.h.b16 %v1365
      %v1487 = vunpack.c.l.b16 %v1366
      %v1488 = vunpack.c.h.b16 %v1366
      %v1489 = vunpack.c.l.b16 %v1367
      %v1490 = vunpack.c.h.b16 %v1367
      %v1491 = vunpack.c.l.b16 %v1368
      %v1492 = vunpack.c.h.b16 %v1368
      %v1493 = vunpack.c.l.b16 %v1369
      %v1494 = vunpack.c.h.b16 %v1369
      %v1495 = vunpack.c.l.b16 %v1370
      %v1496 = vunpack.c.h.b16 %v1370
      %v1497 = vunpack.c.l.b16 %v1371
      %v1498 = vunpack.c.h.b16 %v1371
      %v1499 = vunpack.c.l.b16 %v1372
      %v1500 = vunpack.c.h.b16 %v1372
      %v1501 = vunpack.c.l.b16 %v1373
      %v1502 = vunpack.c.h.b16 %v1373
      %v1503 = vunpack.c.l.b16 %v1374
      %v1504 = vunpack.c.h.b16 %v1374
      %v1505 = vunpack.c.l.b16 %v1375
      %v1506 = vunpack.c.h.b16 %v1375
      %v1507 = vunpack.c.l.b16 %v1376
      %v1508 = vunpack.c.h.b16 %v1376
      %v1509 = vunpack.c.l.b16 %v1377
      %v1510 = vunpack.c.h.b16 %v1377
      %v1511 = vunpack.c.l.b16 %v1378
      %v1512 = vunpack.c.h.b16 %v1378
      %v1513 = vunpack.c.l.b16 %v1379
      %v1514 = vunpack.c.h.b16 %v1379
      %v1515 = vunpack.c.l.b16 %v1380
      %v1516 = vunpack.c.h.b16 %v1380
      %v1517 = vunpack.c.l.b16 %v1381
      %v1518 = vunpack.c.h.b16 %v1381
      %v1519 = vunpack.c.l.b16 %v1382
      %v1520 = vunpack.c.h.b16 %v1382
      %v1521 = vunpack.c.l.b16 %v1383
      %v1522 = vunpack.c.h.b16 %v1383
      %v1523 = vunpack.c.l.b16 %v1384
      %v1524 = vunpack.c.h.b16 %v1384
      %v1525 = vunpack.c.l.b16 %v1385
      %v1526 = vunpack.c.h.b16 %v1385
      %v1527 = vunpack.c.l.b16 %v1386
      %v1528 = vunpack.c.h.b16 %v1386
      %v1529 = vunpack.c.l.b16 %v1387
      %v1530 = vunpack.c.h.b16 %v1387
      %v1531 = vunpack.c.l.b16 %v1388
      %v1532 = vunpack.c.h.b16 %v1388
      %v1533 = vunpack.c.l.b16 %v1389
      %v1534 = vunpack.c.h.b16 %v1389
      %v1535 = vunpack.c.l.b16 %v1390
      %v1536 = vunpack.c.h.b16 %v1390
      %v1537 = vunpack.c.l.b16 %v1391
      %v1538 = vunpack.c.h.b16 %v1391
      %v1539 = vunpack.c.l.b16 %v1392
      %v1540 = vunpack.c.h.b16 %v1392
      %v1541 = vunpack.c.l.b16 %v1393
      %v1542 = vunpack.c.h.b16 %v1393
      %v1543 = vunpack.c.l.b16 %v1394
      %v1544 = vunpack.c.h.b16 %v1394
      %v1545 = vpack.c.b16 %v1445, %v1445
      %v1546 = vpack.c.b16 %v1446, %v1446
      %v1547 = vpack.c.b16 %v1447, %v1447
      %v1548 = vpack.c.b16 %v1448, %v1448
      %v1549 = vpack.c.b16 %v1449, %v1449
      %v1550 = vpack.c.b16 %v1450, %v1450
      %v1551 = vpack.c.b16 %v1451, %v1451
      %v1552 = vpack.c.b16 %v1452, %v1452
      %v1553 = vpack.c.b16 %v1453, %v1453
      %v1554 = vpack.c.b16 %v1454, %v1454
      %v1555 = vpack.c.b16 %v1455, %v1455
      %v1556 = vpack.c.b16 %v1456, %v1456
      %v1557 = vpack.c.b16 %v1457, %v1457
      %v1558 = vpack.c.b16 %v1458, %v1458
      %v1559 = vpack.c.b16 %v1459, %v1459
      %v1560 = vpack.c.b16 %v1460, %v1460
      %v1561 = vpack.c.b16 %v1461, %v1461
      %v1562 = vpack.c.b16 %v1462, %v1462
      %v1563 = vpack.c.b16 %v1463, %v1463
      %v1564 = vpack.c.b16 %v1464, %v1464
      %v1565 = vpack.c.b16 %v1465, %v1465
      %v1566 = vpack.c.b16 %v1466, %v1466
      %v1567 = vpack.c.b16 %v1467, %v1467
      %v1568 = vpack.c.b16 %v1468, %v1468
      %v1569 = vpack.c.b16 %v1469, %v1469
      %v1570 = vpack.c.b16 %v1470, %v1470
      %v1571 = vpack.c.b16 %v1471, %v1471
      %v1572 = vpack.c.b16 %v1472, %v1472
      %v1573 = vpack.c.b16 %v1473, %v1473
      %v1574 = vpack.c.b16 %v1474, %v1474
      %v1575 = vpack.c.b16 %v1475, %v1475
      %v1576 = vpack.c.b16 %v1476, %v1476
      %v1577 = vpack.c.b16 %v1477, %v1477
      %v1578 = vpack.c.b16 %v1478, %v1478
      %v1579 = vpack.c.b16 %v1479, %v1479
      %v1580 = vpack.c.b16 %v1480, %v1480
      %v1581 = vpack.c.b16 %v1481, %v1481
      %v1582 = vpack.c.b16 %v1482, %v1482
      %v1583 = vpack.c.b16 %v1483, %v1483
      %v1584 = vpack.c.b16 %v1484, %v1484
      %v1585 = vpack.c.b16 %v1485, %v1485
      %v1586 = vpack.c.b16 %v1486, %v1486
      %v1587 = vpack.c.b16 %v1487, %v1487
      %v1588 = vpack.c.b16 %v1488, %v1488
      %v1589 = vpack.c.b16 %v1489, %v1489
      %v1590 = vpack.c.b16 %v1490, %v1490
      %v1591 = vpack.c.b16 %v1491, %v1491
      %v1592 = vpack.c.b16 %v1492, %v1492
      %v1593 = vpack.c.b16 %v1493, %v1493
      %v1594 = vpack.c.b16 %v1494, %v1494
      %v1595 = vpack.c.b16 %v1495, %v1495
      %v1596 = vpack.c.b16 %v1496, %v1496
      %v1597 = vpack.c.b16 %v1497, %v1497
      %v1598 = vpack.c.b16 %v1498, %v1498
      %v1599 = vpack.c.b16 %v1499, %v1499
      %v1600 = vpack.c.b16 %v1500, %v1500
      %v1601 = vpack.c.b16 %v1501, %v1501
      %v1602 = vpack.c.b16 %v1502, %v1502
      %v1603 = vpack.c.b16 %v1503, %v1503
      %v1604 = vpack.c.b16 %v1504, %v1504
      %v1605 = vpack.c.b16 %v1505, %v1505
      %v1606 = vpack.c.b16 %v1506, %v1506
      %v1607 = vpack.c.b16 %v1507, %v1507
      %v1608 = vpack.c.b16 %v1508, %v1508
      %v1609 = vpack.c.b16 %v1509, %v1509
      %v1610 = vpack.c.b16 %v1510, %v1510
      %v1611 = vpack.c.b16 %v1511, %v1511
      %v1612 = vpack.c.b16 %v1512, %v1512
      %v1613 = vpack.c.b16 %v1513, %v1513
      %v1614 = vpack.c.b16 %v1514, %v1514
      %v1615 = vpack.c.b16 %v1515, %v1515
      %v1616 = vpack.c.b16 %v1516, %v1516
      %v1617 = vpack.c.b16 %v1517, %v1517
      %v1618 = vpack.c.b16 %v1518, %v1518
      %v1619 = vpack.c.b16 %v1519, %v1519
      %v1620 = vpack.c.b16 %v1520, %v1520
      %v1621 = vpack.c.b16 %v1521, %v1521
      %v1622 = vpack.c.b16 %v1522, %v1522
      %v1623 = vpack.c.b16 %v1523, %v1523
      %v1624 = vpack.c.b16 %v1524, %v1524
      %v1625 = vpack.c.b16 %v1525, %v1525
      %v1626 = vpack.c.b16 %v1526, %v1526
      %v1627 = vpack.c.b16 %v1527, %v1527
      %v1628 = vpack.c.b16 %v1528, %v1528
      %v1629 = vpack.c.b16 %v1529, %v1529
      %v1630 = vpack.c.b16 %v1530, %v1530
      %v1631 = vpack.c.b16 %v1531, %v1531
      %v1632 = vpack.c.b16 %v1532, %v1532
      %v1633 = vpack.c.b16 %v1533, %v1533
      %v1634 = vpack.c.b16 %v1534, %v1534
      %v1635 = vpack.c.b16 %v1535, %v1535
      %v1636 = vpack.c.b16 %v1536, %v1536
      %v1637 = vpack.c.b16 %v1537, %v1537
      %v1638 = vpack.c.b16 %v1538, %v1538
      %v1639 = vpack.c.b16 %v1539, %v1539
      %v1640 = vpack.c.b16 %v1540, %v1540
      %v1641 = vpack.c.b16 %v1541, %v1541
      %v1642 = vpack.c.b16 %v1542, %v1542
      %v1643 = vpack.c.b16 %v1543, %v1543
      %v1644 = vpack.c.b16 %v1544, %v1544
      %1745 = vst [vmem:[%s145] sm:$0xf] %v1545
      %1746 = vst [vmem:[%s145 + $0x4] sm:$0xf] %v1546
      %1747 = vst [vmem:[%s145 + $0x8] sm:$0xf] %v1547
      %1748 = vst [vmem:[%s145 + $0xc] sm:$0xf] %v1548
      %1749 = vst [vmem:[%s145 + $0x10] sm:$0xf] %v1549
      %1750 = vst [vmem:[%s145 + $0x14] sm:$0xf] %v1550
      %1751 = vst [vmem:[%s145 + $0x18] sm:$0xf] %v1551
      %1752 = vst [vmem:[%s145 + $0x1c] sm:$0xf] %v1552
      %1753 = vst [vmem:[%s145 + $0x20] sm:$0xf] %v1553
      %1754 = vst [vmem:[%s145 + $0x24] sm:$0xf] %v1554
      %1755 = vst [vmem:[%s145 + $0x28] sm:$0xf] %v1555
      %1756 = vst [vmem:[%s145 + $0x2c] sm:$0xf] %v1556
      %1757 = vst [vmem:[%s145 + $0x30] sm:$0xf] %v1557
      %1758 = vst [vmem:[%s145 + $0x34] sm:$0xf] %v1558
      %1759 = vst [vmem:[%s145 + $0x38] sm:$0xf] %v1559
      %1760 = vst [vmem:[%s145 + $0x3c] sm:$0xf] %v1560
      %1761 = vst [vmem:[%s145 + $0x40] sm:$0xf] %v1561
      %1762 = vst [vmem:[%s145 + $0x44] sm:$0xf] %v1562
      %1763 = vst [vmem:[%s145 + $0x48] sm:$0xf] %v1563
      %1764 = vst [vmem:[%s145 + $0x4c] sm:$0xf] %v1564
      %1765 = vst [vmem:[%s145 + $0x50] sm:$0xf] %v1565
      %1766 = vst [vmem:[%s145 + $0x54] sm:$0xf] %v1566
      %1767 = vst [vmem:[%s145 + $0x58] sm:$0xf] %v1567
      %1768 = vst [vmem:[%s145 + $0x5c] sm:$0xf] %v1568
      %1769 = vst [vmem:[%s145 + $0x60] sm:$0xf] %v1569
      %1770 = vst [vmem:[%s145 + $0x64] sm:$0xf] %v1570
      %1771 = vst [vmem:[%s145 + $0x68] sm:$0xf] %v1571
      %1772 = vst [vmem:[%s145 + $0x6c] sm:$0xf] %v1572
      %1773 = vst [vmem:[%s145 + $0x70] sm:$0xf] %v1573
      %1774 = vst [vmem:[%s145 + $0x74] sm:$0xf] %v1574
      %1775 = vst [vmem:[%s145 + $0x78] sm:$0xf] %v1575
      %1776 = vst [vmem:[%s145 + $0x7c] sm:$0xf] %v1576
      %1777 = vst [vmem:[%s145 + $0x80] sm:$0xf] %v1577
      %1778 = vst [vmem:[%s145 + $0x84] sm:$0xf] %v1578
      %1779 = vst [vmem:[%s145 + $0x88] sm:$0xf] %v1579
      %1780 = vst [vmem:[%s145 + $0x8c] sm:$0xf] %v1580
      %1781 = vst [vmem:[%s145 + $0x90] sm:$0xf] %v1581
      %1782 = vst [vmem:[%s145 + $0x94] sm:$0xf] %v1582
      %1783 = vst [vmem:[%s145 + $0x98] sm:$0xf] %v1583
      %1784 = vst [vmem:[%s145 + $0x9c] sm:$0xf] %v1584
      %1785 = vst [vmem:[%s145 + $0xa0] sm:$0xf] %v1585
      %1786 = vst [vmem:[%s145 + $0xa4] sm:$0xf] %v1586
      %1787 = vst [vmem:[%s145 + $0xa8] sm:$0xf] %v1587
      %1788 = vst [vmem:[%s145 + $0xac] sm:$0xf] %v1588
      %1789 = vst [vmem:[%s145 + $0xb0] sm:$0xf] %v1589
      %1790 = vst [vmem:[%s145 + $0xb4] sm:$0xf] %v1590
      %1791 = vst [vmem:[%s145 + $0xb8] sm:$0xf] %v1591
      %1792 = vst [vmem:[%s145 + $0xbc] sm:$0xf] %v1592
      %1793 = vst [vmem:[%s145 + $0xc0] sm:$0xf] %v1593
      %1794 = vst [vmem:[%s145 + $0xc4] sm:$0xf] %v1594
      %1795 = vst [vmem:[%s145 + $0xc8] sm:$0xf] %v1595
      %1796 = vst [vmem:[%s145 + $0xcc] sm:$0xf] %v1596
      %1797 = vst [vmem:[%s145 + $0xd0] sm:$0xf] %v1597
      %1798 = vst [vmem:[%s145 + $0xd4] sm:$0xf] %v1598
      %1799 = vst [vmem:[%s145 + $0xd8] sm:$0xf] %v1599
      %1800 = vst [vmem:[%s145 + $0xdc] sm:$0xf] %v1600
      %1801 = vst [vmem:[%s145 + $0xe0] sm:$0xf] %v1601
      %1802 = vst [vmem:[%s145 + $0xe4] sm:$0xf] %v1602
      %1803 = vst [vmem:[%s145 + $0xe8] sm:$0xf] %v1603
      %1804 = vst [vmem:[%s145 + $0xec] sm:$0xf] %v1604
      %1805 = vst [vmem:[%s145 + $0xf0] sm:$0xf] %v1605
      %1806 = vst [vmem:[%s145 + $0xf4] sm:$0xf] %v1606
      %1807 = vst [vmem:[%s145 + $0xf8] sm:$0xf] %v1607
      %1808 = vst [vmem:[%s145 + $0xfc] sm:$0xf] %v1608
      %1809 = vst [vmem:[%s145 + $0x100] sm:$0xf] %v1609
      %1810 = vst [vmem:[%s145 + $0x104] sm:$0xf] %v1610
      %1811 = vst [vmem:[%s145 + $0x108] sm:$0xf] %v1611
      %1812 = vst [vmem:[%s145 + $0x10c] sm:$0xf] %v1612
      %1813 = vst [vmem:[%s145 + $0x110] sm:$0xf] %v1613
      %1814 = vst [vmem:[%s145 + $0x114] sm:$0xf] %v1614
      %1815 = vst [vmem:[%s145 + $0x118] sm:$0xf] %v1615
      %1816 = vst [vmem:[%s145 + $0x11c] sm:$0xf] %v1616
      %1817 = vst [vmem:[%s145 + $0x120] sm:$0xf] %v1617
      %1818 = vst [vmem:[%s145 + $0x124] sm:$0xf] %v1618
      %1819 = vst [vmem:[%s145 + $0x128] sm:$0xf] %v1619
      %1820 = vst [vmem:[%s145 + $0x12c] sm:$0xf] %v1620
      %1821 = vst [vmem:[%s145 + $0x130] sm:$0xf] %v1621
      %1822 = vst [vmem:[%s145 + $0x134] sm:$0xf] %v1622
      %1823 = vst [vmem:[%s145 + $0x138] sm:$0xf] %v1623
      %1824 = vst [vmem:[%s145 + $0x13c] sm:$0xf] %v1624
      %1825 = vst [vmem:[%s145 + $0x140] sm:$0xf] %v1625
      %1826 = vst [vmem:[%s145 + $0x144] sm:$0xf] %v1626
      %1827 = vst [vmem:[%s145 + $0x148] sm:$0xf] %v1627
      %1828 = vst [vmem:[%s145 + $0x14c] sm:$0xf] %v1628
      %1829 = vst [vmem:[%s145 + $0x150] sm:$0xf] %v1629
      %1830 = vst [vmem:[%s145 + $0x154] sm:$0xf] %v1630
      %1831 = vst [vmem:[%s145 + $0x158] sm:$0xf] %v1631
      %1832 = vst [vmem:[%s145 + $0x15c] sm:$0xf] %v1632
      %1833 = vst [vmem:[%s145 + $0x160] sm:$0xf] %v1633
      %1834 = vst [vmem:[%s145 + $0x164] sm:$0xf] %v1634
      %1835 = vst [vmem:[%s145 + $0x168] sm:$0xf] %v1635
      %1836 = vst [vmem:[%s145 + $0x16c] sm:$0xf] %v1636
      %1837 = vst [vmem:[%s145 + $0x170] sm:$0xf] %v1637
      %1838 = vst [vmem:[%s145 + $0x174] sm:$0xf] %v1638
      %1839 = vst [vmem:[%s145 + $0x178] sm:$0xf] %v1639
      %1840 = vst [vmem:[%s145 + $0x17c] sm:$0xf] %v1640
      %1841 = vst [vmem:[%s145 + $0x180] sm:$0xf] %v1641
      %1842 = vst [vmem:[%s145 + $0x184] sm:$0xf] %v1642
      %1843 = vst [vmem:[%s145 + $0x188] sm:$0xf] %v1643
      %1844 = vst [vmem:[%s145 + $0x18c] sm:$0xf] %v1644
      %s1845 = smul.u32 100, %s13
      %p1846 = scmp.lt.s32.totalorder %s1845, 199
      %s1847 = scalar_select %p1846, %s1845, 199
      %s1848 = smul.addr %s1847, 4
      %s1849 = scalar_lea.vmem %s2, %s1848
      // Predicated region
      $region29: #{discriminator_forward.4} parent=27 // pred_check
        %p1850 = pneg %p78
      $region30: #{discriminator_forward.4} parent=27 // pred_check_branch
        %1852 = sbr.rel (%p1850) target = $region32
      $region31: #{discriminator_forward.4} parent=27 // pred_region
        %s1853 = smul.u32 100, %s13
      $region32: #{discriminator_forward.4} parent=27 // pred_fallthru
        _
    $region28: #{discriminator_forward.4} parent=5 // pred_fallthru
      _
    %p1854 = scmp.le.s32.totalorder 2, %s8
    // Predicated region
    $region33: #{discriminator_forward.4} parent=5 // pred_check
      %p1855 = pneg %p1854
    $region34: #{discriminator_forward.4} parent=5 // pred_check_branch
      %1857 = sbr.rel (%p1855) target = $region36
    $region35: #{discriminator_forward.4} parent=5 // pred_region
      %s1858 = ssub.s32 %s8, 2
      // Predicated region
      $region37: #{discriminator_forward.4} parent=35 // pred_check
        %p1859 = pneg %p84
      $region38: #{discriminator_forward.4} parent=35 // pred_check_branch
        %1861 = sbr.rel (%p1859) target = $region40
      $region39: #{discriminator_forward.4} parent=35 // pred_region
        %s1862 = smul.u32 100, %s14
        %p1863 = scmp.lt.s32.totalorder %s1862, 199
        %s1864 = scalar_select %p1863, %s1862, 199
        %s1865 = smul.addr %s1864, 4
        %s1866 = scalar_lea.vmem %s2, %s1865
      $region40: #{discriminator_forward.4} parent=35 // pred_fallthru
        _
    $region36: #{discriminator_forward.4} parent=5 // pred_fallthru
      _
  $region6: #{discriminator_forward.4} parent=0 // loop_footer
    %s12 = sadd.s32 1, %s8
  $region7: #{discriminator_forward.4} parent=0 // loop_footer_branch
    %7 = sbr.rel target = $region3
  $region8: #{discriminator_forward.4} parent=0 // loop_exit
    _

// kernel: discriminator_forward.5
$region0: #{discriminator_forward.5}
  #allocation0 [shape = 'u32[]', space=smem, size = 0x4, offset = 0x4, fixed_abs, tag = 'smem constant byte address 0x4 - core index']
  #allocation1 [shape = 'u32[144,128]{1,0:T(1,128)}', space=vmem, size = 0x12000, scoped, tag = 'internal scratch']
  %s0 = inlined_call_operand.vmem [shape: bf16[448,112], index: 0, kind: input, shape index: {}]
  %s1 = inlined_call_operand.vmem [shape: bf16[112,128], index: 1, kind: input, shape index: {}]
  %s2 = inlined_call_operand.vmem [shape: f32[128,128], index: 2, kind: input, shape index: {}]
  %s3 = inlined_call_operand.vmem [shape: f32[1,128], index: 3, kind: input, shape index: {}]
  %s4 = inlined_call_operand.vmem [shape: f32[1,128], index: 4, kind: input, shape index: {}]
  %s5 = inlined_call_operand.vmem [shape: bf16[448,128], index: 5, kind: output, shape index: {}]
  %s6 = sld [smem:[#allocation0]]
  $region53: #{discriminator_forward.5} parent=0
    _
  %s8 = ssub.s32 1, %s6
  %s9 = scalar_select 0, %s8, %s6
  loop: start=0, step=1, limit=4
  $region2: #{discriminator_forward.5} parent=0 // loop_pre_header
    _
  $region3: #{discriminator_forward.5} parent=0 // loop_header
    %s11 = sphi 0, %s15
    %p12 = scmp.ge.s32.totalorder %s11, 4
    %s21 = sphi 0, %s23
    %s24 = sphi 0, %s21
    %s25 = sphi 0, %s24
    %s41 = sphi 0, %s25
    %s45 = sphi 0, %s45
    %s47 = sphi 0, %s45
    %s48 = sphi 0, %s47
    %s62 = sphi 0, %s48
    %s66 = sphi 0, %s66
    %s68 = sphi 0, %s66
    %s69 = sphi 0, %s68
    %s83 = sphi 0, %s69
    %s87 = sphi 0, %s87
    %s89 = sphi 0, %s87
    %s90 = sphi 0, %s89
    %s104 = sphi 0, %s90
    %s108 = sphi 0, %s108
    %s110 = sphi 0, %s108
    %s111 = sphi 0, %s110
    %s125 = sphi 0, %s111
    %s131 = sphi 0, %s133
    %s134 = sphi 0, %s131
    %s135 = sphi 0, %s134
    %s151 = sphi 0, %s135
  $region4: #{discriminator_forward.5} parent=0 // loop_header_branch
    %14 = sbr.rel (%p12) target = $region8
  $region5: #{discriminator_forward.5} parent=0 // loop_body
    %s16 = ssub.s32 %s11, 1
    %s17 = ssub.s32 %s11, 2
    %s18 = sadd.s32 %s11, 1
    %s19 = ssub.s32 %s11, %s18
    %p20 = scmp.eq.s32.totalorder %s19, 0
    %s22 = sadd.s32 %s21, 1
    %s23 = scalar_select %p20, %s21, %s22
    %p26 = pneg %p20
    %p27 = scmp.eq.s32.totalorder %s11, 1
    %p28 = por %p26, %p27
    %p29 = scmp.ne.s32.totalorder %s21, %s24
    %p30 = scmp.eq.s32.totalorder %s11, 0
    %p31 = por %p29, %p30
    %p32 = scmp.ne.s32.totalorder %s21, %s24
    %p33 = scmp.eq.s32.totalorder %s16, 1
    %p34 = por %p32, %p33
    %p35 = scmp.ne.s32.totalorder %s24, %s25
    %p36 = scmp.eq.s32.totalorder %s16, 0
    %p37 = por %p35, %p36
    %p38 = scmp.ne.s32.totalorder %s24, %s25
    %p39 = scmp.eq.s32.totalorder %s17, 1
    %p40 = por %p38, %p39
    %p42 = scmp.ne.s32.totalorder %s25, %s41
    %p43 = scmp.eq.s32.totalorder %s17, 0
    %p44 = por %p42, %p43
    %s46 = sadd.s32 %s45, 1
    %p49 = scmp.eq.s32.totalorder %s11, 1
    %p50 = scmp.ne.s32.totalorder %s45, %s47
    %p51 = scmp.eq.s32.totalorder %s11, 0
    %p52 = por %p50, %p51
    %p53 = scmp.ne.s32.totalorder %s45, %s47
    %p54 = scmp.eq.s32.totalorder %s16, 1
    %p55 = por %p53, %p54
    %p56 = scmp.ne.s32.totalorder %s47, %s48
    %p57 = scmp.eq.s32.totalorder %s16, 0
    %p58 = por %p56, %p57
    %p59 = scmp.ne.s32.totalorder %s47, %s48
    %p60 = scmp.eq.s32.totalorder %s17, 1
    %p61 = por %p59, %p60
    %p63 = scmp.ne.s32.totalorder %s48, %s62
    %p64 = scmp.eq.s32.totalorder %s17, 0
    %p65 = por %p63, %p64
    %s67 = sadd.s32 %s66, 1
    %p70 = scmp.eq.s32.totalorder %s11, 1
    %p71 = scmp.ne.s32.totalorder %s66, %s68
    %p72 = scmp.eq.s32.totalorder %s11, 0
    %p73 = por %p71, %p72
    %p74 = scmp.ne.s32.totalorder %s66, %s68
    %p75 = scmp.eq.s32.totalorder %s16, 1
    %p76 = por %p74, %p75
    %p77 = scmp.ne.s32.totalorder %s68, %s69
    %p78 = scmp.eq.s32.totalorder %s16, 0
    %p79 = por %p77, %p78
    %p80 = scmp.ne.s32.totalorder %s68, %s69
    %p81 = scmp.eq.s32.totalorder %s17, 1
    %p82 = por %p80, %p81
    %p84 = scmp.ne.s32.totalorder %s69, %s83
    %p85 = scmp.eq.s32.totalorder %s17, 0
    %p86 = por %p84, %p85
    %s88 = sadd.s32 %s87, 1
    %p91 = scmp.eq.s32.totalorder %s11, 1
    %p92 = scmp.ne.s32.totalorder %s87, %s89
    %p93 = scmp.eq.s32.totalorder %s11, 0
    %p94 = por %p92, %p93
    %p95 = scmp.ne.s32.totalorder %s87, %s89
    %p96 = scmp.eq.s32.totalorder %s16, 1
    %p97 = por %p95, %p96
    %p98 = scmp.ne.s32.totalorder %s89, %s90
    %p99 = scmp.eq.s32.totalorder %s16, 0
    %p100 = por %p98, %p99
    %p101 = scmp.ne.s32.totalorder %s89, %s90
    %p102 = scmp.eq.s32.totalorder %s17, 1
    %p103 = por %p101, %p102
    %p105 = scmp.ne.s32.totalorder %s90, %s104
    %p106 = scmp.eq.s32.totalorder %s17, 0
    %p107 = por %p105, %p106
    %s109 = sadd.s32 %s108, 1
    %p112 = scmp.eq.s32.totalorder %s11, 1
    %p113 = scmp.ne.s32.totalorder %s108, %s110
    %p114 = scmp.eq.s32.totalorder %s11, 0
    %p115 = por %p113, %p114
    %p116 = scmp.ne.s32.totalorder %s108, %s110
    %p117 = scmp.eq.s32.totalorder %s16, 1
    %p118 = por %p116, %p117
    %p119 = scmp.ne.s32.totalorder %s110, %s111
    %p120 = scmp.eq.s32.totalorder %s16, 0
    %p121 = por %p119, %p120
    %p122 = scmp.ne.s32.totalorder %s110, %s111
    %p123 = scmp.eq.s32.totalorder %s17, 1
    %p124 = por %p122, %p123
    %p126 = scmp.ne.s32.totalorder %s111, %s125
    %p127 = scmp.eq.s32.totalorder %s17, 0
    %p128 = por %p126, %p127
    %s129 = ssub.s32 %s11, %s18
    %p130 = scmp.eq.s32.totalorder %s129, 0
    %s132 = sadd.s32 %s131, 1
    %s133 = scalar_select %p130, %s131, %s132
    %p136 = pneg %p130
    %p137 = scmp.eq.s32.totalorder %s11, 1
    %p138 = por %p136, %p137
    %p139 = scmp.ne.s32.totalorder %s131, %s134
    %p140 = scmp.eq.s32.totalorder %s11, 0
    %p141 = por %p139, %p140
    %p142 = scmp.ne.s32.totalorder %s131, %s134
    %p143 = scmp.eq.s32.totalorder %s16, 1
    %p144 = por %p142, %p143
    %p145 = scmp.ne.s32.totalorder %s134, %s135
    %p146 = scmp.eq.s32.totalorder %s16, 0
    %p147 = por %p145, %p146
    %p148 = scmp.ne.s32.totalorder %s134, %s135
    %p149 = scmp.eq.s32.totalorder %s17, 1
    %p150 = por %p148, %p149
    %p152 = scmp.ne.s32.totalorder %s135, %s151
    %p153 = scmp.eq.s32.totalorder %s17, 0
    %p154 = por %p152, %p153
    %p155 = scmp.le.s32.totalorder 1, %s11
    %p156 = scmp.lt.s32.totalorder %s11, 3
    %p157 = pnand %p155, %p156
    %p158 = pneg %p157
    // Predicated region
    $region9: #{discriminator_forward.5} parent=5 // pred_check
      _
    $region10: #{discriminator_forward.5} parent=5 // pred_check_branch
      %160 = sbr.rel (%p157) target = $region12
    $region11: #{discriminator_forward.5} parent=5 // pred_region
      %s161 = ssub.s32 %s11, 1
      // Predicated region
      $region13: #{discriminator_forward.5} parent=11 // pred_check
        %p162 = pneg %p58
      $region14: #{discriminator_forward.5} parent=11 // pred_check_branch
        %164 = sbr.rel (%p162) target = $region16
      $region15: #{discriminator_forward.5} parent=11 // pred_region
        _
      $region16: #{discriminator_forward.5} parent=11 // pred_fallthru
        _
      // Predicated region
      $region17: #{discriminator_forward.5} parent=11 // pred_check
        %p165 = pneg %p79
      $region18: #{discriminator_forward.5} parent=11 // pred_check_branch
        %167 = sbr.rel (%p165) target = $region20
      $region19: #{discriminator_forward.5} parent=11 // pred_region
        _
      $region20: #{discriminator_forward.5} parent=11 // pred_fallthru
        _
      // Predicated region
      $region21: #{discriminator_forward.5} parent=11 // pred_check
        %p168 = pneg %p100
      $region22: #{discriminator_forward.5} parent=11 // pred_check_branch
        %170 = sbr.rel (%p168) target = $region24
      $region23: #{discriminator_forward.5} parent=11 // pred_region
        _
      $region24: #{discriminator_forward.5} parent=11 // pred_fallthru
        _
      // Predicated region
      $region25: #{discriminator_forward.5} parent=11 // pred_check
        %p171 = pneg %p121
      $region26: #{discriminator_forward.5} parent=11 // pred_check_branch
        %173 = sbr.rel (%p171) target = $region28
      $region27: #{discriminator_forward.5} parent=11 // pred_region
        _
      $region28: #{discriminator_forward.5} parent=11 // pred_fallthru
        _
    $region12: #{discriminator_forward.5} parent=5 // pred_fallthru
      _
    %p174 = scmp.lt.s32.totalorder %s11, 2
    // Predicated region
    $region29: #{discriminator_forward.5} parent=5 // pred_check
      %p175 = pneg %p174
    $region30: #{discriminator_forward.5} parent=5 // pred_check_branch
      %177 = sbr.rel (%p175) target = $region32
    $region31: #{discriminator_forward.5} parent=5 // pred_region
      // Predicated region
      $region33: #{discriminator_forward.5} parent=31 // pred_check
        %p178 = pneg %p31
      $region34: #{discriminator_forward.5} parent=31 // pred_check_branch
        %180 = sbr.rel (%p178) target = $region36
      $region35: #{discriminator_forward.5} parent=31 // pred_region
        %s181 = smul.u32 28, %s11
        %p182 = scmp.lt.s32.totalorder %s181, 55
        %s183 = scalar_select %p182, %s181, 55
        %s184 = smul.addr %s183, 4
        %s185 = scalar_lea.vmem %s0, %s184
        %s186 = smul.u32 28, %s11
      $region36: #{discriminator_forward.5} parent=31 // pred_fallthru
        _
    $region32: #{discriminator_forward.5} parent=5 // pred_fallthru
      _
    %p187 = scmp.le.s32.totalorder 1, %s11
    %p188 = scmp.lt.s32.totalorder %s11, 3
    %p189 = pnand %p187, %p188
    %p190 = pneg %p189
    // Predicated region
    $region37: #{discriminator_forward.5} parent=5 // pred_check
      _
    $region38: #{discriminator_forward.5} parent=5 // pred_check_branch
      %192 = sbr.rel (%p189) target = $region40
    $region39: #{discriminator_forward.5} parent=5 // pred_region
      %s193 = ssub.s32 %s11, 1
      %s194 = smul.u32 28, %s16
      %p195 = scmp.lt.s32.totalorder %s194, 55
      %s196 = scalar_select %p195, %s194, 55
      %s197 = smul.addr %s196, 4
      %s198 = scalar_lea.vmem %s0, %s197
      %p199 = pneg %p37
      %p200 = pneg %p34
      %p201 = pneg %p58
      %p202 = pneg %p55
      %p203 = pneg %p79
      %p204 = pneg %p76
      %p205 = pneg %p100
      %p206 = pneg %p97
      %p207 = pneg %p121
      %p208 = pneg %p118
      %p209 = pneg %p147
      %p210 = pneg %p144
      %s211 = smul.u32 28, %s16
      %p212 = scmp.lt.s32.totalorder %s211, 55
      %s213 = scalar_select %p212, %s211, 55
      %s214 = smul.addr %s213, 4
      %s215 = scalar_lea.vmem %s5, %s214
      %s216 = smul.u32 28, %s16
      %p217 = scmp.lt.s32.totalorder %s216, 55
      %s218 = scalar_select %p217, %s216, 55
      %s219 = smul.addr %s218, 4
      %s220 = scalar_lea.vmem %s0, %s219
      %s221 = smul.u32 28, %s16
      %s222 = smul.u32 28, %s16
      %p223 = scmp.lt.s32.totalorder %s222, 55
      %s224 = scalar_select %p223, %s222, 55
      %s225 = smul.addr %s224, 4
      %s226 = scalar_lea.vmem %s5, %s225
      %s227 = smul.u32 28, %s16
      %v229 = vld [vmem:[%s220] sm:$0xf]
      %v230 = vld [vmem:[%s220 + $0x4] sm:$0xf]
      %v231 = vld [vmem:[%s220 + $0x8] sm:$0xf]
      %v232 = vld [vmem:[%s220 + $0xc] sm:$0xf]
      %v233 = vld [vmem:[%s220 + $0x10] sm:$0xf]
      %v234 = vld [vmem:[%s220 + $0x14] sm:$0xf]
      %v235 = vld [vmem:[%s220 + $0x18] sm:$0xf]
      %v236 = vld [vmem:[%s220 + $0x1c] sm:$0xf]
      %v237 = vld [vmem:[%s220 + $0x20] sm:$0xf]
      %v238 = vld [vmem:[%s220 + $0x24] sm:$0xf]
      %v239 = vld [vmem:[%s220 + $0x28] sm:$0xf]
      %v240 = vld [vmem:[%s220 + $0x2c] sm:$0xf]
      %v241 = vld [vmem:[%s220 + $0x30] sm:$0xf]
      %v242 = vld [vmem:[%s220 + $0x34] sm:$0xf]
      %v243 = vld [vmem:[%s220 + $0x38] sm:$0xf]
      %v244 = vld [vmem:[%s220 + $0x3c] sm:$0xf]
      %v245 = vld [vmem:[%s220 + $0x40] sm:$0xf]
      %v246 = vld [vmem:[%s220 + $0x44] sm:$0xf]
      %v247 = vld [vmem:[%s220 + $0x48] sm:$0xf]
      %v248 = vld [vmem:[%s220 + $0x4c] sm:$0xf]
      %v249 = vld [vmem:[%s220 + $0x50] sm:$0xf]
      %v250 = vld [vmem:[%s220 + $0x54] sm:$0xf]
      %v251 = vld [vmem:[%s220 + $0x58] sm:$0xf]
      %v252 = vld [vmem:[%s220 + $0x5c] sm:$0xf]
      %v253 = vld [vmem:[%s220 + $0x60] sm:$0xf]
      %v254 = vld [vmem:[%s220 + $0x64] sm:$0xf]
      %v255 = vld [vmem:[%s220 + $0x68] sm:$0xf]
      %v256 = vld [vmem:[%s220 + $0x6c] sm:$0xf]
      %v257 = vld [vmem:[%s1] sm:$0xf]
      %v258 = vld [vmem:[%s1 + $0x4] sm:$0xf]
      %v259 = vld [vmem:[%s1 + $0x8] sm:$0xf]
      %v260 = vld [vmem:[%s1 + $0xc] sm:$0xf]
      %v261 = vld [vmem:[%s1 + $0x10] sm:$0xf]
      %v262 = vld [vmem:[%s1 + $0x14] sm:$0xf]
      %v263 = vld [vmem:[%s1 + $0x18] sm:$0xf]
      %v264 = vld [vmem:[%s1 + $0x1c] sm:$0xf]
      %v265 = vld [vmem:[%s1 + $0x20] sm:$0xf]
      %v266 = vld [vmem:[%s1 + $0x24] sm:$0xf]
      %v267 = vld [vmem:[%s1 + $0x28] sm:$0xf]
      %v268 = vld [vmem:[%s1 + $0x2c] sm:$0xf]
      %v269 = vld [vmem:[%s1 + $0x30] sm:$0xf]
      %v270 = vld [vmem:[%s1 + $0x34] sm:$0xf]
      %v299 = vunpack.c.l.b16 %v229
      %v300 = vunpack.c.l.b16 %v230
      %v301 = vunpack.c.l.b16 %v231
      %v302 = vunpack.c.l.b16 %v232
      %v303 = vunpack.c.l.b16 %v233
      %v304 = vunpack.c.l.b16 %v234
      %v305 = vunpack.c.l.b16 %v235
      %v306 = vunpack.c.l.b16 %v236
      %v307 = vunpack.c.l.b16 %v237
      %v308 = vunpack.c.l.b16 %v238
      %v309 = vunpack.c.l.b16 %v239
      %v310 = vunpack.c.l.b16 %v240
      %v311 = vunpack.c.l.b16 %v241
      %v312 = vunpack.c.l.b16 %v242
      %v313 = vunpack.c.l.b16 %v243
      %v314 = vunpack.c.l.b16 %v244
      %v315 = vunpack.c.l.b16 %v245
      %v316 = vunpack.c.l.b16 %v246
      %v317 = vunpack.c.l.b16 %v247
      %v318 = vunpack.c.l.b16 %v248
      %v319 = vunpack.c.l.b16 %v249
      %v320 = vunpack.c.l.b16 %v250
      %v321 = vunpack.c.l.b16 %v251
      %v322 = vunpack.c.l.b16 %v252
      %v323 = vunpack.c.l.b16 %v253
      %v324 = vunpack.c.l.b16 %v254
      %v325 = vunpack.c.l.b16 %v255
      %v326 = vunpack.c.l.b16 %v256
      %v327 = vpack.c.b16 %v300, %v299
      %v328 = vpack.c.b16 %v302, %v301
      %v329 = vpack.c.b16 %v304, %v303
      %v330 = vpack.c.b16 %v306, %v305
      %v331 = vpack.c.b16 %v308, %v307
      %v332 = vpack.c.b16 %v310, %v309
      %v333 = vpack.c.b16 %v312, %v311
      %v334 = vpack.c.b16 %v314, %v313
      %v335 = vpack.c.b16 %v316, %v315
      %v336 = vpack.c.b16 %v318, %v317
      %v337 = vpack.c.b16 %v320, %v319
      %v338 = vpack.c.b16 %v322, %v321
      %v339 = vpack.c.b16 %v324, %v323
      %v340 = vpack.c.b16 %v326, %v325
      %v355 = vunpack.c.l.b16 %v257
      %v356 = vunpack.c.l.b16 %v258
      %v357 = vunpack.c.l.b16 %v259
      %v358 = vunpack.c.l.b16 %v260
      %v359 = vunpack.c.l.b16 %v261
      %v360 = vunpack.c.l.b16 %v262
      %v361 = vunpack.c.l.b16 %v263
      %v362 = vunpack.c.l.b16 %v264
      %v363 = vunpack.c.l.b16 %v265
      %v364 = vunpack.c.l.b16 %v266
      %v365 = vunpack.c.l.b16 %v267
      %v366 = vunpack.c.l.b16 %v268
      %v367 = vunpack.c.l.b16 %v269
      %v368 = vunpack.c.l.b16 %v270
      %v369 = vpack.c.b16 %v356, %v355
      %v370 = vpack.c.b16 %v358, %v357
      %v371 = vpack.c.b16 %v360, %v359
      %v372 = vpack.c.b16 %v362, %v361
      %v373 = vpack.c.b16 %v364, %v363
      %v374 = vpack.c.b16 %v366, %v365
      %v375 = vpack.c.b16 %v368, %v367
      %vm383 = vcmask 916480
      %v385 = vsel %vm383, %v327, 0
      %v388 = vsel %vm383, %v328, 0
      %v391 = vsel %vm383, %v329, 0
      %v394 = vsel %vm383, %v330, 0
      %v397 = vsel %vm383, %v331, 0
      %v400 = vsel %vm383, %v332, 0
      %v403 = vsel %vm383, %v333, 0
      %v406 = vsel %vm383, %v334, 0
      %v409 = vsel %vm383, %v335, 0
      %v412 = vsel %vm383, %v336, 0
      %v415 = vsel %vm383, %v337, 0
      %v418 = vsel %vm383, %v338, 0
      %v421 = vsel %vm383, %v339, 0
      %v424 = vsel %vm383, %v340, 0
      %426 = vmatprep.subr.bf16.mxu0 0
      %427 = vmatpush1.bf16.msra.mxu0 %v369
      %428 = vmatprep.subr.bf16.mxu0 0
      %429 = vmatpush1.bf16.msra.mxu0 %v370
      %430 = vmatprep.subr.bf16.mxu0 0
      %431 = vmatpush1.bf16.msra.mxu0 %v371
      %432 = vmatprep.subr.bf16.mxu0 0
      %433 = vmatpush1.bf16.msra.mxu0 %v372
      %434 = vmatprep.subr.bf16.mxu0 0
      %435 = vmatpush1.bf16.msra.mxu0 %v373
      %436 = vmatprep.subr.bf16.mxu0 0
      %437 = vmatpush1.bf16.msra.mxu0 %v374
      %438 = vmatprep.subr.bf16.mxu0 0
      %439 = vmatpush1.bf16.msra.mxu0 %v375
      %440 = vmatprep.subr.bf16.mxu0 0
      %441 = vmatpush1.bf16.msra.mxu0 0
      %442 = vmatprep.subr.bf16.mxu0 0
      %443 = vmatpush1.bf16.msra.mxu0 0
      %444 = vmatprep.subr.bf16.mxu0 0
      %445 = vmatpush1.bf16.msra.mxu0 0
      %446 = vmatprep.subr.bf16.mxu0 0
      %447 = vmatpush1.bf16.msra.mxu0 0
      %448 = vmatprep.subr.bf16.mxu0 0
      %449 = vmatpush1.bf16.msra.mxu0 0
      %450 = vmatprep.subr.bf16.mxu0 0
      %451 = vmatpush1.bf16.msra.mxu0 0
      %452 = vmatprep.subr.bf16.mxu0 0
      %453 = vmatpush1.bf16.msra.mxu0 0
      %454 = vmatprep.subr.bf16.mxu0 0
      %455 = vmatpush1.bf16.msra.mxu0 0
      %456 = vmatprep.subr.bf16.mxu0 0
      %457 = vmatpush1.bf16.msra.mxu0 0
      %458 = vmatprep.mubr.bf16.mxu0 0
      %459 = vmatmul.mubr.bf16.gmra.mrb[0].mxu0 %v385
      %v460 = vpop.f32.mrb[0].mxu0
      %v461 = vadd.f32 0.0, %v460
      %v462 = vpop.f32.mrb[0].mxu0
      %v463 = vpop.f32.mrb[0].mxu0
      %v464 = vadd.f32 0.0, %v463
      %v465 = vpop.f32.mrb[0].mxu0
      %466 = vmatprep.mubr.bf16.mxu0 0
      %467 = vmatmul.mubr.bf16.gmra.mrb[0].mxu0 %v388
      %v468 = vpop.f32.mrb[0].mxu0
      %v469 = vadd.f32 0.0, %v468
      %v470 = vpop.f32.mrb[0].mxu0
      %v471 = vpop.f32.mrb[0].mxu0
      %v472 = vadd.f32 0.0, %v471
      %v473 = vpop.f32.mrb[0].mxu0
      %474 = vmatprep.mubr.bf16.mxu0 0
      %475 = vmatmul.mubr.bf16.gmra.mrb[0].mxu0 %v391
      %v476 = vpop.f32.mrb[0].mxu0
      %v477 = vadd.f32 0.0, %v476
      %v478 = vpop.f32.mrb[0].mxu0
      %v479 = vpop.f32.mrb[0].mxu0
      %v480 = vadd.f32 0.0, %v479
      %v481 = vpop.f32.mrb[0].mxu0
      %482 = vmatprep.mubr.bf16.mxu0 0
      %483 = vmatmul.mubr.bf16.gmra.mrb[0].mxu0 %v394
      %v484 = vpop.f32.mrb[0].mxu0
      %v485 = vadd.f32 0.0, %v484
      %v486 = vpop.f32.mrb[0].mxu0
      %v487 = vpop.f32.mrb[0].mxu0
      %v488 = vadd.f32 0.0, %v487
      %v489 = vpop.f32.mrb[0].mxu0
      %490 = vmatprep.mubr.bf16.mxu0 0
      %491 = vmatmul.mubr.bf16.gmra.mrb[0].mxu0 %v397
      %v492 = vpop.f32.mrb[0].mxu0
      %v493 = vadd.f32 0.0, %v492
      %v494 = vpop.f32.mrb[0].mxu0
      %v495 = vpop.f32.mrb[0].mxu0
      %v496 = vadd.f32 0.0, %v495
      %v497 = vpop.f32.mrb[0].mxu0
      %498 = vmatprep.mubr.bf16.mxu0 0
      %499 = vmatmul.mubr.bf16.gmra.mrb[0].mxu0 %v400
      %v500 = vpop.f32.mrb[0].mxu0
      %v501 = vadd.f32 0.0, %v500
      %v502 = vpop.f32.mrb[0].mxu0
      %v503 = vpop.f32.mrb[0].mxu0
      %v504 = vadd.f32 0.0, %v503
      %v505 = vpop.f32.mrb[0].mxu0
      %506 = vmatprep.mubr.bf16.mxu0 0
      %507 = vmatmul.mubr.bf16.gmra.mrb[0].mxu0 %v403
      %v508 = vpop.f32.mrb[0].mxu0
      %v509 = vadd.f32 0.0, %v508
      %v510 = vpop.f32.mrb[0].mxu0
      %v511 = vpop.f32.mrb[0].mxu0
      %v512 = vadd.f32 0.0, %v511
      %v513 = vpop.f32.mrb[0].mxu0
      %514 = vmatprep.mubr.bf16.mxu0 0
      %515 = vmatmul.mubr.bf16.gmra.mrb[0].mxu0 %v406
      %v516 = vpop.f32.mrb[0].mxu0
      %v517 = vadd.f32 0.0, %v516
      %v518 = vpop.f32.mrb[0].mxu0
      %v519 = vpop.f32.mrb[0].mxu0
      %v520 = vadd.f32 0.0, %v519
      %v521 = vpop.f32.mrb[0].mxu0
      %522 = vmatprep.mubr.bf16.mxu0 0
      %523 = vmatmul.mubr.bf16.gmra.mrb[0].mxu0 %v409
      %v524 = vpop.f32.mrb[0].mxu0
      %v525 = vadd.f32 0.0, %v524
      %v526 = vpop.f32.mrb[0].mxu0
      %v527 = vpop.f32.mrb[0].mxu0
      %v528 = vadd.f32 0.0, %v527
      %v529 = vpop.f32.mrb[0].mxu0
      %530 = vmatprep.mubr.bf16.mxu0 0
      %531 = vmatmul.mubr.bf16.gmra.mrb[0].mxu0 %v412
      %v532 = vpop.f32.mrb[0].mxu0
      %v533 = vadd.f32 0.0, %v532
      %v534 = vpop.f32.mrb[0].mxu0
      %v535 = vpop.f32.mrb[0].mxu0
      %v536 = vadd.f32 0.0, %v535
      %v537 = vpop.f32.mrb[0].mxu0
      %538 = vmatprep.mubr.bf16.mxu0 0
      %539 = vmatmul.mubr.bf16.gmra.mrb[0].mxu0 %v415
      %v540 = vpop.f32.mrb[0].mxu0
      %v541 = vadd.f32 0.0, %v540
      %v542 = vpop.f32.mrb[0].mxu0
      %v543 = vpop.f32.mrb[0].mxu0
      %v544 = vadd.f32 0.0, %v543
      %v545 = vpop.f32.mrb[0].mxu0
      %546 = vmatprep.mubr.bf16.mxu0 0
      %547 = vmatmul.mubr.bf16.gmra.mrb[0].mxu0 %v418
      %v548 = vpop.f32.mrb[0].mxu0
      %v549 = vadd.f32 0.0, %v548
      %v550 = vpop.f32.mrb[0].mxu0
      %v551 = vpop.f32.mrb[0].mxu0
      %v552 = vadd.f32 0.0, %v551
      %v553 = vpop.f32.mrb[0].mxu0
      %554 = vmatprep.mubr.bf16.mxu0 0
      %555 = vmatmul.mubr.bf16.gmra.mrb[0].mxu0 %v421
      %v556 = vpop.f32.mrb[0].mxu0
      %v557 = vadd.f32 0.0, %v556
      %v558 = vpop.f32.mrb[0].mxu0
      %v559 = vpop.f32.mrb[0].mxu0
      %v560 = vadd.f32 0.0, %v559
      %v561 = vpop.f32.mrb[0].mxu0
      %562 = vmatprep.mubr.bf16.mxu0 0
      %563 = vmatmul.mubr.bf16.gmra.mrb[0].mxu0 %v424
      %v564 = vpop.f32.mrb[0].mxu0
      %v565 = vadd.f32 0.0, %v564
      %v566 = vpop.f32.mrb[0].mxu0
      %v567 = vpop.f32.mrb[0].mxu0
      %v568 = vadd.f32 0.0, %v567
      %v569 = vpop.f32.mrb[0].mxu0
      %570 = vdwg.mxu0
      %v571 = vld [vmem:[%s2] sm:$0xff]
      %v572 = vld [vmem:[%s2 + $0x8] sm:$0xff]
      %v573 = vld [vmem:[%s2 + $0x10] sm:$0xff]
      %v574 = vld [vmem:[%s2 + $0x18] sm:$0xff]
      %v575 = vld [vmem:[%s2 + $0x20] sm:$0xff]
      %v576 = vld [vmem:[%s2 + $0x28] sm:$0xff]
      %v577 = vld [vmem:[%s2 + $0x30] sm:$0xff]
      %v578 = vld [vmem:[%s2 + $0x38] sm:$0xff]
      %v579 = vld [vmem:[%s2 + $0x40] sm:$0xff]
      %v580 = vld [vmem:[%s2 + $0x48] sm:$0xff]
      %v581 = vld [vmem:[%s2 + $0x50] sm:$0xff]
      %v582 = vld [vmem:[%s2 + $0x58] sm:$0xff]
      %v583 = vld [vmem:[%s2 + $0x60] sm:$0xff]
      %v584 = vld [vmem:[%s2 + $0x68] sm:$0xff]
      %v585 = vld [vmem:[%s2 + $0x70] sm:$0xff]
      %v586 = vld [vmem:[%s2 + $0x78] sm:$0xff]
      %v587 = vadd.f32 %v461, %v464
      %v588 = vadd.f32 %v587, %v469
      %v589 = vadd.f32 %v588, %v472
      %v590 = vadd.f32 %v589, %v477
      %v591 = vadd.f32 %v590, %v480
      %v592 = vadd.f32 %v591, %v485
      %v593 = vrot.slane %v592, 4
      %v594 = vadd.f32 %v592, %v593
      %v595 = vrot.slane %v594, 2
      %v596 = vadd.f32 %v594, %v595
      %v597 = vrot.slane %v596, 1
      %v598 = vadd.f32 %v596, %v597
      %v599 = vadd.f32 %v488, %v493
      %v600 = vadd.f32 %v599, %v496
      %v601 = vadd.f32 %v600, %v501
      %v602 = vadd.f32 %v601, %v504
      %v603 = vadd.f32 %v602, %v509
      %v604 = vadd.f32 %v603, %v512
      %v605 = vrot.slane %v604, 4
      %v606 = vadd.f32 %v604, %v605
      %v607 = vrot.slane %v606, 2
      %v608 = vadd.f32 %v606, %v607
      %v609 = vrot.slane %v608, 1
      %v610 = vadd.f32 %v608, %v609
      %v611 = vadd.f32 %v517, %v520
      %v612 = vadd.f32 %v611, %v525
      %v613 = vadd.f32 %v612, %v528
      %v614 = vadd.f32 %v613, %v533
      %v615 = vadd.f32 %v614, %v536
      %v616 = vadd.f32 %v615, %v541
      %v617 = vrot.slane %v616, 4
      %v618 = vadd.f32 %v616, %v617
      %v619 = vrot.slane %v618, 2
      %v620 = vadd.f32 %v618, %v619
      %v621 = vrot.slane %v620, 1
      %v622 = vadd.f32 %v620, %v621
      %v623 = vadd.f32 %v544, %v549
      %v624 = vadd.f32 %v623, %v552
      %v625 = vadd.f32 %v624, %v557
      %v626 = vadd.f32 %v625, %v560
      %v627 = vadd.f32 %v626, %v565
      %v628 = vadd.f32 %v627, %v568
      %v629 = vrot.slane %v628, 4
      %v630 = vadd.f32 %v628, %v629
      %v631 = vrot.slane %v630, 2
      %v632 = vadd.f32 %v630, %v631
      %v633 = vrot.slane %v632, 1
      %v634 = vadd.f32 %v632, %v633
      %vm639 = vcmask 1041409
      %v640 = vsel %vm639, %v610, %v598
      %vm641 = vcmask 1042434
      %v642 = vsel %vm641, %v622, %v640
      %vm643 = vcmask 1043459
      %v644 = vsel %vm643, %v634, %v642
      %646 = vmatprep.subr.mxu0 0.0
      %647 = vmatpush1.msra.mxu0 %v571
      %648 = vmatprep.subr.mxu0 0.0
      %649 = vmatpush1.msra.mxu0 %v572
      %650 = vmatprep.subr.mxu0 0.0
      %651 = vmatpush1.msra.mxu0 %v573
      %652 = vmatprep.subr.mxu0 0.0
      %653 = vmatpush1.msra.mxu0 %v574
      %654 = vmatprep.subr.mxu0 0.0
      %655 = vmatpush1.msra.mxu0 %v575
      %656 = vmatprep.subr.mxu0 0.0
      %657 = vmatpush1.msra.mxu0 %v576
      %658 = vmatprep.subr.mxu0 0.0
      %659 = vmatpush1.msra.mxu0 %v577
      %660 = vmatprep.subr.mxu0 0.0
      %661 = vmatpush1.msra.mxu0 %v578
      %662 = vmatprep.subr.mxu0 0.0
      %663 = vmatpush1.msra.mxu0 %v579
      %664 = vmatprep.subr.mxu0 0.0
      %665 = vmatpush1.msra.mxu0 %v580
      %666 = vmatprep.subr.mxu0 0.0
      %667 = vmatpush1.msra.mxu0 %v581
      %668 = vmatprep.subr.mxu0 0.0
      %669 = vmatpush1.msra.mxu0 %v582
      %670 = vmatprep.subr.mxu0 0.0
      %671 = vmatpush1.msra.mxu0 %v583
      %672 = vmatprep.subr.mxu0 0.0
      %673 = vmatpush1.msra.mxu0 %v584
      %674 = vmatprep.subr.mxu0 0.0
      %675 = vmatpush1.msra.mxu0 %v585
      %676 = vmatprep.subr.mxu0 0.0
      %677 = vmatpush1.msra.mxu0 %v586
      %678 = vmatprep.subr.mxu0 0.0
      %679 = vmatpush1.msra.mxu0 0.0
      %680 = vmatprep.subr.mxu0 0.0
      %681 = vmatpush1.msra.mxu0 0.0
      %682 = vmatprep.subr.mxu0 0.0
      %683 = vmatpush1.msra.mxu0 0.0
      %684 = vmatprep.subr.mxu0 0.0
      %685 = vmatpush1.msra.mxu0 0.0
      %686 = vmatprep.subr.mxu0 0.0
      %687 = vmatpush1.msra.mxu0 0.0
      %688 = vmatprep.subr.mxu0 0.0
      %689 = vmatpush1.msra.mxu0 0.0
      %690 = vmatprep.subr.mxu0 0.0
      %691 = vmatpush1.msra.mxu0 0.0
      %692 = vmatprep.subr.mxu0 0.0
      %693 = vmatpush1.msra.mxu0 0.0
      %694 = vmatprep.subr.mxu0 0.0
      %695 = vmatpush1.msra.mxu0 0.0
      %696 = vmatprep.subr.mxu0 0.0
      %697 = vmatpush1.msra.mxu0 0.0
      %698 = vmatprep.subr.mxu0 0.0
      %699 = vmatpush1.msra.mxu0 0.0
      %700 = vmatprep.subr.mxu0 0.0
      %701 = vmatpush1.msra.mxu0 0.0
      %702 = vmatprep.subr.mxu0 0.0
      %703 = vmatpush1.msra.mxu0 0.0
      %704 = vmatprep.subr.mxu0 0.0
      %705 = vmatpush1.msra.mxu0 0.0
      %706 = vmatprep.subr.mxu0 0.0
      %707 = vmatpush1.msra.mxu0 0.0
      %708 = vmatprep.subr.mxu0 0.0
      %709 = vmatpush1.msra.mxu0 0.0
      %710 = vmatprep.mubr.f32.mxu0 0.0
      %711 = vmatmul.mubr.f32.gmra.mrb[0].mxu0 %v644
      %v712 = vpop.f32.mrb[0].mxu0
      %v713 = vadd.f32 0.0, %v712
      %v714 = vpop.f32.mrb[0].mxu0
      %715 = vdwg.mxu0
      %v716 = vmul.f32 %v713, 0.020408163
      %v717 = vlaneseq
      %v718 = vshrl.u32 %v717, 7
      %v719 = vadd.s32 %v718, 8
      %v720 = vadd.s32 %v718, 16
      %v721 = vadd.s32 %v718, 24
      %v722 = vadd.s32 %v718, 32
      %v723 = vadd.s32 %v718, 40
      %v724 = vadd.s32 %v718, 48
      %vm725 = vcmp.lt.s32.totalorder %v718, 49
      %vm726 = vcmp.lt.s32.totalorder %v719, 49
      %vm727 = vcmp.lt.s32.totalorder %v720, 49
      %vm728 = vcmp.lt.s32.totalorder %v721, 49
      %vm729 = vcmp.lt.s32.totalorder %v722, 49
      %vm730 = vcmp.lt.s32.totalorder %v723, 49
      %vm731 = vcmp.lt.s32.totalorder %v724, 49
      %v734 = vunpack.c.l.s4 1966171168
      %v735 = vunpack.c.0.s8 %v734
      %v736 = vlaneseq
      %v737 = vshrl.u32 %v736, 7
      %v738 = vsub.s32 %v735, %v737
      %v739 = vrot.slane %v716, %v738
      %v740 = vcombine.high %v739, %v739
      %v742 = vunpack.c.l.s4 1966171168
      %v743 = vunpack.c.0.s8 %v742
      %v744 = vlaneseq
      %v745 = vshrl.u32 %v744, 7
      %v746 = vsub.s32 %v743, %v745
      %v747 = vrot.slane %v739, %v746
      %v749 = vunpack.c.l.s4 1966171168
      %v750 = vunpack.c.0.s8 %v749
      %v751 = vlaneseq
      %v752 = vshrl.u32 %v751, 7
      %v753 = vsub.s32 %v750, %v752
      %v754 = vrot.slane %v740, %v753
      %v755 = vcombine.high %v747, %v747
      %v756 = vcombine.high %v754, %v754
      %v757 = vlaneseq
      %v758 = vshrl.u32 %v757, 7
      %v759 = vsub.s32 0, %v758
      %v760 = vrot.slane %v747, %v759
      %v761 = vlaneseq
      %v762 = vshrl.u32 %v761, 7
      %v763 = vsub.s32 0, %v762
      %v764 = vrot.slane %v754, %v763
      %v765 = vlaneseq
      %v766 = vshrl.u32 %v765, 7
      %v767 = vsub.s32 0, %v766
      %v768 = vrot.slane %v755, %v767
      %v769 = vlaneseq
      %v770 = vshrl.u32 %v769, 7
      %v771 = vsub.s32 0, %v770
      %v772 = vrot.slane %v756, %v771
      %v777 = vsub.f32 %v461, %v760
      %v778 = vsub.f32 %v464, %v760
      %v779 = vsub.f32 %v469, %v760
      %v780 = vsub.f32 %v472, %v760
      %v781 = vsub.f32 %v477, %v760
      %v782 = vsub.f32 %v480, %v760
      %v783 = vsub.f32 %v485, %v760
      %v784 = vsub.f32 %v488, %v764
      %v785 = vsub.f32 %v493, %v764
      %v786 = vsub.f32 %v496, %v764
      %v787 = vsub.f32 %v501, %v764
      %v788 = vsub.f32 %v504, %v764
      %v789 = vsub.f32 %v509, %v764
      %v790 = vsub.f32 %v512, %v764
      %v791 = vsub.f32 %v517, %v768
      %v792 = vsub.f32 %v520, %v768
      %v793 = vsub.f32 %v525, %v768
      %v794 = vsub.f32 %v528, %v768
      %v795 = vsub.f32 %v533, %v768
      %v796 = vsub.f32 %v536, %v768
      %v797 = vsub.f32 %v541, %v768
      %v798 = vsub.f32 %v544, %v772
      %v799 = vsub.f32 %v549, %v772
      %v800 = vsub.f32 %v552, %v772
      %v801 = vsub.f32 %v557, %v772
      %v802 = vsub.f32 %v560, %v772
      %v803 = vsub.f32 %v565, %v772
      %v804 = vsub.f32 %v568, %v772
      %v805 = vsel %vm725, 1, 0
      %v806 = vsel %vm726, 1, 0
      %v807 = vsel %vm727, 1, 0
      %v808 = vsel %vm728, 1, 0
      %v809 = vsel %vm729, 1, 0
      %v810 = vsel %vm730, 1, 0
      %v811 = vsel %vm731, 1, 0
      %vm812 = vcmp.eq.s32.totalorder %v805, 1
      %vm813 = vcmp.eq.s32.totalorder %v806, 1
      %vm814 = vcmp.eq.s32.totalorder %v807, 1
      %vm815 = vcmp.eq.s32.totalorder %v808, 1
      %vm816 = vcmp.eq.s32.totalorder %v809, 1
      %vm817 = vcmp.eq.s32.totalorder %v810, 1
      %vm818 = vcmp.eq.s32.totalorder %v811, 1
      %v819 = vsel %vm812, %v777, 0.0
      %v820 = vsel %vm813, %v778, 0.0
      %v821 = vsel %vm814, %v779, 0.0
      %v822 = vsel %vm815, %v780, 0.0
      %v823 = vsel %vm816, %v781, 0.0
      %v824 = vsel %vm817, %v782, 0.0
      %v825 = vsel %vm818, %v783, 0.0
      %v826 = vsel %vm812, %v784, 0.0
      %v827 = vsel %vm813, %v785, 0.0
      %v828 = vsel %vm814, %v786, 0.0
      %v829 = vsel %vm815, %v787, 0.0
      %v830 = vsel %vm816, %v788, 0.0
      %v831 = vsel %vm817, %v789, 0.0
      %v832 = vsel %vm818, %v790, 0.0
      %v833 = vsel %vm812, %v791, 0.0
      %v834 = vsel %vm813, %v792, 0.0
      %v835 = vsel %vm814, %v793, 0.0
      %v836 = vsel %vm815, %v794, 0.0
      %v837 = vsel %vm816, %v795, 0.0
      %v838 = vsel %vm817, %v796, 0.0
      %v839 = vsel %vm818, %v797, 0.0
      %v840 = vsel %vm812, %v798, 0.0
      %v841 = vsel %vm813, %v799, 0.0
      %v842 = vsel %vm814, %v800, 0.0
      %v843 = vsel %vm815, %v801, 0.0
      %v844 = vsel %vm816, %v802, 0.0
      %v845 = vsel %vm817, %v803, 0.0
      %v846 = vsel %vm818, %v804, 0.0
      %v847 = vmul.f32 %v819, %v819
      %v848 = vmul.f32 %v820, %v820
      %v849 = vmul.f32 %v821, %v821
      %v850 = vmul.f32 %v822, %v822
      %v851 = vmul.f32 %v823, %v823
      %v852 = vmul.f32 %v824, %v824
      %v853 = vmul.f32 %v825, %v825
      %v854 = vmul.f32 %v826, %v826
      %v855 = vmul.f32 %v827, %v827
      %v856 = vmul.f32 %v828, %v828
      %v857 = vmul.f32 %v829, %v829
      %v858 = vmul.f32 %v830, %v830
      %v859 = vmul.f32 %v831, %v831
      %v860 = vmul.f32 %v832, %v832
      %v861 = vmul.f32 %v833, %v833
      %v862 = vmul.f32 %v834, %v834
      %v863 = vmul.f32 %v835, %v835
      %v864 = vmul.f32 %v836, %v836
      %v865 = vmul.f32 %v837, %v837
      %v866 = vmul.f32 %v838, %v838
      %v867 = vmul.f32 %v839, %v839
      %v868 = vmul.f32 %v840, %v840
      %v869 = vmul.f32 %v841, %v841
      %v870 = vmul.f32 %v842, %v842
      %v871 = vmul.f32 %v843, %v843
      %v872 = vmul.f32 %v844, %v844
      %v873 = vmul.f32 %v845, %v845
      %v874 = vmul.f32 %v846, %v846
      %v875 = vadd.f32 %v847, %v848
      %v876 = vadd.f32 %v875, %v849
      %v877 = vadd.f32 %v876, %v850
      %v878 = vadd.f32 %v877, %v851
      %v879 = vadd.f32 %v878, %v852
      %v880 = vadd.f32 %v879, %v853
      %v881 = vrot.slane %v880, 4
      %v882 = vadd.f32 %v880, %v881
      %v883 = vrot.slane %v882, 2
      %v884 = vadd.f32 %v882, %v883
      %v885 = vrot.slane %v884, 1
      %v886 = vadd.f32 %v884, %v885
      %v887 = vadd.f32 %v854, %v855
      %v888 = vadd.f32 %v887, %v856
      %v889 = vadd.f32 %v888, %v857
      %v890 = vadd.f32 %v889, %v858
      %v891 = vadd.f32 %v890, %v859
      %v892 = vadd.f32 %v891, %v860
      %v893 = vrot.slane %v892, 4
      %v894 = vadd.f32 %v892, %v893
      %v895 = vrot.slane %v894, 2
      %v896 = vadd.f32 %v894, %v895
      %v897 = vrot.slane %v896, 1
      %v898 = vadd.f32 %v896, %v897
      %v899 = vadd.f32 %v861, %v862
      %v900 = vadd.f32 %v899, %v863
      %v901 = vadd.f32 %v900, %v864
      %v902 = vadd.f32 %v901, %v865
      %v903 = vadd.f32 %v902, %v866
      %v904 = vadd.f32 %v903, %v867
      %v905 = vrot.slane %v904, 4
      %v906 = vadd.f32 %v904, %v905
      %v907 = vrot.slane %v906, 2
      %v908 = vadd.f32 %v906, %v907
      %v909 = vrot.slane %v908, 1
      %v910 = vadd.f32 %v908, %v909
      %v911 = vadd.f32 %v868, %v869
      %v912 = vadd.f32 %v911, %v870
      %v913 = vadd.f32 %v912, %v871
      %v914 = vadd.f32 %v913, %v872
      %v915 = vadd.f32 %v914, %v873
      %v916 = vadd.f32 %v915, %v874
      %v917 = vrot.slane %v916, 4
      %v918 = vadd.f32 %v916, %v917
      %v919 = vrot.slane %v918, 2
      %v920 = vadd.f32 %v918, %v919
      %v921 = vrot.slane %v920, 1
      %v922 = vadd.f32 %v920, %v921
      %v927 = vsel %vm639, %v898, %v886
      %v928 = vsel %vm641, %v910, %v927
      %v929 = vsel %vm643, %v922, %v928
      %931 = vmatprep.subr.mxu0 0.0
      %932 = vmatpush1.msra.mxu0 %v571
      %933 = vmatprep.subr.mxu0 0.0
      %934 = vmatpush1.msra.mxu0 %v572
      %935 = vmatprep.subr.mxu0 0.0
      %936 = vmatpush1.msra.mxu0 %v573
      %937 = vmatprep.subr.mxu0 0.0
      %938 = vmatpush1.msra.mxu0 %v574
      %939 = vmatprep.subr.mxu0 0.0
      %940 = vmatpush1.msra.mxu0 %v575
      %941 = vmatprep.subr.mxu0 0.0
      %942 = vmatpush1.msra.mxu0 %v576
      %943 = vmatprep.subr.mxu0 0.0
      %944 = vmatpush1.msra.mxu0 %v577
      %945 = vmatprep.subr.mxu0 0.0
      %946 = vmatpush1.msra.mxu0 %v578
      %947 = vmatprep.subr.mxu0 0.0
      %948 = vmatpush1.msra.mxu0 %v579
      %949 = vmatprep.subr.mxu0 0.0
      %950 = vmatpush1.msra.mxu0 %v580
      %951 = vmatprep.subr.mxu0 0.0
      %952 = vmatpush1.msra.mxu0 %v581
      %953 = vmatprep.subr.mxu0 0.0
      %954 = vmatpush1.msra.mxu0 %v582
      %955 = vmatprep.subr.mxu0 0.0
      %956 = vmatpush1.msra.mxu0 %v583
      %957 = vmatprep.subr.mxu0 0.0
      %958 = vmatpush1.msra.mxu0 %v584
      %959 = vmatprep.subr.mxu0 0.0
      %960 = vmatpush1.msra.mxu0 %v585
      %961 = vmatprep.subr.mxu0 0.0
      %962 = vmatpush1.msra.mxu0 %v586
      %963 = vmatprep.subr.mxu0 0.0
      %964 = vmatpush1.msra.mxu0 0.0
      %965 = vmatprep.subr.mxu0 0.0
      %966 = vmatpush1.msra.mxu0 0.0
      %967 = vmatprep.subr.mxu0 0.0
      %968 = vmatpush1.msra.mxu0 0.0
      %969 = vmatprep.subr.mxu0 0.0
      %970 = vmatpush1.msra.mxu0 0.0
      %971 = vmatprep.subr.mxu0 0.0
      %972 = vmatpush1.msra.mxu0 0.0
      %973 = vmatprep.subr.mxu0 0.0
      %974 = vmatpush1.msra.mxu0 0.0
      %975 = vmatprep.subr.mxu0 0.0
      %976 = vmatpush1.msra.mxu0 0.0
      %977 = vmatprep.subr.mxu0 0.0
      %978 = vmatpush1.msra.mxu0 0.0
      %979 = vmatprep.subr.mxu0 0.0
      %980 = vmatpush1.msra.mxu0 0.0
      %981 = vmatprep.subr.mxu0 0.0
      %982 = vmatpush1.msra.mxu0 0.0
      %983 = vmatprep.subr.mxu0 0.0
      %984 = vmatpush1.msra.mxu0 0.0
      %985 = vmatprep.subr.mxu0 0.0
      %986 = vmatpush1.msra.mxu0 0.0
      %987 = vmatprep.subr.mxu0 0.0
      %988 = vmatpush1.msra.mxu0 0.0
      %989 = vmatprep.subr.mxu0 0.0
      %990 = vmatpush1.msra.mxu0 0.0
      %991 = vmatprep.subr.mxu0 0.0
      %992 = vmatpush1.msra.mxu0 0.0
      %993 = vmatprep.subr.mxu0 0.0
      %994 = vmatpush1.msra.mxu0 0.0
      %995 = vmatprep.mubr.f32.mxu0 0.0
      %996 = vmatmul.mubr.f32.gmra.mrb[0].mxu0 %v929
      %v997 = vpop.f32.mrb[0].mxu0
      %v998 = vadd.f32 0.0, %v997
      %v999 = vpop.f32.mrb[0].mxu0
      %1000 = vdwg.mxu0
      %v1001 = vmul.f32 %v998, 0.020408163
      %v1002 = vadd.f32 %v1001, 1e-05
      %v1003 = vrsqrt.pop %v1002
      %v1004 = vld [vmem:[%s3] sm:$0x1]
      %v1006 = vlaneseq
      %v1007 = vshrl.u32 %v1006, 7
      %v1008 = vsub.s32 0, %v1007
      %v1009 = vrot.slane %v1004, %v1008
      %v1011 = vmul.f32 %v1003, %v1009
      %v1014 = vunpack.c.l.s4 1966171168
      %v1015 = vunpack.c.0.s8 %v1014
      %v1016 = vlaneseq
      %v1017 = vshrl.u32 %v1016, 7
      %v1018 = vsub.s32 %v1015, %v1017
      %v1019 = vrot.slane %v1011, %v1018
      %v1020 = vcombine.high %v1019, %v1019
      %v1022 = vunpack.c.l.s4 1966171168
      %v1023 = vunpack.c.0.s8 %v1022
      %v1024 = vlaneseq
      %v1025 = vshrl.u32 %v1024, 7
      %v1026 = vsub.s32 %v1023, %v1025
      %v1027 = vrot.slane %v1019, %v1026
      %v1029 = vunpack.c.l.s4 1966171168
      %v1030 = vunpack.c.0.s8 %v1029
      %v1031 = vlaneseq
      %v1032 = vshrl.u32 %v1031, 7
      %v1033 = vsub.s32 %v1030, %v1032
      %v1034 = vrot.slane %v1020, %v1033
      %v1035 = vcombine.high %v1027, %v1027
      %v1036 = vcombine.high %v1034, %v1034
      %v1037 = vlaneseq
      %v1038 = vshrl.u32 %v1037, 7
      %v1039 = vsub.s32 0, %v1038
      %v1040 = vrot.slane %v1027, %v1039
      %v1041 = vlaneseq
      %v1042 = vshrl.u32 %v1041, 7
      %v1043 = vsub.s32 0, %v1042
      %v1044 = vrot.slane %v1034, %v1043
      %v1045 = vlaneseq
      %v1046 = vshrl.u32 %v1045, 7
      %v1047 = vsub.s32 0, %v1046
      %v1048 = vrot.slane %v1035, %v1047
      %v1049 = vlaneseq
      %v1050 = vshrl.u32 %v1049, 7
      %v1051 = vsub.s32 0, %v1050
      %v1052 = vrot.slane %v1036, %v1051
      %v1057 = vmul.f32 %v819, %v1040
      %v1058 = vmul.f32 %v820, %v1040
      %v1059 = vmul.f32 %v821, %v1040
      %v1060 = vmul.f32 %v822, %v1040
      %v1061 = vmul.f32 %v823, %v1040
      %v1062 = vmul.f32 %v824, %v1040
      %v1063 = vmul.f32 %v825, %v1040
      %v1064 = vmul.f32 %v826, %v1044
      %v1065 = vmul.f32 %v827, %v1044
      %v1066 = vmul.f32 %v828, %v1044
      %v1067 = vmul.f32 %v829, %v1044
      %v1068 = vmul.f32 %v830, %v1044
      %v1069 = vmul.f32 %v831, %v1044
      %v1070 = vmul.f32 %v832, %v1044
      %v1071 = vmul.f32 %v833, %v1048
      %v1072 = vmul.f32 %v834, %v1048
      %v1073 = vmul.f32 %v835, %v1048
      %v1074 = vmul.f32 %v836, %v1048
      %v1075 = vmul.f32 %v837, %v1048
      %v1076 = vmul.f32 %v838, %v1048
      %v1077 = vmul.f32 %v839, %v1048
      %v1078 = vmul.f32 %v840, %v1052
      %v1079 = vmul.f32 %v841, %v1052
      %v1080 = vmul.f32 %v842, %v1052
      %v1081 = vmul.f32 %v843, %v1052
      %v1082 = vmul.f32 %v844, %v1052
      %v1083 = vmul.f32 %v845, %v1052
      %v1084 = vmul.f32 %v846, %v1052
      %v1085 = vld [vmem:[%s4] sm:$0x1]
      %v1087 = vlaneseq
      %v1088 = vshrl.u32 %v1087, 7
      %v1089 = vsub.s32 0, %v1088
      %v1090 = vrot.slane %v1085, %v1089
      %v1092 = vadd.f32 %v1057, %v1090
      %v1093 = vadd.f32 %v1058, %v1090
      %v1094 = vadd.f32 %v1059, %v1090
      %v1095 = vadd.f32 %v1060, %v1090
      %v1096 = vadd.f32 %v1061, %v1090
      %v1097 = vadd.f32 %v1062, %v1090
      %v1098 = vadd.f32 %v1063, %v1090
      %v1099 = vadd.f32 %v1064, %v1090
      %v1100 = vadd.f32 %v1065, %v1090
      %v1101 = vadd.f32 %v1066, %v1090
      %v1102 = vadd.f32 %v1067, %v1090
      %v1103 = vadd.f32 %v1068, %v1090
      %v1104 = vadd.f32 %v1069, %v1090
      %v1105 = vadd.f32 %v1070, %v1090
      %v1106 = vadd.f32 %v1071, %v1090
      %v1107 = vadd.f32 %v1072, %v1090
      %v1108 = vadd.f32 %v1073, %v1090
      %v1109 = vadd.f32 %v1074, %v1090
      %v1110 = vadd.f32 %v1075, %v1090
      %v1111 = vadd.f32 %v1076, %v1090
      %v1112 = vadd.f32 %v1077, %v1090
      %v1113 = vadd.f32 %v1078, %v1090
      %v1114 = vadd.f32 %v1079, %v1090
      %v1115 = vadd.f32 %v1080, %v1090
      %v1116 = vadd.f32 %v1081, %v1090
      %v1117 = vadd.f32 %v1082, %v1090
      %v1118 = vadd.f32 %v1083, %v1090
      %v1119 = vadd.f32 %v1084, %v1090
      %vm1120 = vcmp.gt.f32.partialorder %v1092, 0.0
      %vm1121 = vcmp.gt.f32.partialorder %v1093, 0.0
      %vm1122 = vcmp.gt.f32.partialorder %v1094, 0.0
      %vm1123 = vcmp.gt.f32.partialorder %v1095, 0.0
      %vm1124 = vcmp.gt.f32.partialorder %v1096, 0.0
      %vm1125 = vcmp.gt.f32.partialorder %v1097, 0.0
      %vm1126 = vcmp.gt.f32.partialorder %v1098, 0.0
      %vm1127 = vcmp.gt.f32.partialorder %v1099, 0.0
      %vm1128 = vcmp.gt.f32.partialorder %v1100, 0.0
      %vm1129 = vcmp.gt.f32.partialorder %v1101, 0.0
      %vm1130 = vcmp.gt.f32.partialorder %v1102, 0.0
      %vm1131 = vcmp.gt.f32.partialorder %v1103, 0.0
      %vm1132 = vcmp.gt.f32.partialorder %v1104, 0.0
      %vm1133 = vcmp.gt.f32.partialorder %v1105, 0.0
      %vm1134 = vcmp.gt.f32.partialorder %v1106, 0.0
      %vm1135 = vcmp.gt.f32.partialorder %v1107, 0.0
      %vm1136 = vcmp.gt.f32.partialorder %v1108, 0.0
      %vm1137 = vcmp.gt.f32.partialorder %v1109, 0.0
      %vm1138 = vcmp.gt.f32.partialorder %v1110, 0.0
      %vm1139 = vcmp.gt.f32.partialorder %v1111, 0.0
      %vm1140 = vcmp.gt.f32.partialorder %v1112, 0.0
      %vm1141 = vcmp.gt.f32.partialorder %v1113, 0.0
      %vm1142 = vcmp.gt.f32.partialorder %v1114, 0.0
      %vm1143 = vcmp.gt.f32.partialorder %v1115, 0.0
      %vm1144 = vcmp.gt.f32.partialorder %v1116, 0.0
      %vm1145 = vcmp.gt.f32.partialorder %v1117, 0.0
      %vm1146 = vcmp.gt.f32.partialorder %v1118, 0.0
      %vm1147 = vcmp.gt.f32.partialorder %v1119, 0.0
      %v1148 = vmul.f32 %v1092, 0.2
      %v1149 = vmul.f32 %v1093, 0.2
      %v1150 = vmul.f32 %v1094, 0.2
      %v1151 = vmul.f32 %v1095, 0.2
      %v1152 = vmul.f32 %v1096, 0.2
      %v1153 = vmul.f32 %v1097, 0.2
      %v1154 = vmul.f32 %v1098, 0.2
      %v1155 = vmul.f32 %v1099, 0.2
      %v1156 = vmul.f32 %v1100, 0.2
      %v1157 = vmul.f32 %v1101, 0.2
      %v1158 = vmul.f32 %v1102, 0.2
      %v1159 = vmul.f32 %v1103, 0.2
      %v1160 = vmul.f32 %v1104, 0.2
      %v1161 = vmul.f32 %v1105, 0.2
      %v1162 = vmul.f32 %v1106, 0.2
      %v1163 = vmul.f32 %v1107, 0.2
      %v1164 = vmul.f32 %v1108, 0.2
      %v1165 = vmul.f32 %v1109, 0.2
      %v1166 = vmul.f32 %v1110, 0.2
      %v1167 = vmul.f32 %v1111, 0.2
      %v1168 = vmul.f32 %v1112, 0.2
      %v1169 = vmul.f32 %v1113, 0.2
      %v1170 = vmul.f32 %v1114, 0.2
      %v1171 = vmul.f32 %v1115, 0.2
      %v1172 = vmul.f32 %v1116, 0.2
      %v1173 = vmul.f32 %v1117, 0.2
      %v1174 = vmul.f32 %v1118, 0.2
      %v1175 = vmul.f32 %v1119, 0.2
      %v1176 = vsel %vm1120, %v1092, %v1148
      %v1177 = vsel %vm1121, %v1093, %v1149
      %v1178 = vsel %vm1122, %v1094, %v1150
      %v1179 = vsel %vm1123, %v1095, %v1151
      %v1180 = vsel %vm1124, %v1096, %v1152
      %v1181 = vsel %vm1125, %v1097, %v1153
      %v1182 = vsel %vm1126, %v1098, %v1154
      %v1183 = vsel %vm1127, %v1099, %v1155
      %v1184 = vsel %vm1128, %v1100, %v1156
      %v1185 = vsel %vm1129, %v1101, %v1157
      %v1186 = vsel %vm1130, %v1102, %v1158
      %v1187 = vsel %vm1131, %v1103, %v1159
      %v1188 = vsel %vm1132, %v1104, %v1160
      %v1189 = vsel %vm1133, %v1105, %v1161
      %v1190 = vsel %vm1134, %v1106, %v1162
      %v1191 = vsel %vm1135, %v1107, %v1163
      %v1192 = vsel %vm1136, %v1108, %v1164
      %v1193 = vsel %vm1137, %v1109, %v1165
      %v1194 = vsel %vm1138, %v1110, %v1166
      %v1195 = vsel %vm1139, %v1111, %v1167
      %v1196 = vsel %vm1140, %v1112, %v1168
      %v1197 = vsel %vm1141, %v1113, %v1169
      %v1198 = vsel %vm1142, %v1114, %v1170
      %v1199 = vsel %vm1143, %v1115, %v1171
      %v1200 = vsel %vm1144, %v1116, %v1172
      %v1201 = vsel %vm1145, %v1117, %v1173
      %v1202 = vsel %vm1146, %v1118, %v1174
      %v1203 = vsel %vm1147, %v1119, %v1175
      %v1204 = vpack.c.bf16 %v1177, %v1176
      %v1205 = vpack.c.bf16 %v1179, %v1178
      %v1206 = vpack.c.bf16 %v1181, %v1180
      %v1207 = vpack.c.bf16 %v1183, %v1182
      %v1208 = vpack.c.bf16 %v1185, %v1184
      %v1209 = vpack.c.bf16 %v1187, %v1186
      %v1210 = vpack.c.bf16 %v1189, %v1188
      %v1211 = vpack.c.bf16 %v1191, %v1190
      %v1212 = vpack.c.bf16 %v1193, %v1192
      %v1213 = vpack.c.bf16 %v1195, %v1194
      %v1214 = vpack.c.bf16 %v1197, %v1196
      %v1215 = vpack.c.bf16 %v1199, %v1198
      %v1216 = vpack.c.bf16 %v1201, %v1200
      %v1217 = vpack.c.bf16 %v1203, %v1202
      %v1232 = vunpack.c.l.b16 %v1204
      %v1233 = vunpack.c.h.b16 %v1204
      %v1234 = vunpack.c.l.b16 %v1205
      %v1235 = vunpack.c.h.b16 %v1205
      %v1236 = vunpack.c.l.b16 %v1206
      %v1237 = vunpack.c.h.b16 %v1206
      %v1238 = vunpack.c.l.b16 %v1207
      %v1239 = vunpack.c.h.b16 %v1207
      %v1240 = vunpack.c.l.b16 %v1208
      %v1241 = vunpack.c.h.b16 %v1208
      %v1242 = vunpack.c.l.b16 %v1209
      %v1243 = vunpack.c.h.b16 %v1209
      %v1244 = vunpack.c.l.b16 %v1210
      %v1245 = vunpack.c.h.b16 %v1210
      %v1246 = vunpack.c.l.b16 %v1211
      %v1247 = vunpack.c.h.b16 %v1211
      %v1248 = vunpack.c.l.b16 %v1212
      %v1249 = vunpack.c.h.b16 %v1212
      %v1250 = vunpack.c.l.b16 %v1213
      %v1251 = vunpack.c.h.b16 %v1213
      %v1252 = vunpack.c.l.b16 %v1214
      %v1253 = vunpack.c.h.b16 %v1214
      %v1254 = vunpack.c.l.b16 %v1215
      %v1255 = vunpack.c.h.b16 %v1215
      %v1256 = vunpack.c.l.b16 %v1216
      %v1257 = vunpack.c.h.b16 %v1216
      %v1258 = vunpack.c.l.b16 %v1217
      %v1259 = vunpack.c.h.b16 %v1217
      %v1260 = vpack.c.b16 %v1232, %v1232
      %v1261 = vpack.c.b16 %v1233, %v1233
      %v1262 = vpack.c.b16 %v1234, %v1234
      %v1263 = vpack.c.b16 %v1235, %v1235
      %v1264 = vpack.c.b16 %v1236, %v1236
      %v1265 = vpack.c.b16 %v1237, %v1237
      %v1266 = vpack.c.b16 %v1238, %v1238
      %v1267 = vpack.c.b16 %v1239, %v1239
      %v1268 = vpack.c.b16 %v1240, %v1240
      %v1269 = vpack.c.b16 %v1241, %v1241
      %v1270 = vpack.c.b16 %v1242, %v1242
      %v1271 = vpack.c.b16 %v1243, %v1243
      %v1272 = vpack.c.b16 %v1244, %v1244
      %v1273 = vpack.c.b16 %v1245, %v1245
      %v1274 = vpack.c.b16 %v1246, %v1246
      %v1275 = vpack.c.b16 %v1247, %v1247
      %v1276 = vpack.c.b16 %v1248, %v1248
      %v1277 = vpack.c.b16 %v1249, %v1249
      %v1278 = vpack.c.b16 %v1250, %v1250
      %v1279 = vpack.c.b16 %v1251, %v1251
      %v1280 = vpack.c.b16 %v1252, %v1252
      %v1281 = vpack.c.b16 %v1253, %v1253
      %v1282 = vpack.c.b16 %v1254, %v1254
      %v1283 = vpack.c.b16 %v1255, %v1255
      %v1284 = vpack.c.b16 %v1256, %v1256
      %v1285 = vpack.c.b16 %v1257, %v1257
      %v1286 = vpack.c.b16 %v1258, %v1258
      %v1287 = vpack.c.b16 %v1259, %v1259
      %1316 = vst [vmem:[%s226] sm:$0xf] %v1260
      %1317 = vst [vmem:[%s226 + $0x4] sm:$0xf] %v1261
      %1318 = vst [vmem:[%s226 + $0x8] sm:$0xf] %v1262
      %1319 = vst [vmem:[%s226 + $0xc] sm:$0xf] %v1263
      %1320 = vst [vmem:[%s226 + $0x10] sm:$0xf] %v1264
      %1321 = vst [vmem:[%s226 + $0x14] sm:$0xf] %v1265
      %1322 = vst [vmem:[%s226 + $0x18] sm:$0xf] %v1266
      %1323 = vst [vmem:[%s226 + $0x1c] sm:$0xf] %v1267
      %1324 = vst [vmem:[%s226 + $0x20] sm:$0xf] %v1268
      %1325 = vst [vmem:[%s226 + $0x24] sm:$0xf] %v1269
      %1326 = vst [vmem:[%s226 + $0x28] sm:$0xf] %v1270
      %1327 = vst [vmem:[%s226 + $0x2c] sm:$0xf] %v1271
      %1328 = vst [vmem:[%s226 + $0x30] sm:$0xf] %v1272
      %1329 = vst [vmem:[%s226 + $0x34] sm:$0xf] %v1273
      %1330 = vst [vmem:[%s226 + $0x38] sm:$0xf] %v1274
      %1331 = vst [vmem:[%s226 + $0x3c] sm:$0xf] %v1275
      %1332 = vst [vmem:[%s226 + $0x40] sm:$0xf] %v1276
      %1333 = vst [vmem:[%s226 + $0x44] sm:$0xf] %v1277
      %1334 = vst [vmem:[%s226 + $0x48] sm:$0xf] %v1278
      %1335 = vst [vmem:[%s226 + $0x4c] sm:$0xf] %v1279
      %1336 = vst [vmem:[%s226 + $0x50] sm:$0xf] %v1280
      %1337 = vst [vmem:[%s226 + $0x54] sm:$0xf] %v1281
      %1338 = vst [vmem:[%s226 + $0x58] sm:$0xf] %v1282
      %1339 = vst [vmem:[%s226 + $0x5c] sm:$0xf] %v1283
      %1340 = vst [vmem:[%s226 + $0x60] sm:$0xf] %v1284
      %1341 = vst [vmem:[%s226 + $0x64] sm:$0xf] %v1285
      %1342 = vst [vmem:[%s226 + $0x68] sm:$0xf] %v1286
      %1343 = vst [vmem:[%s226 + $0x6c] sm:$0xf] %v1287
      %s1344 = smul.u32 28, %s16
      %p1345 = scmp.lt.s32.totalorder %s1344, 55
      %s1346 = scalar_select %p1345, %s1344, 55
      %s1347 = smul.addr %s1346, 4
      %s1348 = scalar_lea.vmem %s5, %s1347
      // Predicated region
      $region41: #{discriminator_forward.5} parent=39 // pred_check
        %p1349 = pneg %p144
      $region42: #{discriminator_forward.5} parent=39 // pred_check_branch
        %1351 = sbr.rel (%p1349) target = $region44
      $region43: #{discriminator_forward.5} parent=39 // pred_region
        %s1352 = smul.u32 28, %s16
      $region44: #{discriminator_forward.5} parent=39 // pred_fallthru
        _
    $region40: #{discriminator_forward.5} parent=5 // pred_fallthru
      _
    %p1353 = scmp.le.s32.totalorder 2, %s11
    // Predicated region
    $region45: #{discriminator_forward.5} parent=5 // pred_check
      %p1354 = pneg %p1353
    $region46: #{discriminator_forward.5} parent=5 // pred_check_branch
      %1356 = sbr.rel (%p1354) target = $region48
    $region47: #{discriminator_forward.5} parent=5 // pred_region
      %s1357 = ssub.s32 %s11, 2
      // Predicated region
      $region49: #{discriminator_forward.5} parent=47 // pred_check
        %p1358 = pneg %p150
      $region50: #{discriminator_forward.5} parent=47 // pred_check_branch
        %1360 = sbr.rel (%p1358) target = $region52
      $region51: #{discriminator_forward.5} parent=47 // pred_region
        %s1361 = smul.u32 28, %s17
        %p1362 = scmp.lt.s32.totalorder %s1361, 55
        %s1363 = scalar_select %p1362, %s1361, 55
        %s1364 = smul.addr %s1363, 4
        %s1365 = scalar_lea.vmem %s5, %s1364
      $region52: #{discriminator_forward.5} parent=47 // pred_fallthru
        _
    $region48: #{discriminator_forward.5} parent=5 // pred_fallthru
      _
  $region6: #{discriminator_forward.5} parent=0 // loop_footer
    %s15 = sadd.s32 1, %s11
  $region7: #{discriminator_forward.5} parent=0 // loop_footer_branch
    %10 = sbr.rel target = $region3
  $region8: #{discriminator_forward.5} parent=0 // loop_exit
    _

// kernel: discriminator_forward.6
$region0: #{discriminator_forward.6}
  #allocation0 [shape = 'u32[]', space=smem, size = 0x4, offset = 0x4, fixed_abs, tag = 'smem constant byte address 0x4 - core index']
  #allocation1 [shape = 'u32[144,128]{1,0:T(1,128)}', space=vmem, size = 0x12000, scoped, tag = 'internal scratch']
  %s0 = inlined_call_operand.vmem [shape: bf16[128,224], index: 0, kind: input, shape index: {}]
  %s1 = inlined_call_operand.vmem [shape: bf16[224,128], index: 1, kind: input, shape index: {}]
  %s2 = inlined_call_operand.vmem [shape: f32[128,128], index: 2, kind: input, shape index: {}]
  %s3 = inlined_call_operand.vmem [shape: f32[1,128], index: 3, kind: input, shape index: {}]
  %s4 = inlined_call_operand.vmem [shape: f32[1,128], index: 4, kind: input, shape index: {}]
  %s5 = inlined_call_operand.vmem [shape: bf16[128,128], index: 5, kind: output, shape index: {}]
  %s6 = sld [smem:[#allocation0]]
  $region53: #{discriminator_forward.6} parent=0
    _
  %s8 = ssub.s32 1, %s6
  %s9 = scalar_select 0, %s8, %s6
  loop: start=0, step=1, limit=4
  $region2: #{discriminator_forward.6} parent=0 // loop_pre_header
    _
  $region3: #{discriminator_forward.6} parent=0 // loop_header
    %s11 = sphi 0, %s15
    %p12 = scmp.ge.s32.totalorder %s11, 4
    %s21 = sphi 0, %s23
    %s24 = sphi 0, %s21
    %s25 = sphi 0, %s24
    %s41 = sphi 0, %s25
    %s45 = sphi 0, %s45
    %s47 = sphi 0, %s45
    %s48 = sphi 0, %s47
    %s62 = sphi 0, %s48
    %s66 = sphi 0, %s66
    %s68 = sphi 0, %s66
    %s69 = sphi 0, %s68
    %s83 = sphi 0, %s69
    %s87 = sphi 0, %s87
    %s89 = sphi 0, %s87
    %s90 = sphi 0, %s89
    %s104 = sphi 0, %s90
    %s108 = sphi 0, %s108
    %s110 = sphi 0, %s108
    %s111 = sphi 0, %s110
    %s125 = sphi 0, %s111
    %s131 = sphi 0, %s133
    %s134 = sphi 0, %s131
    %s135 = sphi 0, %s134
    %s151 = sphi 0, %s135
  $region4: #{discriminator_forward.6} parent=0 // loop_header_branch
    %14 = sbr.rel (%p12) target = $region8
  $region5: #{discriminator_forward.6} parent=0 // loop_body
    %s16 = ssub.s32 %s11, 1
    %s17 = ssub.s32 %s11, 2
    %s18 = sadd.s32 %s11, 1
    %s19 = ssub.s32 %s11, %s18
    %p20 = scmp.eq.s32.totalorder %s19, 0
    %s22 = sadd.s32 %s21, 1
    %s23 = scalar_select %p20, %s21, %s22
    %p26 = pneg %p20
    %p27 = scmp.eq.s32.totalorder %s11, 1
    %p28 = por %p26, %p27
    %p29 = scmp.ne.s32.totalorder %s21, %s24
    %p30 = scmp.eq.s32.totalorder %s11, 0
    %p31 = por %p29, %p30
    %p32 = scmp.ne.s32.totalorder %s21, %s24
    %p33 = scmp.eq.s32.totalorder %s16, 1
    %p34 = por %p32, %p33
    %p35 = scmp.ne.s32.totalorder %s24, %s25
    %p36 = scmp.eq.s32.totalorder %s16, 0
    %p37 = por %p35, %p36
    %p38 = scmp.ne.s32.totalorder %s24, %s25
    %p39 = scmp.eq.s32.totalorder %s17, 1
    %p40 = por %p38, %p39
    %p42 = scmp.ne.s32.totalorder %s25, %s41
    %p43 = scmp.eq.s32.totalorder %s17, 0
    %p44 = por %p42, %p43
    %s46 = sadd.s32 %s45, 1
    %p49 = scmp.eq.s32.totalorder %s11, 1
    %p50 = scmp.ne.s32.totalorder %s45, %s47
    %p51 = scmp.eq.s32.totalorder %s11, 0
    %p52 = por %p50, %p51
    %p53 = scmp.ne.s32.totalorder %s45, %s47
    %p54 = scmp.eq.s32.totalorder %s16, 1
    %p55 = por %p53, %p54
    %p56 = scmp.ne.s32.totalorder %s47, %s48
    %p57 = scmp.eq.s32.totalorder %s16, 0
    %p58 = por %p56, %p57
    %p59 = scmp.ne.s32.totalorder %s47, %s48
    %p60 = scmp.eq.s32.totalorder %s17, 1
    %p61 = por %p59, %p60
    %p63 = scmp.ne.s32.totalorder %s48, %s62
    %p64 = scmp.eq.s32.totalorder %s17, 0
    %p65 = por %p63, %p64
    %s67 = sadd.s32 %s66, 1
    %p70 = scmp.eq.s32.totalorder %s11, 1
    %p71 = scmp.ne.s32.totalorder %s66, %s68
    %p72 = scmp.eq.s32.totalorder %s11, 0
    %p73 = por %p71, %p72
    %p74 = scmp.ne.s32.totalorder %s66, %s68
    %p75 = scmp.eq.s32.totalorder %s16, 1
    %p76 = por %p74, %p75
    %p77 = scmp.ne.s32.totalorder %s68, %s69
    %p78 = scmp.eq.s32.totalorder %s16, 0
    %p79 = por %p77, %p78
    %p80 = scmp.ne.s32.totalorder %s68, %s69
    %p81 = scmp.eq.s32.totalorder %s17, 1
    %p82 = por %p80, %p81
    %p84 = scmp.ne.s32.totalorder %s69, %s83
    %p85 = scmp.eq.s32.totalorder %s17, 0
    %p86 = por %p84, %p85
    %s88 = sadd.s32 %s87, 1
    %p91 = scmp.eq.s32.totalorder %s11, 1
    %p92 = scmp.ne.s32.totalorder %s87, %s89
    %p93 = scmp.eq.s32.totalorder %s11, 0
    %p94 = por %p92, %p93
    %p95 = scmp.ne.s32.totalorder %s87, %s89
    %p96 = scmp.eq.s32.totalorder %s16, 1
    %p97 = por %p95, %p96
    %p98 = scmp.ne.s32.totalorder %s89, %s90
    %p99 = scmp.eq.s32.totalorder %s16, 0
    %p100 = por %p98, %p99
    %p101 = scmp.ne.s32.totalorder %s89, %s90
    %p102 = scmp.eq.s32.totalorder %s17, 1
    %p103 = por %p101, %p102
    %p105 = scmp.ne.s32.totalorder %s90, %s104
    %p106 = scmp.eq.s32.totalorder %s17, 0
    %p107 = por %p105, %p106
    %s109 = sadd.s32 %s108, 1
    %p112 = scmp.eq.s32.totalorder %s11, 1
    %p113 = scmp.ne.s32.totalorder %s108, %s110
    %p114 = scmp.eq.s32.totalorder %s11, 0
    %p115 = por %p113, %p114
    %p116 = scmp.ne.s32.totalorder %s108, %s110
    %p117 = scmp.eq.s32.totalorder %s16, 1
    %p118 = por %p116, %p117
    %p119 = scmp.ne.s32.totalorder %s110, %s111
    %p120 = scmp.eq.s32.totalorder %s16, 0
    %p121 = por %p119, %p120
    %p122 = scmp.ne.s32.totalorder %s110, %s111
    %p123 = scmp.eq.s32.totalorder %s17, 1
    %p124 = por %p122, %p123
    %p126 = scmp.ne.s32.totalorder %s111, %s125
    %p127 = scmp.eq.s32.totalorder %s17, 0
    %p128 = por %p126, %p127
    %s129 = ssub.s32 %s11, %s18
    %p130 = scmp.eq.s32.totalorder %s129, 0
    %s132 = sadd.s32 %s131, 1
    %s133 = scalar_select %p130, %s131, %s132
    %p136 = pneg %p130
    %p137 = scmp.eq.s32.totalorder %s11, 1
    %p138 = por %p136, %p137
    %p139 = scmp.ne.s32.totalorder %s131, %s134
    %p140 = scmp.eq.s32.totalorder %s11, 0
    %p141 = por %p139, %p140
    %p142 = scmp.ne.s32.totalorder %s131, %s134
    %p143 = scmp.eq.s32.totalorder %s16, 1
    %p144 = por %p142, %p143
    %p145 = scmp.ne.s32.totalorder %s134, %s135
    %p146 = scmp.eq.s32.totalorder %s16, 0
    %p147 = por %p145, %p146
    %p148 = scmp.ne.s32.totalorder %s134, %s135
    %p149 = scmp.eq.s32.totalorder %s17, 1
    %p150 = por %p148, %p149
    %p152 = scmp.ne.s32.totalorder %s135, %s151
    %p153 = scmp.eq.s32.totalorder %s17, 0
    %p154 = por %p152, %p153
    %p155 = scmp.le.s32.totalorder 1, %s11
    %p156 = scmp.lt.s32.totalorder %s11, 3
    %p157 = pnand %p155, %p156
    %p158 = pneg %p157
    // Predicated region
    $region9: #{discriminator_forward.6} parent=5 // pred_check
      _
    $region10: #{discriminator_forward.6} parent=5 // pred_check_branch
      %160 = sbr.rel (%p157) target = $region12
    $region11: #{discriminator_forward.6} parent=5 // pred_region
      %s161 = ssub.s32 %s11, 1
      // Predicated region
      $region13: #{discriminator_forward.6} parent=11 // pred_check
        %p162 = pneg %p58
      $region14: #{discriminator_forward.6} parent=11 // pred_check_branch
        %164 = sbr.rel (%p162) target = $region16
      $region15: #{discriminator_forward.6} parent=11 // pred_region
        _
      $region16: #{discriminator_forward.6} parent=11 // pred_fallthru
        _
      // Predicated region
      $region17: #{discriminator_forward.6} parent=11 // pred_check
        %p165 = pneg %p79
      $region18: #{discriminator_forward.6} parent=11 // pred_check_branch
        %167 = sbr.rel (%p165) target = $region20
      $region19: #{discriminator_forward.6} parent=11 // pred_region
        _
      $region20: #{discriminator_forward.6} parent=11 // pred_fallthru
        _
      // Predicated region
      $region21: #{discriminator_forward.6} parent=11 // pred_check
        %p168 = pneg %p100
      $region22: #{discriminator_forward.6} parent=11 // pred_check_branch
        %170 = sbr.rel (%p168) target = $region24
      $region23: #{discriminator_forward.6} parent=11 // pred_region
        _
      $region24: #{discriminator_forward.6} parent=11 // pred_fallthru
        _
      // Predicated region
      $region25: #{discriminator_forward.6} parent=11 // pred_check
        %p171 = pneg %p121
      $region26: #{discriminator_forward.6} parent=11 // pred_check_branch
        %173 = sbr.rel (%p171) target = $region28
      $region27: #{discriminator_forward.6} parent=11 // pred_region
        _
      $region28: #{discriminator_forward.6} parent=11 // pred_fallthru
        _
    $region12: #{discriminator_forward.6} parent=5 // pred_fallthru
      _
    %p174 = scmp.lt.s32.totalorder %s11, 2
    // Predicated region
    $region29: #{discriminator_forward.6} parent=5 // pred_check
      %p175 = pneg %p174
    $region30: #{discriminator_forward.6} parent=5 // pred_check_branch
      %177 = sbr.rel (%p175) target = $region32
    $region31: #{discriminator_forward.6} parent=5 // pred_region
      // Predicated region
      $region33: #{discriminator_forward.6} parent=31 // pred_check
        %p178 = pneg %p31
      $region34: #{discriminator_forward.6} parent=31 // pred_check_branch
        %180 = sbr.rel (%p178) target = $region36
      $region35: #{discriminator_forward.6} parent=31 // pred_region
        %s181 = smul.u32 8, %s11
        %p182 = scmp.lt.s32.totalorder %s181, 15
        %s183 = scalar_select %p182, %s181, 15
        %s184 = smul.addr %s183, 2
        %s185 = smul.addr %s184, 4
        %s186 = scalar_lea.vmem %s0, %s185
        %s187 = smul.u32 8, %s11
      $region36: #{discriminator_forward.6} parent=31 // pred_fallthru
        _
    $region32: #{discriminator_forward.6} parent=5 // pred_fallthru
      _
    %p188 = scmp.le.s32.totalorder 1, %s11
    %p189 = scmp.lt.s32.totalorder %s11, 3
    %p190 = pnand %p188, %p189
    %p191 = pneg %p190
    // Predicated region
    $region37: #{discriminator_forward.6} parent=5 // pred_check
      _
    $region38: #{discriminator_forward.6} parent=5 // pred_check_branch
      %193 = sbr.rel (%p190) target = $region40
    $region39: #{discriminator_forward.6} parent=5 // pred_region
      %s194 = ssub.s32 %s11, 1
      %s195 = smul.u32 8, %s16
      %p196 = scmp.lt.s32.totalorder %s195, 15
      %s197 = scalar_select %p196, %s195, 15
      %s198 = smul.addr %s197, 2
      %s199 = smul.addr %s198, 4
      %s200 = scalar_lea.vmem %s0, %s199
      %p201 = pneg %p37
      %p202 = pneg %p34
      %p203 = pneg %p58
      %p204 = pneg %p55
      %p205 = pneg %p79
      %p206 = pneg %p76
      %p207 = pneg %p100
      %p208 = pneg %p97
      %p209 = pneg %p121
      %p210 = pneg %p118
      %p211 = pneg %p147
      %p212 = pneg %p144
      %s213 = smul.u32 8, %s16
      %p214 = scmp.lt.s32.totalorder %s213, 15
      %s215 = scalar_select %p214, %s213, 15
      %s216 = smul.addr %s215, 4
      %s217 = scalar_lea.vmem %s5, %s216
      %s218 = smul.u32 8, %s16
      %p219 = scmp.lt.s32.totalorder %s218, 15
      %s220 = scalar_select %p219, %s218, 15
      %s221 = smul.addr %s220, 2
      %s222 = smul.addr %s221, 4
      %s223 = scalar_lea.vmem %s0, %s222
      %s224 = smul.u32 8, %s16
      %s225 = smul.u32 8, %s16
      %p226 = scmp.lt.s32.totalorder %s225, 15
      %s227 = scalar_select %p226, %s225, 15
      %s228 = smul.addr %s227, 4
      %s229 = scalar_lea.vmem %s5, %s228
      %s230 = smul.u32 8, %s16
      %v232 = vld [vmem:[%s223] sm:$0xff]
      %v233 = vld [vmem:[%s223 + $0x8] sm:$0xff]
      %v234 = vld [vmem:[%s223 + $0x10] sm:$0xff]
      %v235 = vld [vmem:[%s223 + $0x18] sm:$0xff]
      %v236 = vld [vmem:[%s223 + $0x20] sm:$0xff]
      %v237 = vld [vmem:[%s223 + $0x28] sm:$0xff]
      %v238 = vld [vmem:[%s223 + $0x30] sm:$0xff]
      %v239 = vld [vmem:[%s223 + $0x38] sm:$0xff]
      %v240 = vld [vmem:[%s1] sm:$0xf]
      %v241 = vld [vmem:[%s1 + $0x4] sm:$0xf]
      %v242 = vld [vmem:[%s1 + $0x8] sm:$0xf]
      %v243 = vld [vmem:[%s1 + $0xc] sm:$0xf]
      %v244 = vld [vmem:[%s1 + $0x10] sm:$0xf]
      %v245 = vld [vmem:[%s1 + $0x14] sm:$0xf]
      %v246 = vld [vmem:[%s1 + $0x18] sm:$0xf]
      %v247 = vld [vmem:[%s1 + $0x1c] sm:$0xf]
      %v248 = vld [vmem:[%s1 + $0x20] sm:$0xf]
      %v249 = vld [vmem:[%s1 + $0x24] sm:$0xf]
      %v250 = vld [vmem:[%s1 + $0x28] sm:$0xf]
      %v251 = vld [vmem:[%s1 + $0x2c] sm:$0xf]
      %v252 = vld [vmem:[%s1 + $0x30] sm:$0xf]
      %v253 = vld [vmem:[%s1 + $0x34] sm:$0xf]
      %v254 = vld [vmem:[%s1 + $0x38] sm:$0xf]
      %v255 = vld [vmem:[%s1 + $0x3c] sm:$0xf]
      %v256 = vld [vmem:[%s1 + $0x40] sm:$0xf]
      %v257 = vld [vmem:[%s1 + $0x44] sm:$0xf]
      %v258 = vld [vmem:[%s1 + $0x48] sm:$0xf]
      %v259 = vld [vmem:[%s1 + $0x4c] sm:$0xf]
      %v260 = vld [vmem:[%s1 + $0x50] sm:$0xf]
      %v261 = vld [vmem:[%s1 + $0x54] sm:$0xf]
      %v262 = vld [vmem:[%s1 + $0x58] sm:$0xf]
      %v263 = vld [vmem:[%s1 + $0x5c] sm:$0xf]
      %v264 = vld [vmem:[%s1 + $0x60] sm:$0xf]
      %v265 = vld [vmem:[%s1 + $0x64] sm:$0xf]
      %v266 = vld [vmem:[%s1 + $0x68] sm:$0xf]
      %v267 = vld [vmem:[%s1 + $0x6c] sm:$0xf]
      %v276 = vunpack.c.l.b16 %v232
      %v277 = vunpack.c.h.b16 %v232
      %v278 = vunpack.c.l.b16 %v233
      %v279 = vunpack.c.h.b16 %v233
      %v280 = vunpack.c.l.b16 %v234
      %v281 = vunpack.c.h.b16 %v234
      %v282 = vunpack.c.l.b16 %v235
      %v283 = vunpack.c.h.b16 %v235
      %v284 = vunpack.c.l.b16 %v236
      %v285 = vunpack.c.h.b16 %v236
      %v286 = vunpack.c.l.b16 %v237
      %v287 = vunpack.c.h.b16 %v237
      %v288 = vunpack.c.l.b16 %v238
      %v289 = vunpack.c.h.b16 %v238
      %v290 = vunpack.c.l.b16 %v239
      %v291 = vunpack.c.h.b16 %v239
      %v292 = vpack.c.b16 %v278, %v276
      %v293 = vpack.c.b16 %v279, %v277
      %v294 = vpack.c.b16 %v282, %v280
      %v295 = vpack.c.b16 %v283, %v281
      %v296 = vpack.c.b16 %v286, %v284
      %v297 = vpack.c.b16 %v287, %v285
      %v298 = vpack.c.b16 %v290, %v288
      %v299 = vpack.c.b16 %v291, %v289
      %v332 = vunpack.c.l.b16 %v240
      %v333 = vunpack.c.l.b16 %v241
      %v334 = vunpack.c.l.b16 %v242
      %v335 = vunpack.c.l.b16 %v243
      %v336 = vunpack.c.l.b16 %v244
      %v337 = vunpack.c.l.b16 %v245
      %v338 = vunpack.c.l.b16 %v246
      %v339 = vunpack.c.l.b16 %v247
      %v340 = vunpack.c.l.b16 %v248
      %v341 = vunpack.c.l.b16 %v249
      %v342 = vunpack.c.l.b16 %v250
      %v343 = vunpack.c.l.b16 %v251
      %v344 = vunpack.c.l.b16 %v252
      %v345 = vunpack.c.l.b16 %v253
      %v346 = vunpack.c.l.b16 %v254
      %v347 = vunpack.c.l.b16 %v255
      %v348 = vunpack.c.l.b16 %v256
      %v349 = vunpack.c.l.b16 %v257
      %v350 = vunpack.c.l.b16 %v258
      %v351 = vunpack.c.l.b16 %v259
      %v352 = vunpack.c.l.b16 %v260
      %v353 = vunpack.c.l.b16 %v261
      %v354 = vunpack.c.l.b16 %v262
      %v355 = vunpack.c.l.b16 %v263
      %v356 = vunpack.c.l.b16 %v264
      %v357 = vunpack.c.l.b16 %v265
      %v358 = vunpack.c.l.b16 %v266
      %v359 = vunpack.c.l.b16 %v267
      %v360 = vpack.c.b16 %v333, %v332
      %v361 = vpack.c.b16 %v335, %v334
      %v362 = vpack.c.b16 %v337, %v336
      %v363 = vpack.c.b16 %v339, %v338
      %v364 = vpack.c.b16 %v341, %v340
      %v365 = vpack.c.b16 %v343, %v342
      %v366 = vpack.c.b16 %v345, %v344
      %v367 = vpack.c.b16 %v347, %v346
      %v368 = vpack.c.b16 %v349, %v348
      %v369 = vpack.c.b16 %v351, %v350
      %v370 = vpack.c.b16 %v353, %v352
      %v371 = vpack.c.b16 %v355, %v354
      %v372 = vpack.c.b16 %v357, %v356
      %v373 = vpack.c.b16 %v359, %v358
      %vm388 = vcmask 785408
      %v390 = vsel %vm388, %v293, 0
      %v393 = vsel %vm388, %v295, 0
      %v396 = vsel %vm388, %v297, 0
      %v399 = vsel %vm388, %v299, 0
      %401 = vmatprep.subr.bf16.mxu0 0
      %402 = vmatpush1.bf16.msra.mxu0 %v360
      %403 = vmatprep.subr.bf16.mxu0 0
      %404 = vmatpush1.bf16.msra.mxu0 %v361
      %405 = vmatprep.subr.bf16.mxu0 0
      %406 = vmatpush1.bf16.msra.mxu0 %v362
      %407 = vmatprep.subr.bf16.mxu0 0
      %408 = vmatpush1.bf16.msra.mxu0 %v363
      %409 = vmatprep.subr.bf16.mxu0 0
      %410 = vmatpush1.bf16.msra.mxu0 %v364
      %411 = vmatprep.subr.bf16.mxu0 0
      %412 = vmatpush1.bf16.msra.mxu0 %v365
      %413 = vmatprep.subr.bf16.mxu0 0
      %414 = vmatpush1.bf16.msra.mxu0 %v366
      %415 = vmatprep.subr.bf16.mxu0 0
      %416 = vmatpush1.bf16.msra.mxu0 %v367
      %417 = vmatprep.subr.bf16.mxu0 0
      %418 = vmatpush1.bf16.msra.mxu0 %v368
      %419 = vmatprep.subr.bf16.mxu0 0
      %420 = vmatpush1.bf16.msra.mxu0 %v369
      %421 = vmatprep.subr.bf16.mxu0 0
      %422 = vmatpush1.bf16.msra.mxu0 %v370
      %423 = vmatprep.subr.bf16.mxu0 0
      %424 = vmatpush1.bf16.msra.mxu0 %v371
      %425 = vmatprep.subr.bf16.mxu0 0
      %426 = vmatpush1.bf16.msra.mxu0 %v372
      %427 = vmatprep.subr.bf16.mxu0 0
      %428 = vmatpush1.bf16.msra.mxu0 %v373
      %429 = vmatprep.subr.bf16.mxu0 0
      %430 = vmatpush1.bf16.msra.mxu0 0
      %431 = vmatprep.subr.bf16.mxu0 0
      %432 = vmatpush1.bf16.msra.mxu0 0
      %433 = vmatprep.mubr.bf16.mxu0 %v390
      %434 = vmatmul.mubr.bf16.gmra.mrb[0].mxu0 %v292
      %v435 = vpop.f32.mrb[0].mxu0
      %v436 = vadd.f32 0.0, %v435
      %v437 = vpop.f32.mrb[0].mxu0
      %v438 = vpop.f32.mrb[0].mxu0
      %v439 = vadd.f32 0.0, %v438
      %v440 = vpop.f32.mrb[0].mxu0
      %441 = vmatprep.mubr.bf16.mxu0 %v393
      %442 = vmatmul.mubr.bf16.gmra.mrb[0].mxu0 %v294
      %v443 = vpop.f32.mrb[0].mxu0
      %v444 = vadd.f32 0.0, %v443
      %v445 = vpop.f32.mrb[0].mxu0
      %v446 = vpop.f32.mrb[0].mxu0
      %v447 = vadd.f32 0.0, %v446
      %v448 = vpop.f32.mrb[0].mxu0
      %449 = vmatprep.mubr.bf16.mxu0 %v396
      %450 = vmatmul.mubr.bf16.gmra.mrb[0].mxu0 %v296
      %v451 = vpop.f32.mrb[0].mxu0
      %v452 = vadd.f32 0.0, %v451
      %v453 = vpop.f32.mrb[0].mxu0
      %v454 = vpop.f32.mrb[0].mxu0
      %v455 = vadd.f32 0.0, %v454
      %v456 = vpop.f32.mrb[0].mxu0
      %457 = vmatprep.mubr.bf16.mxu0 %v399
      %458 = vmatmul.mubr.bf16.gmra.mrb[0].mxu0 %v298
      %v459 = vpop.f32.mrb[0].mxu0
      %v460 = vadd.f32 0.0, %v459
      %v461 = vpop.f32.mrb[0].mxu0
      %v462 = vpop.f32.mrb[0].mxu0
      %v463 = vadd.f32 0.0, %v462
      %v464 = vpop.f32.mrb[0].mxu0
      %465 = vdwg.mxu0
      %v466 = vld [vmem:[%s2] sm:$0xff]
      %v467 = vld [vmem:[%s2 + $0x8] sm:$0xff]
      %v468 = vld [vmem:[%s2 + $0x10] sm:$0xff]
      %v469 = vld [vmem:[%s2 + $0x18] sm:$0xff]
      %v470 = vld [vmem:[%s2 + $0x20] sm:$0xff]
      %v471 = vld [vmem:[%s2 + $0x28] sm:$0xff]
      %v472 = vld [vmem:[%s2 + $0x30] sm:$0xff]
      %v473 = vld [vmem:[%s2 + $0x38] sm:$0xff]
      %v474 = vld [vmem:[%s2 + $0x40] sm:$0xff]
      %v475 = vld [vmem:[%s2 + $0x48] sm:$0xff]
      %v476 = vld [vmem:[%s2 + $0x50] sm:$0xff]
      %v477 = vld [vmem:[%s2 + $0x58] sm:$0xff]
      %v478 = vld [vmem:[%s2 + $0x60] sm:$0xff]
      %v479 = vld [vmem:[%s2 + $0x68] sm:$0xff]
      %v480 = vld [vmem:[%s2 + $0x70] sm:$0xff]
      %v481 = vld [vmem:[%s2 + $0x78] sm:$0xff]
      %v482 = vadd.f32 %v436, %v439
      %v483 = vrot.slane %v482, 4
      %v484 = vadd.f32 %v482, %v483
      %v485 = vrot.slane %v484, 2
      %v486 = vadd.f32 %v484, %v485
      %v487 = vrot.slane %v486, 1
      %v488 = vadd.f32 %v486, %v487
      %v489 = vadd.f32 %v444, %v447
      %v490 = vrot.slane %v489, 4
      %v491 = vadd.f32 %v489, %v490
      %v492 = vrot.slane %v491, 2
      %v493 = vadd.f32 %v491, %v492
      %v494 = vrot.slane %v493, 1
      %v495 = vadd.f32 %v493, %v494
      %v496 = vadd.f32 %v452, %v455
      %v497 = vrot.slane %v496, 4
      %v498 = vadd.f32 %v496, %v497
      %v499 = vrot.slane %v498, 2
      %v500 = vadd.f32 %v498, %v499
      %v501 = vrot.slane %v500, 1
      %v502 = vadd.f32 %v500, %v501
      %v503 = vadd.f32 %v460, %v463
      %v504 = vrot.slane %v503, 4
      %v505 = vadd.f32 %v503, %v504
      %v506 = vrot.slane %v505, 2
      %v507 = vadd.f32 %v505, %v506
      %v508 = vrot.slane %v507, 1
      %v509 = vadd.f32 %v507, %v508
      %vm514 = vcmask 1041409
      %v515 = vsel %vm514, %v495, %v488
      %vm516 = vcmask 1042434
      %v517 = vsel %vm516, %v502, %v515
      %vm518 = vcmask 1043459
      %v519 = vsel %vm518, %v509, %v517
      %521 = vmatprep.subr.mxu0 0.0
      %522 = vmatpush1.msra.mxu0 %v466
      %523 = vmatprep.subr.mxu0 0.0
      %524 = vmatpush1.msra.mxu0 %v467
      %525 = vmatprep.subr.mxu0 0.0
      %526 = vmatpush1.msra.mxu0 %v468
      %527 = vmatprep.subr.mxu0 0.0
      %528 = vmatpush1.msra.mxu0 %v469
      %529 = vmatprep.subr.mxu0 0.0
      %530 = vmatpush1.msra.mxu0 %v470
      %531 = vmatprep.subr.mxu0 0.0
      %532 = vmatpush1.msra.mxu0 %v471
      %533 = vmatprep.subr.mxu0 0.0
      %534 = vmatpush1.msra.mxu0 %v472
      %535 = vmatprep.subr.mxu0 0.0
      %536 = vmatpush1.msra.mxu0 %v473
      %537 = vmatprep.subr.mxu0 0.0
      %538 = vmatpush1.msra.mxu0 %v474
      %539 = vmatprep.subr.mxu0 0.0
      %540 = vmatpush1.msra.mxu0 %v475
      %541 = vmatprep.subr.mxu0 0.0
      %542 = vmatpush1.msra.mxu0 %v476
      %543 = vmatprep.subr.mxu0 0.0
      %544 = vmatpush1.msra.mxu0 %v477
      %545 = vmatprep.subr.mxu0 0.0
      %546 = vmatpush1.msra.mxu0 %v478
      %547 = vmatprep.subr.mxu0 0.0
      %548 = vmatpush1.msra.mxu0 %v479
      %549 = vmatprep.subr.mxu0 0.0
      %550 = vmatpush1.msra.mxu0 %v480
      %551 = vmatprep.subr.mxu0 0.0
      %552 = vmatpush1.msra.mxu0 %v481
      %553 = vmatprep.subr.mxu0 0.0
      %554 = vmatpush1.msra.mxu0 0.0
      %555 = vmatprep.subr.mxu0 0.0
      %556 = vmatpush1.msra.mxu0 0.0
      %557 = vmatprep.subr.mxu0 0.0
      %558 = vmatpush1.msra.mxu0 0.0
      %559 = vmatprep.subr.mxu0 0.0
      %560 = vmatpush1.msra.mxu0 0.0
      %561 = vmatprep.subr.mxu0 0.0
      %562 = vmatpush1.msra.mxu0 0.0
      %563 = vmatprep.subr.mxu0 0.0
      %564 = vmatpush1.msra.mxu0 0.0
      %565 = vmatprep.subr.mxu0 0.0
      %566 = vmatpush1.msra.mxu0 0.0
      %567 = vmatprep.subr.mxu0 0.0
      %568 = vmatpush1.msra.mxu0 0.0
      %569 = vmatprep.subr.mxu0 0.0
      %570 = vmatpush1.msra.mxu0 0.0
      %571 = vmatprep.subr.mxu0 0.0
      %572 = vmatpush1.msra.mxu0 0.0
      %573 = vmatprep.subr.mxu0 0.0
      %574 = vmatpush1.msra.mxu0 0.0
      %575 = vmatprep.subr.mxu0 0.0
      %576 = vmatpush1.msra.mxu0 0.0
      %577 = vmatprep.subr.mxu0 0.0
      %578 = vmatpush1.msra.mxu0 0.0
      %579 = vmatprep.subr.mxu0 0.0
      %580 = vmatpush1.msra.mxu0 0.0
      %581 = vmatprep.subr.mxu0 0.0
      %582 = vmatpush1.msra.mxu0 0.0
      %583 = vmatprep.subr.mxu0 0.0
      %584 = vmatpush1.msra.mxu0 0.0
      %585 = vmatprep.mubr.f32.mxu0 0.0
      %586 = vmatmul.mubr.f32.gmra.mrb[0].mxu0 %v519
      %v587 = vpop.f32.mrb[0].mxu0
      %v588 = vadd.f32 0.0, %v587
      %v589 = vpop.f32.mrb[0].mxu0
      %590 = vdwg.mxu0
      %v591 = vmul.f32 %v588, 0.11111111
      %v592 = vlaneseq
      %v593 = vshrl.u32 %v592, 7
      %v594 = vadd.s32 %v593, 8
      %vm595 = vcmp.lt.s32.totalorder %v593, 9
      %vm596 = vcmp.lt.s32.totalorder %v594, 9
      %v599 = vunpack.c.l.s4 1966171168
      %v600 = vunpack.c.0.s8 %v599
      %v601 = vlaneseq
      %v602 = vshrl.u32 %v601, 7
      %v603 = vsub.s32 %v600, %v602
      %v604 = vrot.slane %v591, %v603
      %v605 = vcombine.high %v604, %v604
      %v607 = vunpack.c.l.s4 1966171168
      %v608 = vunpack.c.0.s8 %v607
      %v609 = vlaneseq
      %v610 = vshrl.u32 %v609, 7
      %v611 = vsub.s32 %v608, %v610
      %v612 = vrot.slane %v604, %v611
      %v614 = vunpack.c.l.s4 1966171168
      %v615 = vunpack.c.0.s8 %v614
      %v616 = vlaneseq
      %v617 = vshrl.u32 %v616, 7
      %v618 = vsub.s32 %v615, %v617
      %v619 = vrot.slane %v605, %v618
      %v620 = vcombine.high %v612, %v612
      %v621 = vcombine.high %v619, %v619
      %v622 = vlaneseq
      %v623 = vshrl.u32 %v622, 7
      %v624 = vsub.s32 0, %v623
      %v625 = vrot.slane %v612, %v624
      %v626 = vlaneseq
      %v627 = vshrl.u32 %v626, 7
      %v628 = vsub.s32 0, %v627
      %v629 = vrot.slane %v619, %v628
      %v630 = vlaneseq
      %v631 = vshrl.u32 %v630, 7
      %v632 = vsub.s32 0, %v631
      %v633 = vrot.slane %v620, %v632
      %v634 = vlaneseq
      %v635 = vshrl.u32 %v634, 7
      %v636 = vsub.s32 0, %v635
      %v637 = vrot.slane %v621, %v636
      %v642 = vsub.f32 %v436, %v625
      %v643 = vsub.f32 %v439, %v625
      %v644 = vsub.f32 %v444, %v629
      %v645 = vsub.f32 %v447, %v629
      %v646 = vsub.f32 %v452, %v633
      %v647 = vsub.f32 %v455, %v633
      %v648 = vsub.f32 %v460, %v637
      %v649 = vsub.f32 %v463, %v637
      %v650 = vsel %vm595, 1, 0
      %v651 = vsel %vm596, 1, 0
      %vm652 = vcmp.eq.s32.totalorder %v650, 1
      %vm653 = vcmp.eq.s32.totalorder %v651, 1
      %v654 = vsel %vm652, %v642, 0.0
      %v655 = vsel %vm653, %v643, 0.0
      %v656 = vsel %vm652, %v644, 0.0
      %v657 = vsel %vm653, %v645, 0.0
      %v658 = vsel %vm652, %v646, 0.0
      %v659 = vsel %vm653, %v647, 0.0
      %v660 = vsel %vm652, %v648, 0.0
      %v661 = vsel %vm653, %v649, 0.0
      %v662 = vmul.f32 %v654, %v654
      %v663 = vmul.f32 %v655, %v655
      %v664 = vmul.f32 %v656, %v656
      %v665 = vmul.f32 %v657, %v657
      %v666 = vmul.f32 %v658, %v658
      %v667 = vmul.f32 %v659, %v659
      %v668 = vmul.f32 %v660, %v660
      %v669 = vmul.f32 %v661, %v661
      %v670 = vadd.f32 %v662, %v663
      %v671 = vrot.slane %v670, 4
      %v672 = vadd.f32 %v670, %v671
      %v673 = vrot.slane %v672, 2
      %v674 = vadd.f32 %v672, %v673
      %v675 = vrot.slane %v674, 1
      %v676 = vadd.f32 %v674, %v675
      %v677 = vadd.f32 %v664, %v665
      %v678 = vrot.slane %v677, 4
      %v679 = vadd.f32 %v677, %v678
      %v680 = vrot.slane %v679, 2
      %v681 = vadd.f32 %v679, %v680
      %v682 = vrot.slane %v681, 1
      %v683 = vadd.f32 %v681, %v682
      %v684 = vadd.f32 %v666, %v667
      %v685 = vrot.slane %v684, 4
      %v686 = vadd.f32 %v684, %v685
      %v687 = vrot.slane %v686, 2
      %v688 = vadd.f32 %v686, %v687
      %v689 = vrot.slane %v688, 1
      %v690 = vadd.f32 %v688, %v689
      %v691 = vadd.f32 %v668, %v669
      %v692 = vrot.slane %v691, 4
      %v693 = vadd.f32 %v691, %v692
      %v694 = vrot.slane %v693, 2
      %v695 = vadd.f32 %v693, %v694
      %v696 = vrot.slane %v695, 1
      %v697 = vadd.f32 %v695, %v696
      %v702 = vsel %vm514, %v683, %v676
      %v703 = vsel %vm516, %v690, %v702
      %v704 = vsel %vm518, %v697, %v703
      %706 = vmatprep.subr.mxu0 0.0
      %707 = vmatpush1.msra.mxu0 %v466
      %708 = vmatprep.subr.mxu0 0.0
      %709 = vmatpush1.msra.mxu0 %v467
      %710 = vmatprep.subr.mxu0 0.0
      %711 = vmatpush1.msra.mxu0 %v468
      %712 = vmatprep.subr.mxu0 0.0
      %713 = vmatpush1.msra.mxu0 %v469
      %714 = vmatprep.subr.mxu0 0.0
      %715 = vmatpush1.msra.mxu0 %v470
      %716 = vmatprep.subr.mxu0 0.0
      %717 = vmatpush1.msra.mxu0 %v471
      %718 = vmatprep.subr.mxu0 0.0
      %719 = vmatpush1.msra.mxu0 %v472
      %720 = vmatprep.subr.mxu0 0.0
      %721 = vmatpush1.msra.mxu0 %v473
      %722 = vmatprep.subr.mxu0 0.0
      %723 = vmatpush1.msra.mxu0 %v474
      %724 = vmatprep.subr.mxu0 0.0
      %725 = vmatpush1.msra.mxu0 %v475
      %726 = vmatprep.subr.mxu0 0.0
      %727 = vmatpush1.msra.mxu0 %v476
      %728 = vmatprep.subr.mxu0 0.0
      %729 = vmatpush1.msra.mxu0 %v477
      %730 = vmatprep.subr.mxu0 0.0
      %731 = vmatpush1.msra.mxu0 %v478
      %732 = vmatprep.subr.mxu0 0.0
      %733 = vmatpush1.msra.mxu0 %v479
      %734 = vmatprep.subr.mxu0 0.0
      %735 = vmatpush1.msra.mxu0 %v480
      %736 = vmatprep.subr.mxu0 0.0
      %737 = vmatpush1.msra.mxu0 %v481
      %738 = vmatprep.subr.mxu0 0.0
      %739 = vmatpush1.msra.mxu0 0.0
      %740 = vmatprep.subr.mxu0 0.0
      %741 = vmatpush1.msra.mxu0 0.0
      %742 = vmatprep.subr.mxu0 0.0
      %743 = vmatpush1.msra.mxu0 0.0
      %744 = vmatprep.subr.mxu0 0.0
      %745 = vmatpush1.msra.mxu0 0.0
      %746 = vmatprep.subr.mxu0 0.0
      %747 = vmatpush1.msra.mxu0 0.0
      %748 = vmatprep.subr.mxu0 0.0
      %749 = vmatpush1.msra.mxu0 0.0
      %750 = vmatprep.subr.mxu0 0.0
      %751 = vmatpush1.msra.mxu0 0.0
      %752 = vmatprep.subr.mxu0 0.0
      %753 = vmatpush1.msra.mxu0 0.0
      %754 = vmatprep.subr.mxu0 0.0
      %755 = vmatpush1.msra.mxu0 0.0
      %756 = vmatprep.subr.mxu0 0.0
      %757 = vmatpush1.msra.mxu0 0.0
      %758 = vmatprep.subr.mxu0 0.0
      %759 = vmatpush1.msra.mxu0 0.0
      %760 = vmatprep.subr.mxu0 0.0
      %761 = vmatpush1.msra.mxu0 0.0
      %762 = vmatprep.subr.mxu0 0.0
      %763 = vmatpush1.msra.mxu0 0.0
      %764 = vmatprep.subr.mxu0 0.0
      %765 = vmatpush1.msra.mxu0 0.0
      %766 = vmatprep.subr.mxu0 0.0
      %767 = vmatpush1.msra.mxu0 0.0
      %768 = vmatprep.subr.mxu0 0.0
      %769 = vmatpush1.msra.mxu0 0.0
      %770 = vmatprep.mubr.f32.mxu0 0.0
      %771 = vmatmul.mubr.f32.gmra.mrb[0].mxu0 %v704
      %v772 = vpop.f32.mrb[0].mxu0
      %v773 = vadd.f32 0.0, %v772
      %v774 = vpop.f32.mrb[0].mxu0
      %775 = vdwg.mxu0
      %v776 = vmul.f32 %v773, 0.11111111
      %v777 = vadd.f32 %v776, 1e-05
      %v778 = vrsqrt.pop %v777
      %v779 = vld [vmem:[%s3] sm:$0x1]
      %v781 = vlaneseq
      %v782 = vshrl.u32 %v781, 7
      %v783 = vsub.s32 0, %v782
      %v784 = vrot.slane %v779, %v783
      %v786 = vmul.f32 %v778, %v784
      %v789 = vunpack.c.l.s4 1966171168
      %v790 = vunpack.c.0.s8 %v789
      %v791 = vlaneseq
      %v792 = vshrl.u32 %v791, 7
      %v793 = vsub.s32 %v790, %v792
      %v794 = vrot.slane %v786, %v793
      %v795 = vcombine.high %v794, %v794
      %v797 = vunpack.c.l.s4 1966171168
      %v798 = vunpack.c.0.s8 %v797
      %v799 = vlaneseq
      %v800 = vshrl.u32 %v799, 7
      %v801 = vsub.s32 %v798, %v800
      %v802 = vrot.slane %v794, %v801
      %v804 = vunpack.c.l.s4 1966171168
      %v805 = vunpack.c.0.s8 %v804
      %v806 = vlaneseq
      %v807 = vshrl.u32 %v806, 7
      %v808 = vsub.s32 %v805, %v807
      %v809 = vrot.slane %v795, %v808
      %v810 = vcombine.high %v802, %v802
      %v811 = vcombine.high %v809, %v809
      %v812 = vlaneseq
      %v813 = vshrl.u32 %v812, 7
      %v814 = vsub.s32 0, %v813
      %v815 = vrot.slane %v802, %v814
      %v816 = vlaneseq
      %v817 = vshrl.u32 %v816, 7
      %v818 = vsub.s32 0, %v817
      %v819 = vrot.slane %v809, %v818
      %v820 = vlaneseq
      %v821 = vshrl.u32 %v820, 7
      %v822 = vsub.s32 0, %v821
      %v823 = vrot.slane %v810, %v822
      %v824 = vlaneseq
      %v825 = vshrl.u32 %v824, 7
      %v826 = vsub.s32 0, %v825
      %v827 = vrot.slane %v811, %v826
      %v832 = vmul.f32 %v654, %v815
      %v833 = vmul.f32 %v655, %v815
      %v834 = vmul.f32 %v656, %v819
      %v835 = vmul.f32 %v657, %v819
      %v836 = vmul.f32 %v658, %v823
      %v837 = vmul.f32 %v659, %v823
      %v838 = vmul.f32 %v660, %v827
      %v839 = vmul.f32 %v661, %v827
      %v840 = vld [vmem:[%s4] sm:$0x1]
      %v842 = vlaneseq
      %v843 = vshrl.u32 %v842, 7
      %v844 = vsub.s32 0, %v843
      %v845 = vrot.slane %v840, %v844
      %v847 = vadd.f32 %v832, %v845
      %v848 = vadd.f32 %v833, %v845
      %v849 = vadd.f32 %v834, %v845
      %v850 = vadd.f32 %v835, %v845
      %v851 = vadd.f32 %v836, %v845
      %v852 = vadd.f32 %v837, %v845
      %v853 = vadd.f32 %v838, %v845
      %v854 = vadd.f32 %v839, %v845
      %vm855 = vcmp.gt.f32.partialorder %v847, 0.0
      %vm856 = vcmp.gt.f32.partialorder %v848, 0.0
      %vm857 = vcmp.gt.f32.partialorder %v849, 0.0
      %vm858 = vcmp.gt.f32.partialorder %v850, 0.0
      %vm859 = vcmp.gt.f32.partialorder %v851, 0.0
      %vm860 = vcmp.gt.f32.partialorder %v852, 0.0
      %vm861 = vcmp.gt.f32.partialorder %v853, 0.0
      %vm862 = vcmp.gt.f32.partialorder %v854, 0.0
      %v863 = vmul.f32 %v847, 0.2
      %v864 = vmul.f32 %v848, 0.2
      %v865 = vmul.f32 %v849, 0.2
      %v866 = vmul.f32 %v850, 0.2
      %v867 = vmul.f32 %v851, 0.2
      %v868 = vmul.f32 %v852, 0.2
      %v869 = vmul.f32 %v853, 0.2
      %v870 = vmul.f32 %v854, 0.2
      %v871 = vsel %vm855, %v847, %v863
      %v872 = vsel %vm856, %v848, %v864
      %v873 = vsel %vm857, %v849, %v865
      %v874 = vsel %vm858, %v850, %v866
      %v875 = vsel %vm859, %v851, %v867
      %v876 = vsel %vm860, %v852, %v868
      %v877 = vsel %vm861, %v853, %v869
      %v878 = vsel %vm862, %v854, %v870
      %v879 = vpack.c.bf16 %v872, %v871
      %v880 = vpack.c.bf16 %v874, %v873
      %v881 = vpack.c.bf16 %v876, %v875
      %v882 = vpack.c.bf16 %v878, %v877
      %v887 = vunpack.c.l.b16 %v879
      %v888 = vunpack.c.h.b16 %v879
      %v889 = vunpack.c.l.b16 %v880
      %v890 = vunpack.c.h.b16 %v880
      %v891 = vunpack.c.l.b16 %v881
      %v892 = vunpack.c.h.b16 %v881
      %v893 = vunpack.c.l.b16 %v882
      %v894 = vunpack.c.h.b16 %v882
      %v895 = vpack.c.b16 %v887, %v887
      %v896 = vpack.c.b16 %v888, %v888
      %v897 = vpack.c.b16 %v889, %v889
      %v898 = vpack.c.b16 %v890, %v890
      %v899 = vpack.c.b16 %v891, %v891
      %v900 = vpack.c.b16 %v892, %v892
      %v901 = vpack.c.b16 %v893, %v893
      %v902 = vpack.c.b16 %v894, %v894
      %911 = vst [vmem:[%s229] sm:$0xf] %v895
      %912 = vst [vmem:[%s229 + $0x4] sm:$0xf] %v896
      %913 = vst [vmem:[%s229 + $0x8] sm:$0xf] %v897
      %914 = vst [vmem:[%s229 + $0xc] sm:$0xf] %v898
      %915 = vst [vmem:[%s229 + $0x10] sm:$0xf] %v899
      %916 = vst [vmem:[%s229 + $0x14] sm:$0xf] %v900
      %917 = vst [vmem:[%s229 + $0x18] sm:$0xf] %v901
      %918 = vst [vmem:[%s229 + $0x1c] sm:$0xf] %v902
      %s919 = smul.u32 8, %s16
      %p920 = scmp.lt.s32.totalorder %s919, 15
      %s921 = scalar_select %p920, %s919, 15
      %s922 = smul.addr %s921, 4
      %s923 = scalar_lea.vmem %s5, %s922
      // Predicated region
      $region41: #{discriminator_forward.6} parent=39 // pred_check
        %p924 = pneg %p144
      $region42: #{discriminator_forward.6} parent=39 // pred_check_branch
        %926 = sbr.rel (%p924) target = $region44
      $region43: #{discriminator_forward.6} parent=39 // pred_region
        %s927 = smul.u32 8, %s16
      $region44: #{discriminator_forward.6} parent=39 // pred_fallthru
        _
    $region40: #{discriminator_forward.6} parent=5 // pred_fallthru
      _
    %p928 = scmp.le.s32.totalorder 2, %s11
    // Predicated region
    $region45: #{discriminator_forward.6} parent=5 // pred_check
      %p929 = pneg %p928
    $region46: #{discriminator_forward.6} parent=5 // pred_check_branch
      %931 = sbr.rel (%p929) target = $region48
    $region47: #{discriminator_forward.6} parent=5 // pred_region
      %s932 = ssub.s32 %s11, 2
      // Predicated region
      $region49: #{discriminator_forward.6} parent=47 // pred_check
        %p933 = pneg %p150
      $region50: #{discriminator_forward.6} parent=47 // pred_check_branch
        %935 = sbr.rel (%p933) target = $region52
      $region51: #{discriminator_forward.6} parent=47 // pred_region
        %s936 = smul.u32 8, %s17
        %p937 = scmp.lt.s32.totalorder %s936, 15
        %s938 = scalar_select %p937, %s936, 15
        %s939 = smul.addr %s938, 4
        %s940 = scalar_lea.vmem %s5, %s939
      $region52: #{discriminator_forward.6} parent=47 // pred_fallthru
        _
    $region48: #{discriminator_forward.6} parent=5 // pred_fallthru
      _
  $region6: #{discriminator_forward.6} parent=0 // loop_footer
    %s15 = sadd.s32 1, %s11
  $region7: #{discriminator_forward.6} parent=0 // loop_footer_branch
    %10 = sbr.rel target = $region3
  $region8: #{discriminator_forward.6} parent=0 // loop_exit
    _

// kernel: discriminator_forward.7
$region0: #{discriminator_forward.7}
  #allocation0 [shape = 'u32[]', space=smem, size = 0x4, offset = 0x4, fixed_abs, tag = 'smem constant byte address 0x4 - core index']
  #allocation1 [shape = 'u32[144,128]{1,0:T(1,128)}', space=vmem, size = 0x12000, scoped, tag = 'internal scratch']
  %s0 = inlined_call_operand.vmem [shape: bf16[64,448], index: 0, kind: input, shape index: {}]
  %s1 = inlined_call_operand.vmem [shape: bf16[448,128], index: 1, kind: input, shape index: {}]
  %s2 = inlined_call_operand.vmem [shape: f32[64,128], index: 2, kind: output, shape index: {}]
  %s3 = sld [smem:[#allocation0]]
  $region41: #{discriminator_forward.7} parent=0
    _
  %s5 = ssub.s32 1, %s3
  %s6 = scalar_select 0, %s5, %s3
  loop: start=0, step=1, limit=4
  $region2: #{discriminator_forward.7} parent=0 // loop_pre_header
    _
  $region3: #{discriminator_forward.7} parent=0 // loop_header
    %s8 = sphi 0, %s12
    %p9 = scmp.ge.s32.totalorder %s8, 4
    %s18 = sphi 0, %s20
    %s21 = sphi 0, %s18
    %s22 = sphi 0, %s21
    %s38 = sphi 0, %s22
    %s42 = sphi 0, %s42
    %s44 = sphi 0, %s42
    %s45 = sphi 0, %s44
    %s59 = sphi 0, %s45
    %s65 = sphi 0, %s67
    %s68 = sphi 0, %s65
    %s69 = sphi 0, %s68
    %s85 = sphi 0, %s69
  $region4: #{discriminator_forward.7} parent=0 // loop_header_branch
    %11 = sbr.rel (%p9) target = $region8
  $region5: #{discriminator_forward.7} parent=0 // loop_body
    %s13 = ssub.s32 %s8, 1
    %s14 = ssub.s32 %s8, 2
    %s15 = sadd.s32 %s8, 1
    %s16 = ssub.s32 %s8, %s15
    %p17 = scmp.eq.s32.totalorder %s16, 0
    %s19 = sadd.s32 %s18, 1
    %s20 = scalar_select %p17, %s18, %s19
    %p23 = pneg %p17
    %p24 = scmp.eq.s32.totalorder %s8, 1
    %p25 = por %p23, %p24
    %p26 = scmp.ne.s32.totalorder %s18, %s21
    %p27 = scmp.eq.s32.totalorder %s8, 0
    %p28 = por %p26, %p27
    %p29 = scmp.ne.s32.totalorder %s18, %s21
    %p30 = scmp.eq.s32.totalorder %s13, 1
    %p31 = por %p29, %p30
    %p32 = scmp.ne.s32.totalorder %s21, %s22
    %p33 = scmp.eq.s32.totalorder %s13, 0
    %p34 = por %p32, %p33
    %p35 = scmp.ne.s32.totalorder %s21, %s22
    %p36 = scmp.eq.s32.totalorder %s14, 1
    %p37 = por %p35, %p36
    %p39 = scmp.ne.s32.totalorder %s22, %s38
    %p40 = scmp.eq.s32.totalorder %s14, 0
    %p41 = por %p39, %p40
    %s43 = sadd.s32 %s42, 1
    %p46 = scmp.eq.s32.totalorder %s8, 1
    %p47 = scmp.ne.s32.totalorder %s42, %s44
    %p48 = scmp.eq.s32.totalorder %s8, 0
    %p49 = por %p47, %p48
    %p50 = scmp.ne.s32.totalorder %s42, %s44
    %p51 = scmp.eq.s32.totalorder %s13, 1
    %p52 = por %p50, %p51
    %p53 = scmp.ne.s32.totalorder %s44, %s45
    %p54 = scmp.eq.s32.totalorder %s13, 0
    %p55 = por %p53, %p54
    %p56 = scmp.ne.s32.totalorder %s44, %s45
    %p57 = scmp.eq.s32.totalorder %s14, 1
    %p58 = por %p56, %p57
    %p60 = scmp.ne.s32.totalorder %s45, %s59
    %p61 = scmp.eq.s32.totalorder %s14, 0
    %p62 = por %p60, %p61
    %s63 = ssub.s32 %s8, %s15
    %p64 = scmp.eq.s32.totalorder %s63, 0
    %s66 = sadd.s32 %s65, 1
    %s67 = scalar_select %p64, %s65, %s66
    %p70 = pneg %p64
    %p71 = scmp.eq.s32.totalorder %s8, 1
    %p72 = por %p70, %p71
    %p73 = scmp.ne.s32.totalorder %s65, %s68
    %p74 = scmp.eq.s32.totalorder %s8, 0
    %p75 = por %p73, %p74
    %p76 = scmp.ne.s32.totalorder %s65, %s68
    %p77 = scmp.eq.s32.totalorder %s13, 1
    %p78 = por %p76, %p77
    %p79 = scmp.ne.s32.totalorder %s68, %s69
    %p80 = scmp.eq.s32.totalorder %s13, 0
    %p81 = por %p79, %p80
    %p82 = scmp.ne.s32.totalorder %s68, %s69
    %p83 = scmp.eq.s32.totalorder %s14, 1
    %p84 = por %p82, %p83
    %p86 = scmp.ne.s32.totalorder %s69, %s85
    %p87 = scmp.eq.s32.totalorder %s14, 0
    %p88 = por %p86, %p87
    %p89 = scmp.le.s32.totalorder 1, %s8
    %p90 = scmp.lt.s32.totalorder %s8, 3
    %p91 = pnand %p89, %p90
    %p92 = pneg %p91
    // Predicated region
    $region9: #{discriminator_forward.7} parent=5 // pred_check
      _
    $region10: #{discriminator_forward.7} parent=5 // pred_check_branch
      %94 = sbr.rel (%p91) target = $region12
    $region11: #{discriminator_forward.7} parent=5 // pred_region
      %s95 = ssub.s32 %s8, 1
      // Predicated region
      $region13: #{discriminator_forward.7} parent=11 // pred_check
        %p96 = pneg %p55
      $region14: #{discriminator_forward.7} parent=11 // pred_check_branch
        %98 = sbr.rel (%p96) target = $region16
      $region15: #{discriminator_forward.7} parent=11 // pred_region
        _
      $region16: #{discriminator_forward.7} parent=11 // pred_fallthru
        _
    $region12: #{discriminator_forward.7} parent=5 // pred_fallthru
      _
    %p99 = scmp.lt.s32.totalorder %s8, 2
    // Predicated region
    $region17: #{discriminator_forward.7} parent=5 // pred_check
      %p100 = pneg %p99
    $region18: #{discriminator_forward.7} parent=5 // pred_check_branch
      %102 = sbr.rel (%p100) target = $region20
    $region19: #{discriminator_forward.7} parent=5 // pred_region
      // Predicated region
      $region21: #{discriminator_forward.7} parent=19 // pred_check
        %p103 = pneg %p28
      $region22: #{discriminator_forward.7} parent=19 // pred_check_branch
        %105 = sbr.rel (%p103) target = $region24
      $region23: #{discriminator_forward.7} parent=19 // pred_region
        %s106 = smul.u32 4, %s8
        %p107 = scmp.lt.s32.totalorder %s106, 7
        %s108 = scalar_select %p107, %s106, 7
        %s109 = smul.addr %s108, 4
        %s110 = smul.addr %s109, 4
        %s111 = scalar_lea.vmem %s0, %s110
        %s112 = smul.u32 4, %s8
      $region24: #{discriminator_forward.7} parent=19 // pred_fallthru
        _
    $region20: #{discriminator_forward.7} parent=5 // pred_fallthru
      _
    %p113 = scmp.le.s32.totalorder 1, %s8
    %p114 = scmp.lt.s32.totalorder %s8, 3
    %p115 = pnand %p113, %p114
    %p116 = pneg %p115
    // Predicated region
    $region25: #{discriminator_forward.7} parent=5 // pred_check
      _
    $region26: #{discriminator_forward.7} parent=5 // pred_check_branch
      %118 = sbr.rel (%p115) target = $region28
    $region27: #{discriminator_forward.7} parent=5 // pred_region
      %s119 = ssub.s32 %s8, 1
      %s120 = smul.u32 4, %s13
      %p121 = scmp.lt.s32.totalorder %s120, 7
      %s122 = scalar_select %p121, %s120, 7
      %s123 = smul.addr %s122, 4
      %s124 = smul.addr %s123, 4
      %s125 = scalar_lea.vmem %s0, %s124
      %p126 = pneg %p34
      %p127 = pneg %p31
      %p128 = pneg %p55
      %p129 = pneg %p52
      %p130 = pneg %p81
      %p131 = pneg %p78
      %s132 = smul.u32 4, %s13
      %p133 = scmp.lt.s32.totalorder %s132, 7
      %s134 = scalar_select %p133, %s132, 7
      %s135 = smul.addr %s134, 8
      %s136 = scalar_lea.vmem %s2, %s135
      %s137 = smul.u32 4, %s13
      %p138 = scmp.lt.s32.totalorder %s137, 7
      %s139 = scalar_select %p138, %s137, 7
      %s140 = smul.addr %s139, 4
      %s141 = smul.addr %s140, 4
      %s142 = scalar_lea.vmem %s0, %s141
      %s143 = smul.u32 4, %s13
      %s144 = smul.u32 4, %s13
      %p145 = scmp.lt.s32.totalorder %s144, 7
      %s146 = scalar_select %p145, %s144, 7
      %s147 = smul.addr %s146, 8
      %s148 = scalar_lea.vmem %s2, %s147
      %s149 = smul.u32 4, %s13
      %v151 = vld [vmem:[%s142] sm:$0xff]
      %v152 = vld [vmem:[%s142 + $0x8] sm:$0xff]
      %v153 = vld [vmem:[%s142 + $0x10] sm:$0xff]
      %v154 = vld [vmem:[%s142 + $0x18] sm:$0xff]
      %v155 = vld [vmem:[%s142 + $0x20] sm:$0xff]
      %v156 = vld [vmem:[%s142 + $0x28] sm:$0xff]
      %v157 = vld [vmem:[%s142 + $0x30] sm:$0xff]
      %v158 = vld [vmem:[%s142 + $0x38] sm:$0xff]
      %v159 = vld [vmem:[%s1] sm:$0xf]
      %v160 = vld [vmem:[%s1 + $0x4] sm:$0xf]
      %v161 = vld [vmem:[%s1 + $0x8] sm:$0xf]
      %v162 = vld [vmem:[%s1 + $0xc] sm:$0xf]
      %v163 = vld [vmem:[%s1 + $0x10] sm:$0xf]
      %v164 = vld [vmem:[%s1 + $0x14] sm:$0xf]
      %v165 = vld [vmem:[%s1 + $0x18] sm:$0xf]
      %v166 = vld [vmem:[%s1 + $0x1c] sm:$0xf]
      %v167 = vld [vmem:[%s1 + $0x20] sm:$0xf]
      %v168 = vld [vmem:[%s1 + $0x24] sm:$0xf]
      %v169 = vld [vmem:[%s1 + $0x28] sm:$0xf]
      %v170 = vld [vmem:[%s1 + $0x2c] sm:$0xf]
      %v171 = vld [vmem:[%s1 + $0x30] sm:$0xf]
      %v172 = vld [vmem:[%s1 + $0x34] sm:$0xf]
      %v173 = vld [vmem:[%s1 + $0x38] sm:$0xf]
      %v174 = vld [vmem:[%s1 + $0x3c] sm:$0xf]
      %v175 = vld [vmem:[%s1 + $0x40] sm:$0xf]
      %v176 = vld [vmem:[%s1 + $0x44] sm:$0xf]
      %v177 = vld [vmem:[%s1 + $0x48] sm:$0xf]
      %v178 = vld [vmem:[%s1 + $0x4c] sm:$0xf]
      %v179 = vld [vmem:[%s1 + $0x50] sm:$0xf]
      %v180 = vld [vmem:[%s1 + $0x54] sm:$0xf]
      %v181 = vld [vmem:[%s1 + $0x58] sm:$0xf]
      %v182 = vld [vmem:[%s1 + $0x5c] sm:$0xf]
      %v183 = vld [vmem:[%s1 + $0x60] sm:$0xf]
      %v184 = vld [vmem:[%s1 + $0x64] sm:$0xf]
      %v185 = vld [vmem:[%s1 + $0x68] sm:$0xf]
      %v186 = vld [vmem:[%s1 + $0x6c] sm:$0xf]
      %v187 = vld [vmem:[%s1 + $0x70] sm:$0xf]
      %v188 = vld [vmem:[%s1 + $0x74] sm:$0xf]
      %v189 = vld [vmem:[%s1 + $0x78] sm:$0xf]
      %v190 = vld [vmem:[%s1 + $0x7c] sm:$0xf]
      %v191 = vld [vmem:[%s1 + $0x80] sm:$0xf]
      %v192 = vld [vmem:[%s1 + $0x84] sm:$0xf]
      %v193 = vld [vmem:[%s1 + $0x88] sm:$0xf]
      %v194 = vld [vmem:[%s1 + $0x8c] sm:$0xf]
      %v195 = vld [vmem:[%s1 + $0x90] sm:$0xf]
      %v196 = vld [vmem:[%s1 + $0x94] sm:$0xf]
      %v197 = vld [vmem:[%s1 + $0x98] sm:$0xf]
      %v198 = vld [vmem:[%s1 + $0x9c] sm:$0xf]
      %v199 = vld [vmem:[%s1 + $0xa0] sm:$0xf]
      %v200 = vld [vmem:[%s1 + $0xa4] sm:$0xf]
      %v201 = vld [vmem:[%s1 + $0xa8] sm:$0xf]
      %v202 = vld [vmem:[%s1 + $0xac] sm:$0xf]
      %v203 = vld [vmem:[%s1 + $0xb0] sm:$0xf]
      %v204 = vld [vmem:[%s1 + $0xb4] sm:$0xf]
      %v205 = vld [vmem:[%s1 + $0xb8] sm:$0xf]
      %v206 = vld [vmem:[%s1 + $0xbc] sm:$0xf]
      %v207 = vld [vmem:[%s1 + $0xc0] sm:$0xf]
      %v208 = vld [vmem:[%s1 + $0xc4] sm:$0xf]
      %v209 = vld [vmem:[%s1 + $0xc8] sm:$0xf]
      %v210 = vld [vmem:[%s1 + $0xcc] sm:$0xf]
      %v211 = vld [vmem:[%s1 + $0xd0] sm:$0xf]
      %v212 = vld [vmem:[%s1 + $0xd4] sm:$0xf]
      %v213 = vld [vmem:[%s1 + $0xd8] sm:$0xf]
      %v214 = vld [vmem:[%s1 + $0xdc] sm:$0xf]
      %v223 = vunpack.c.l.b16 %v151
      %v224 = vunpack.c.h.b16 %v151
      %v225 = vunpack.c.l.b16 %v152
      %v226 = vunpack.c.h.b16 %v152
      %v227 = vunpack.c.l.b16 %v153
      %v228 = vunpack.c.h.b16 %v153
      %v229 = vunpack.c.l.b16 %v154
      %v230 = vunpack.c.h.b16 %v154
      %v231 = vunpack.c.l.b16 %v155
      %v232 = vunpack.c.h.b16 %v155
      %v233 = vunpack.c.l.b16 %v156
      %v234 = vunpack.c.h.b16 %v156
      %v235 = vunpack.c.l.b16 %v157
      %v236 = vunpack.c.h.b16 %v157
      %v237 = vunpack.c.l.b16 %v158
      %v238 = vunpack.c.h.b16 %v158
      %v239 = vpack.c.b16 %v227, %v223
      %v240 = vpack.c.b16 %v228, %v224
      %v241 = vpack.c.b16 %v229, %v225
      %v242 = vpack.c.b16 %v230, %v226
      %v243 = vpack.c.b16 %v235, %v231
      %v244 = vpack.c.b16 %v236, %v232
      %v245 = vpack.c.b16 %v237, %v233
      %v246 = vpack.c.b16 %v238, %v234
      %v309 = vunpack.c.l.b16 %v159
      %v310 = vunpack.c.l.b16 %v160
      %v311 = vunpack.c.l.b16 %v161
      %v312 = vunpack.c.l.b16 %v162
      %v313 = vunpack.c.l.b16 %v163
      %v314 = vunpack.c.l.b16 %v164
      %v315 = vunpack.c.l.b16 %v165
      %v316 = vunpack.c.l.b16 %v166
      %v317 = vunpack.c.l.b16 %v167
      %v318 = vunpack.c.l.b16 %v168
      %v319 = vunpack.c.l.b16 %v169
      %v320 = vunpack.c.l.b16 %v170
      %v321 = vunpack.c.l.b16 %v171
      %v322 = vunpack.c.l.b16 %v172
      %v323 = vunpack.c.l.b16 %v173
      %v324 = vunpack.c.l.b16 %v174
      %v325 = vunpack.c.l.b16 %v175
      %v326 = vunpack.c.l.b16 %v176
      %v327 = vunpack.c.l.b16 %v177
      %v328 = vunpack.c.l.b16 %v178
      %v329 = vunpack.c.l.b16 %v179
      %v330 = vunpack.c.l.b16 %v180
      %v331 = vunpack.c.l.b16 %v181
      %v332 = vunpack.c.l.b16 %v182
      %v333 = vunpack.c.l.b16 %v183
      %v334 = vunpack.c.l.b16 %v184
      %v335 = vunpack.c.l.b16 %v185
      %v336 = vunpack.c.l.b16 %v186
      %v337 = vunpack.c.l.b16 %v187
      %v338 = vunpack.c.l.b16 %v188
      %v339 = vunpack.c.l.b16 %v189
      %v340 = vunpack.c.l.b16 %v190
      %v341 = vunpack.c.l.b16 %v191
      %v342 = vunpack.c.l.b16 %v192
      %v343 = vunpack.c.l.b16 %v193
      %v344 = vunpack.c.l.b16 %v194
      %v345 = vunpack.c.l.b16 %v195
      %v346 = vunpack.c.l.b16 %v196
      %v347 = vunpack.c.l.b16 %v197
      %v348 = vunpack.c.l.b16 %v198
      %v349 = vunpack.c.l.b16 %v199
      %v350 = vunpack.c.l.b16 %v200
      %v351 = vunpack.c.l.b16 %v201
      %v352 = vunpack.c.l.b16 %v202
      %v353 = vunpack.c.l.b16 %v203
      %v354 = vunpack.c.l.b16 %v204
      %v355 = vunpack.c.l.b16 %v205
      %v356 = vunpack.c.l.b16 %v206
      %v357 = vunpack.c.l.b16 %v207
      %v358 = vunpack.c.l.b16 %v208
      %v359 = vunpack.c.l.b16 %v209
      %v360 = vunpack.c.l.b16 %v210
      %v361 = vunpack.c.l.b16 %v211
      %v362 = vunpack.c.l.b16 %v212
      %v363 = vunpack.c.l.b16 %v213
      %v364 = vunpack.c.l.b16 %v214
      %v365 = vpack.c.b16 %v310, %v309
      %v366 = vpack.c.b16 %v312, %v311
      %v367 = vpack.c.b16 %v314, %v313
      %v368 = vpack.c.b16 %v316, %v315
      %v369 = vpack.c.b16 %v318, %v317
      %v370 = vpack.c.b16 %v320, %v319
      %v371 = vpack.c.b16 %v322, %v321
      %v372 = vpack.c.b16 %v324, %v323
      %v373 = vpack.c.b16 %v326, %v325
      %v374 = vpack.c.b16 %v328, %v327
      %v375 = vpack.c.b16 %v330, %v329
      %v376 = vpack.c.b16 %v332, %v331
      %v377 = vpack.c.b16 %v334, %v333
      %v378 = vpack.c.b16 %v336, %v335
      %v379 = vpack.c.b16 %v338, %v337
      %v380 = vpack.c.b16 %v340, %v339
      %v381 = vpack.c.b16 %v342, %v341
      %v382 = vpack.c.b16 %v344, %v343
      %v383 = vpack.c.b16 %v346, %v345
      %v384 = vpack.c.b16 %v348, %v347
      %v385 = vpack.c.b16 %v350, %v349
      %v386 = vpack.c.b16 %v352, %v351
      %v387 = vpack.c.b16 %v354, %v353
      %v388 = vpack.c.b16 %v356, %v355
      %v389 = vpack.c.b16 %v358, %v357
      %v390 = vpack.c.b16 %v360, %v359
      %v391 = vpack.c.b16 %v362, %v361
      %v392 = vpack.c.b16 %v364, %v363
      %vm421 = vcmask 523264
      %v423 = vsel %vm421, %v242, 0
      %v426 = vsel %vm421, %v246, 0
      %428 = vmatprep.subr.bf16.mxu0 0
      %429 = vmatpush1.bf16.msra.mxu0 %v365
      %430 = vmatprep.subr.bf16.mxu0 0
      %431 = vmatpush1.bf16.msra.mxu0 %v366
      %432 = vmatprep.subr.bf16.mxu0 0
      %433 = vmatpush1.bf16.msra.mxu0 %v367
      %434 = vmatprep.subr.bf16.mxu0 0
      %435 = vmatpush1.bf16.msra.mxu0 %v368
      %436 = vmatprep.subr.bf16.mxu0 0
      %437 = vmatpush1.bf16.msra.mxu0 %v369
      %438 = vmatprep.subr.bf16.mxu0 0
      %439 = vmatpush1.bf16.msra.mxu0 %v370
      %440 = vmatprep.subr.bf16.mxu0 0
      %441 = vmatpush1.bf16.msra.mxu0 %v371
      %442 = vmatprep.subr.bf16.mxu0 0
      %443 = vmatpush1.bf16.msra.mxu0 %v372
      %444 = vmatprep.subr.bf16.mxu0 0
      %445 = vmatpush1.bf16.msra.mxu0 %v373
      %446 = vmatprep.subr.bf16.mxu0 0
      %447 = vmatpush1.bf16.msra.mxu0 %v374
      %448 = vmatprep.subr.bf16.mxu0 0
      %449 = vmatpush1.bf16.msra.mxu0 %v375
      %450 = vmatprep.subr.bf16.mxu0 0
      %451 = vmatpush1.bf16.msra.mxu0 %v376
      %452 = vmatprep.subr.bf16.mxu0 0
      %453 = vmatpush1.bf16.msra.mxu0 %v377
      %454 = vmatprep.subr.bf16.mxu0 0
      %455 = vmatpush1.bf16.msra.mxu0 %v378
      %456 = vmatprep.subr.bf16.mxu0 0
      %457 = vmatpush1.bf16.msra.mxu0 %v379
      %458 = vmatprep.subr.bf16.mxu0 0
      %459 = vmatpush1.bf16.msra.mxu0 %v380
      %460 = vmatprep.mubr.bf16.mxu0 %v240
      %461 = vmatmul.mubr.bf16.gmra.mrb[0].mxu0 %v239
      %v462 = vpop.f32.mrb[0].mxu0
      %v463 = vadd.f32 0.0, %v462
      %v464 = vpop.f32.mrb[0].mxu0
      %v465 = vpop.f32.mrb[0].mxu0
      %v466 = vadd.f32 0.0, %v465
      %v467 = vpop.f32.mrb[0].mxu0
      %468 = vmatprep.mubr.bf16.mxu0 %v244
      %469 = vmatmul.mubr.bf16.gmra.mrb[0].mxu0 %v243
      %v470 = vpop.f32.mrb[0].mxu0
      %v471 = vadd.f32 0.0, %v470
      %v472 = vpop.f32.mrb[0].mxu0
      %v473 = vpop.f32.mrb[0].mxu0
      %v474 = vadd.f32 0.0, %v473
      %v475 = vpop.f32.mrb[0].mxu0
      %476 = vdwg.mxu0
      %477 = vmatprep.subr.bf16.mxu0 0
      %478 = vmatpush1.bf16.msra.mxu0 %v381
      %479 = vmatprep.subr.bf16.mxu0 0
      %480 = vmatpush1.bf16.msra.mxu0 %v382
      %481 = vmatprep.subr.bf16.mxu0 0
      %482 = vmatpush1.bf16.msra.mxu0 %v383
      %483 = vmatprep.subr.bf16.mxu0 0
      %484 = vmatpush1.bf16.msra.mxu0 %v384
      %485 = vmatprep.subr.bf16.mxu0 0
      %486 = vmatpush1.bf16.msra.mxu0 %v385
      %487 = vmatprep.subr.bf16.mxu0 0
      %488 = vmatpush1.bf16.msra.mxu0 %v386
      %489 = vmatprep.subr.bf16.mxu0 0
      %490 = vmatpush1.bf16.msra.mxu0 %v387
      %491 = vmatprep.subr.bf16.mxu0 0
      %492 = vmatpush1.bf16.msra.mxu0 %v388
      %493 = vmatprep.subr.bf16.mxu0 0
      %494 = vmatpush1.bf16.msra.mxu0 %v389
      %495 = vmatprep.subr.bf16.mxu0 0
      %496 = vmatpush1.bf16.msra.mxu0 %v390
      %497 = vmatprep.subr.bf16.mxu0 0
      %498 = vmatpush1.bf16.msra.mxu0 %v391
      %499 = vmatprep.subr.bf16.mxu0 0
      %500 = vmatpush1.bf16.msra.mxu0 %v392
      %501 = vmatprep.subr.bf16.mxu0 0
      %502 = vmatpush1.bf16.msra.mxu0 0
      %503 = vmatprep.subr.bf16.mxu0 0
      %504 = vmatpush1.bf16.msra.mxu0 0
      %505 = vmatprep.subr.bf16.mxu0 0
      %506 = vmatpush1.bf16.msra.mxu0 0
      %507 = vmatprep.subr.bf16.mxu0 0
      %508 = vmatpush1.bf16.msra.mxu0 0
      %509 = vmatprep.mubr.bf16.mxu0 %v423
      %510 = vmatmul.mubr.bf16.gmra.mrb[0].mxu0 %v241
      %v511 = vpop.f32.mrb[0].mxu0
      %v512 = vadd.f32 %v463, %v511
      %v513 = vpop.f32.mrb[0].mxu0
      %v514 = vpop.f32.mrb[0].mxu0
      %v515 = vadd.f32 %v466, %v514
      %v516 = vpop.f32.mrb[0].mxu0
      %517 = vmatprep.mubr.bf16.mxu0 %v426
      %518 = vmatmul.mubr.bf16.gmra.mrb[0].mxu0 %v245
      %v519 = vpop.f32.mrb[0].mxu0
      %v520 = vadd.f32 %v471, %v519
      %v521 = vpop.f32.mrb[0].mxu0
      %v522 = vpop.f32.mrb[0].mxu0
      %v523 = vadd.f32 %v474, %v522
      %v524 = vpop.f32.mrb[0].mxu0
      %525 = vdwg.mxu0
      %v526 = vand.u32 2147483647, %v512
      %v527 = vand.u32 2147483647, %v515
      %v528 = vand.u32 2147483647, %v520
      %v529 = vand.u32 2147483647, %v523
      %v530 = vsub.f32 0.0, %v526
      %v531 = vsub.f32 0.0, %v527
      %v532 = vsub.f32 0.0, %v528
      %v533 = vsub.f32 0.0, %v529
      %v534 = vmul.f32 %v530, 1.442695
      %v535 = vpow.pop %v534
      %v536 = vmul.f32 %v531, 1.442695
      %v537 = vpow.pop %v536
      %v538 = vmul.f32 %v532, 1.442695
      %v539 = vpow.pop %v538
      %v540 = vmul.f32 %v533, 1.442695
      %v541 = vpow.pop %v540
      %v542 = vadd.f32 %v535, 1.0
      %v543 = vadd.f32 %v537, 1.0
      %v544 = vadd.f32 %v539, 1.0
      %v545 = vadd.f32 %v541, 1.0
      %v546 = vrcp.pop %v542
      %v547 = vmul.f32 1.0, %v546
      %v548 = vrcp.pop %v543
      %v549 = vmul.f32 1.0, %v548
      %v550 = vrcp.pop %v544
      %v551 = vmul.f32 1.0, %v550
      %v552 = vrcp.pop %v545
      %v553 = vmul.f32 1.0, %v552
      %vm554 = vcmp.ge.f32.partialorder %v512, 0.0
      %vm555 = vcmp.ge.f32.partialorder %v515, 0.0
      %vm556 = vcmp.ge.f32.partialorder %v520, 0.0
      %vm557 = vcmp.ge.f32.partialorder %v523, 0.0
      %v558 = vmul.f32 %v535, %v547
      %v559 = vmul.f32 %v537, %v549
      %v560 = vmul.f32 %v539, %v551
      %v561 = vmul.f32 %v541, %v553
      %v562 = vsel %vm554, %v547, %v558
      %v563 = vsel %vm555, %v549, %v559
      %v564 = vsel %vm556, %v551, %v560
      %v565 = vsel %vm557, %v553, %v561
      %566 = vst [vmem:[%s148] sm:$0xff] %v562
      %567 = vst [vmem:[%s148 + $0x8] sm:$0xff] %v563
      %568 = vst [vmem:[%s148 + $0x10] sm:$0xff] %v564
      %569 = vst [vmem:[%s148 + $0x18] sm:$0xff] %v565
      %s570 = smul.u32 4, %s13
      %p571 = scmp.lt.s32.totalorder %s570, 7
      %s572 = scalar_select %p571, %s570, 7
      %s573 = smul.addr %s572, 8
      %s574 = scalar_lea.vmem %s2, %s573
      // Predicated region
      $region29: #{discriminator_forward.7} parent=27 // pred_check
        %p575 = pneg %p78
      $region30: #{discriminator_forward.7} parent=27 // pred_check_branch
        %577 = sbr.rel (%p575) target = $region32
      $region31: #{discriminator_forward.7} parent=27 // pred_region
        %s578 = smul.u32 4, %s13
      $region32: #{discriminator_forward.7} parent=27 // pred_fallthru
        _
    $region28: #{discriminator_forward.7} parent=5 // pred_fallthru
      _
    %p579 = scmp.le.s32.totalorder 2, %s8
    // Predicated region
    $region33: #{discriminator_forward.7} parent=5 // pred_check
      %p580 = pneg %p579
    $region34: #{discriminator_forward.7} parent=5 // pred_check_branch
      %582 = sbr.rel (%p580) target = $region36
    $region35: #{discriminator_forward.7} parent=5 // pred_region
      %s583 = ssub.s32 %s8, 2
      // Predicated region
      $region37: #{discriminator_forward.7} parent=35 // pred_check
        %p584 = pneg %p84
      $region38: #{discriminator_forward.7} parent=35 // pred_check_branch
        %586 = sbr.rel (%p584) target = $region40
      $region39: #{discriminator_forward.7} parent=35 // pred_region
        %s587 = smul.u32 4, %s14
        %p588 = scmp.lt.s32.totalorder %s587, 7
        %s589 = scalar_select %p588, %s587, 7
        %s590 = smul.addr %s589, 8
        %s591 = scalar_lea.vmem %s2, %s590
      $region40: #{discriminator_forward.7} parent=35 // pred_fallthru
        _
    $region36: #{discriminator_forward.7} parent=5 // pred_fallthru
      _
  $region6: #{discriminator_forward.7} parent=0 // loop_footer
    %s12 = sadd.s32 1, %s8
  $region7: #{discriminator_forward.7} parent=0 // loop_footer_branch
    %7 = sbr.rel target = $region3
  $region8: #{discriminator_forward.7} parent=0 // loop_exit
    _

</llo_original>
